<compile_context>
chip_gen: v7x
topology: tpu7x:2x2x1
jax: 0.10.0
libtpu: 0.0.40
codegen_flags: <defaults>
</compile_context>

<pallas_src>
import functools

import jax
import jax.numpy as jnp
from jax import lax
from jax.experimental import pallas as pl
from jax.experimental.pallas import tpu as pltpu

# ---- module hyper-parameters (small test sizes; original uses 256 / 1400) ----
SEMEME_NUMBER = 128
HIDDEN_SIZE = 32
GW = True
MP = True
SE = True


# ----------------------------- Pallas kernel ---------------------------------
def _bilstm_score_kernel(gxf_ref, gxb_ref, mask_ref,
                         whh_f_ref, whh_b_ref, wfc_f_ref, wfc_b_ref, bfc_ref,
                         score_ref, hf_ref, hb_ref, *, time_chunk):
    # gxf/gxb : (S, BC, 4H) bf16 precomputed input gates (biases folded in)
    # mask    : (S, BC, 1) f32, 1.0 where token > 0
    # whh_*   : (H, 4H) bf16; wfc_* : (H, NS) bf16; bfc : (1, NS) f32
    # score   : (BC, NS) f32 output tile (used as running-max accumulator)
    # hf/hb   : (S*BC, H) bf16 scratch with per-timestep hidden states
    S, BC, H4 = gxf_ref.shape
    H = whh_f_ref.shape[0]
    NS = score_ref.shape[1]
    NEG = jnp.float32(-10000000.0)

    # hoisted, loop-invariant weight loads
    whh_f = whh_f_ref[...]
    whh_b = whh_b_ref[...]

    def cell(gx_t, h_prev, c_prev, whh):
        # gx_t already holds x_t @ Wih + b; only the recurrent dot remains.
        g = gx_t.astype(jnp.float32) + jnp.dot(
            h_prev.astype(jnp.bfloat16), whh, preferred_element_type=jnp.float32)
        i = jax.nn.sigmoid(g[:, 0:H])
        f = jax.nn.sigmoid(g[:, H:2 * H])
        gg = jnp.tanh(g[:, 2 * H:3 * H])
        o = jax.nn.sigmoid(g[:, 3 * H:4 * H])
        c = f * c_prev + i * gg
        h = o * jnp.tanh(c)
        return h, c

    z = jnp.zeros((BC, H), jnp.float32)

    # ---- interleaved forward (t) / backward (S-1-t) recurrence ----
    def step(t, carry):
        hf, cf, hb, cb = carry
        # forward direction, timestep t
        hf, cf = cell(gxf_ref[t], hf, cf, whh_f)
        hf_ref[pl.ds(pl.multiple_of(t * BC, BC), BC), :] = hf.astype(jnp.bfloat16)
        # backward direction, timestep tb = S-1-t (independent chain)
        tb = S - 1 - t
        # carry mask: keep state iff tb < len-1, i.e. mask[tb+1] == 1.
        # At tb == S-1 the incoming state is the zero init, so reading
        # mask[S-1] instead of the (out-of-range) mask[S] is harmless.
        keep = mask_ref[jnp.minimum(tb + 1, S - 1)]          # (BC, 1)
        hb, cb = cell(gxb_ref[tb], hb * keep, cb * keep, whh_b)
        hb_ref[pl.ds(pl.multiple_of(tb * BC, BC), BC), :] = hb.astype(jnp.bfloat16)
        return (hf, cf, hb, cb)

    lax.fori_loop(0, S, step, (z, z, z, z),
                  unroll=True if S <= 16 else 4)

    # ---- deferred fc, chunked over time, running max into score_ref ----
    wfc_f = wfc_f_ref[...]
    wfc_b = wfc_b_ref[...]
    score_ref[...] = jnp.full((BC, NS), NEG, jnp.float32)
    TC = time_chunk
    for c in range(S // TC):
        t0 = c * TC
        r0 = t0 * BC
        ps = (jnp.dot(hf_ref[r0:r0 + TC * BC, :], wfc_f,
                      preferred_element_type=jnp.float32)
              + jnp.dot(hb_ref[r0:r0 + TC * BC, :], wfc_b,
                        preferred_element_type=jnp.float32))      # (TC*BC, NS)
        mseg = mask_ref[t0:t0 + TC]                               # (TC, BC, 1)
        m = None
        for u in range(TC):
            pu = jnp.where(mseg[u] > 0.0, ps[u * BC:(u + 1) * BC, :], NEG)
            m = pu if m is None else jnp.maximum(m, pu)
        score_ref[...] = jnp.maximum(score_ref[...], m)
    # fc bias added once, after the max (constant over t, so max commutes)
    score_ref[...] = score_ref[...] + bfc_ref[...]


def bilstm_masked_max_score(x_emb, mask, lstm, fc_w, fc_b, *, batch_chunk=16):
    """x_emb: (B,S,E) f32, mask: (B,S) f32 (1 where token>0) -> score (B,NS)."""
    B, S, E = x_emb.shape
    H = lstm['whh_f'].shape[0]
    NS = fc_w.shape[1]
    H4 = 4 * H

    # pad batch to a multiple of the batch chunk (multiple of 16 keeps all bf16
    # blocks / stores sublane-tile aligned)
    BC = batch_chunk
    Bp = max(BC, ((B + BC - 1) // BC) * BC)
    pad = Bp - B
    x_emb = jnp.pad(x_emb.astype(jnp.float32), ((0, pad), (0, 0), (0, 0)))
    mask = jnp.pad(mask.astype(jnp.float32), ((0, pad), (0, 0)))

    # --- hoisted input projection: one GEMM per direction, time-major, bf16 ---
    gx_f = (jnp.einsum('bse,eg->sbg', x_emb, lstm['wih_f'])
            + lstm['b_f']).astype(jnp.bfloat16)                   # (S, Bp, 4H)
    gx_b = (jnp.einsum('bse,eg->sbg', x_emb, lstm['wih_b'])
            + lstm['b_b']).astype(jnp.bfloat16)                   # (S, Bp, 4H)

    mask3 = jnp.transpose(mask, (1, 0))[:, :, None]               # (S, Bp, 1)

    # bf16 MXU operands, f32 accumulation
    whh_f = lstm['whh_f'].astype(jnp.bfloat16)                    # (H, 4H)
    whh_b = lstm['whh_b'].astype(jnp.bfloat16)
    wfc_f = fc_w[:H].astype(jnp.bfloat16)                         # (H, NS)
    wfc_b = fc_w[H:].astype(jnp.bfloat16)                         # (H, NS)
    bfc = fc_b.astype(jnp.float32)                                # (1, NS)

    # time-chunk for the deferred fc (largest divisor of S that is <= 8)
    TC = next(d for d in range(min(S, 8), 0, -1) if S % d == 0)
    num_chunks = Bp // BC

    kernel = functools.partial(_bilstm_score_kernel, time_chunk=TC)

    score = pl.pallas_call(
        kernel,
        out_shape=jax.ShapeDtypeStruct((Bp, NS), jnp.float32),
        grid=(num_chunks,),
        in_specs=[
            pl.BlockSpec((S, BC, H4), lambda i: (0, i, 0)),   # gx_f
            pl.BlockSpec((S, BC, H4), lambda i: (0, i, 0)),   # gx_b
            pl.BlockSpec((S, BC, 1), lambda i: (0, i, 0)),    # mask
            pl.BlockSpec((H, H4), lambda i: (0, 0)),          # whh_f
            pl.BlockSpec((H, H4), lambda i: (0, 0)),          # whh_b
            pl.BlockSpec((H, NS), lambda i: (0, 0)),          # wfc_f
            pl.BlockSpec((H, NS), lambda i: (0, 0)),          # wfc_b
            pl.BlockSpec((1, NS), lambda i: (0, 0)),          # bfc
        ],
        out_specs=pl.BlockSpec((BC, NS), lambda i: (i, 0)),
        scratch_shapes=[pltpu.VMEM((S * BC, H), jnp.bfloat16),
                        pltpu.VMEM((S * BC, H), jnp.bfloat16)],
        compiler_params=pltpu.CompilerParams(
            dimension_semantics=("parallel",),
            vmem_limit_bytes=64 * 1024 * 1024),
    )(gx_f, gx_b, mask3, whh_f, whh_b, wfc_f, wfc_b, bfc)
    return score[:B]


# ------------------------------- JAX glue -------------------------------------
def _max_norm(e, max_norm=5.0, eps=1e-7):
    nrm = jnp.sqrt(jnp.sum(e * e, axis=-1, keepdims=True))
    return e * jnp.minimum(1.0, max_norm / jnp.maximum(nrm, eps))


def splstm_forward(params, x, word2sememe):
    """Inference path of SPLSTM.forward ('inference' operation). x: (B,S) int32."""
    we = _max_norm(params['word_emb'][x])                     # (B,S,E); padding_idx=0 row zero
    if SE:
        x_sem = word2sememe[x]                                # (B,S,K)
        if GW:
            x_sem = x_sem.at[:, 0, :].set(SEMEME_NUMBER)      # x_sememe[:,0,:] = sememe_number
        sem_mask = (x_sem < SEMEME_NUMBER).astype(jnp.float32)
        se_emb = _max_norm(params['sememe_emb'][x_sem])       # padding row is zero
        se_avg = jnp.sum(se_emb, axis=2) / jnp.maximum(
            jnp.sum(sem_mask, axis=2, keepdims=True), 1.0)
        x_emb = we + se_avg
    else:
        x_emb = we
    # embedding_dropout: identity at inference (eval mode)
    mask = (x > 0).astype(jnp.float32)                        # (B,S)
    score = bilstm_masked_max_score(x_emb, mask,
                                    params['lstm'], params['fc_w'], params['fc_b'])
    indices = jnp.argsort(-score, axis=-1)                    # torch.sort(descending=True) indices
    return score, indices
    # TODO(synk): MultiLabelSoftMarginLoss ('train' operation) not implemented.


def init_params(key, vocab, emb_dim, hidden, sememe_num):
    ks = jax.random.split(key, 12)

    def u(k, shape, scale):
        return jax.random.uniform(k, shape, jnp.float32, -scale, scale)

    k_h = 1.0 / float(hidden) ** 0.5
    k_fc = 1.0 / float(2 * hidden) ** 0.5

    word_emb = jax.random.normal(ks[0], (vocab, emb_dim), jnp.float32) * 0.1
    word_emb = word_emb.at[0].set(0.0)                        # padding_idx = 0
    sememe_emb = jax.random.normal(ks[1], (sememe_num + 1, emb_dim), jnp.float32) * 0.1
    sememe_emb = sememe_emb.at[sememe_num].set(0.0)           # padding_idx = sememe_number

    lstm = dict(
        wih_f=u(ks[2], (emb_dim, 4 * hidden), k_h),
        whh_f=u(ks[3], (hidden, 4 * hidden), k_h),
        b_f=u(ks[4], (1, 4 * hidden), k_h) + u(ks[5], (1, 4 * hidden), k_h),
        wih_b=u(ks[6], (emb_dim, 4 * hidden), k_h),
        whh_b=u(ks[7], (hidden, 4 * hidden), k_h),
        b_b=u(ks[8], (1, 4 * hidden), k_h) + u(ks[9], (1, 4 * hidden), k_h),
    )
    fc_w = u(ks[10], (2 * hidden, sememe_num), k_fc)          # (2H, NS) = Linear weight^T
    fc_b = u(ks[11], (1, sememe_num), k_fc)
    return dict(word_emb=word_emb, sememe_emb=sememe_emb, lstm=lstm,
                fc_w=fc_w, fc_b=fc_b)


if __name__ == "__main__":
    B, S, E, V, K = 2, 8, 32, 50, 5

    key = jax.random.PRNGKey(0)
    kp, kw = jax.random.split(key)
    params = init_params(kp, V, E, HIDDEN_SIZE, SEMEME_NUMBER)
    # train_word2sememe: (V, K) sememe ids, SEMEME_NUMBER acts as padding id.
    word2sememe = jax.random.randint(kw, (V, K), 0, SEMEME_NUMBER + 1, dtype=jnp.int32)

    # token-id batch: one full-length sequence, one padded sequence.
    x = jnp.array([[3, 7, 12, 5, 9, 2, 4, 8],
                   [6, 11, 3, 0, 0, 0, 0, 0]], dtype=jnp.int32)

    fwd = jax.jit(functools.partial(splstm_forward, params))
    score, indices = fwd(x, word2sememe)
    jax.block_until_ready((score, indices))
    assert score.shape == (B, SEMEME_NUMBER) and indices.shape == (B, SEMEME_NUMBER)
    assert bool(jnp.all(jnp.isfinite(score)))
    print("KERNEL_OK")
</pallas_src>

<mosaic_0001>
module attributes {stable_mosaic.version = 11 : i64} {
  func.func @_bilstm_score_kernel(%arg0: i32, %arg1: memref<8x16x128xbf16, #tpu.memory_space<vmem>>, %arg2: memref<8x16x128xbf16, #tpu.memory_space<vmem>>, %arg3: memref<8x16x1xf32, #tpu.memory_space<vmem>>, %arg4: memref<32x128xbf16, #tpu.memory_space<vmem>>, %arg5: memref<32x128xbf16, #tpu.memory_space<vmem>>, %arg6: memref<32x128xbf16, #tpu.memory_space<vmem>>, %arg7: memref<32x128xbf16, #tpu.memory_space<vmem>>, %arg8: memref<1x128xf32, #tpu.memory_space<vmem>>, %arg9: memref<16x128xf32, #tpu.memory_space<vmem>>, %arg10: memref<128x32xbf16, #tpu.memory_space<vmem>>, %arg11: memref<128x32xbf16, #tpu.memory_space<vmem>>) attributes {dimension_semantics = [#tpu.dimension_semantics<parallel>], iteration_bounds = array<i64: 1>, scalar_prefetch = 0 : i64, scratch_operands = 2 : i64, tpu.core_type = #tpu.core_type<tc>, window_params = [{transform_indices = @transform_0, window_bounds = array<i64: 8, 16, 128>}, {transform_indices = @transform_1, window_bounds = array<i64: 8, 16, 128>}, {transform_indices = @transform_2, window_bounds = array<i64: 8, 16, 1>}, {pipeline_mode = #tpu.pipeline_mode<synchronous>, transform_indices = @transform_3, window_bounds = array<i64: 32, 128>}, {pipeline_mode = #tpu.pipeline_mode<synchronous>, transform_indices = @transform_4, window_bounds = array<i64: 32, 128>}, {pipeline_mode = #tpu.pipeline_mode<synchronous>, transform_indices = @transform_5, window_bounds = array<i64: 32, 128>}, {pipeline_mode = #tpu.pipeline_mode<synchronous>, transform_indices = @transform_6, window_bounds = array<i64: 32, 128>}, {pipeline_mode = #tpu.pipeline_mode<synchronous>, transform_indices = @transform_7, window_bounds = array<i64: 1, 128>}, {transform_indices = @transform_8, window_bounds = array<i64: 16, 128>}]} {
    %c0 = arith.constant 0 : index
    %c0_0 = arith.constant 0 : index
    %0 = vector.load %arg4[%c0, %c0_0] : memref<32x128xbf16, #tpu.memory_space<vmem>>, vector<32x128xbf16>
    %c0_1 = arith.constant 0 : index
    %c0_2 = arith.constant 0 : index
    %1 = vector.load %arg5[%c0_1, %c0_2] : memref<32x128xbf16, #tpu.memory_space<vmem>>, vector<32x128xbf16>
    %cst = arith.constant 0.000000e+00 : f32
    %2 = vector.broadcast %cst : f32 to vector<16x32xf32>
    %c0_i32 = arith.constant 0 : i32
    %3 = arith.index_cast %c0_i32 : i32 to index
    %c0_3 = arith.constant 0 : index
    %c0_4 = arith.constant 0 : index
    %4 = vector.load %arg1[%3, %c0_3, %c0_4] : memref<8x16x128xbf16, #tpu.memory_space<vmem>>, vector<1x16x128xbf16>
    %5 = vector.shape_cast %4 : vector<1x16x128xbf16> to vector<16x128xbf16>
    %6 = arith.extf %5 : vector<16x128xbf16> to vector<16x128xf32>
    %7 = arith.truncf %2 : vector<16x32xf32> to vector<16x32xbf16>
    %cst_5 = arith.constant dense<0.000000e+00> : vector<16x128xf32>
    %8 = tpu.matmul %7, %0, %cst_5 {dimension_numbers = #tpu.dot_dimension_numbers<[1], [0], [0], [1], [0, 0, 1, 1], [], []>} : vector<16x32xbf16>, vector<32x128xbf16>, vector<16x128xf32> -> vector<16x128xf32>
    %9 = arith.addf %6, %8 : vector<16x128xf32>
    %10 = vector.extract_strided_slice %9 {offsets = [0, 0], sizes = [16, 32], strides = [1, 1]} : vector<16x128xf32> to vector<16x32xf32>
    %11 = arith.negf %10 : vector<16x32xf32>
    %12 = math.exp %11 : vector<16x32xf32>
    %cst_6 = arith.constant 1.000000e+00 : f32
    %13 = vector.broadcast %cst_6 : f32 to vector<16x32xf32>
    %14 = arith.addf %13, %12 : vector<16x32xf32>
    %15 = arith.divf %13, %14 : vector<16x32xf32>
    %16 = vector.extract_strided_slice %9 {offsets = [0, 32], sizes = [16, 32], strides = [1, 1]} : vector<16x128xf32> to vector<16x32xf32>
    %17 = arith.negf %16 : vector<16x32xf32>
    %18 = math.exp %17 : vector<16x32xf32>
    %cst_7 = arith.constant 1.000000e+00 : f32
    %19 = vector.broadcast %cst_7 : f32 to vector<16x32xf32>
    %20 = arith.addf %19, %18 : vector<16x32xf32>
    %21 = arith.divf %19, %20 : vector<16x32xf32>
    %22 = vector.extract_strided_slice %9 {offsets = [0, 64], sizes = [16, 32], strides = [1, 1]} : vector<16x128xf32> to vector<16x32xf32>
    %23 = math.tanh %22 : vector<16x32xf32>
    %24 = vector.extract_strided_slice %9 {offsets = [0, 96], sizes = [16, 32], strides = [1, 1]} : vector<16x128xf32> to vector<16x32xf32>
    %25 = arith.negf %24 : vector<16x32xf32>
    %26 = math.exp %25 : vector<16x32xf32>
    %cst_8 = arith.constant 1.000000e+00 : f32
    %27 = vector.broadcast %cst_8 : f32 to vector<16x32xf32>
    %28 = arith.addf %27, %26 : vector<16x32xf32>
    %29 = arith.divf %27, %28 : vector<16x32xf32>
    %30 = arith.mulf %21, %2 : vector<16x32xf32>
    %31 = arith.mulf %15, %23 : vector<16x32xf32>
    %32 = arith.addf %30, %31 : vector<16x32xf32>
    %33 = math.tanh %32 : vector<16x32xf32>
    %34 = arith.mulf %29, %33 : vector<16x32xf32>
    %35 = arith.truncf %34 : vector<16x32xf32> to vector<16x32xbf16>
    %c16_i32 = arith.constant 16 : i32
    %36 = arith.muli %c0_i32, %c16_i32 : i32
    %37 = tpu.assume_multiple %36, 16 : i32
    %38 = arith.index_cast %37 : i32 to index
    %c0_9 = arith.constant 0 : index
    %39 = vector.load %arg10[%38, %c0_9] : memref<128x32xbf16, #tpu.memory_space<vmem>>, vector<16x32xbf16>
    tpu.vector_store %arg10[%38, %c0_9], %35 {strides = array<i32>} : memref<128x32xbf16, #tpu.memory_space<vmem>>, vector<16x32xbf16>,
    %c7_i32 = arith.constant 7 : i32
    %40 = arith.subi %c7_i32, %c0_i32 : i32
    %c1_i32 = arith.constant 1 : i32
    %41 = arith.addi %40, %c1_i32 : i32
    %c7_i32_10 = arith.constant 7 : i32
    %42 = arith.minsi %41, %c7_i32_10 : i32
    %43 = arith.index_cast %42 : i32 to index
    %c0_11 = arith.constant 0 : index
    %c0_12 = arith.constant 0 : index
    %44 = vector.load %arg3[%43, %c0_11, %c0_12] : memref<8x16x1xf32, #tpu.memory_space<vmem>>, vector<1x16x1xf32>
    %45 = vector.shape_cast %44 : vector<1x16x1xf32> to vector<16x1xf32>
    %46 = arith.index_cast %40 : i32 to index
    %c0_13 = arith.constant 0 : index
    %c0_14 = arith.constant 0 : index
    %47 = vector.load %arg2[%46, %c0_13, %c0_14] : memref<8x16x128xbf16, #tpu.memory_space<vmem>>, vector<1x16x128xbf16>
    %48 = vector.shape_cast %47 : vector<1x16x128xbf16> to vector<16x128xbf16>
    %49 = vector.broadcast %45 : vector<16x1xf32> to vector<16x32xf32>
    %50 = arith.mulf %2, %49 : vector<16x32xf32>
    %51 = vector.broadcast %45 : vector<16x1xf32> to vector<16x32xf32>
    %52 = arith.mulf %2, %51 : vector<16x32xf32>
    %53 = arith.extf %48 : vector<16x128xbf16> to vector<16x128xf32>
    %54 = arith.truncf %50 : vector<16x32xf32> to vector<16x32xbf16>
    %cst_15 = arith.constant dense<0.000000e+00> : vector<16x128xf32>
    %55 = tpu.matmul %54, %1, %cst_15 {dimension_numbers = #tpu.dot_dimension_numbers<[1], [0], [0], [1], [0, 0, 1, 1], [], []>} : vector<16x32xbf16>, vector<32x128xbf16>, vector<16x128xf32> -> vector<16x128xf32>
    %56 = arith.addf %53, %55 : vector<16x128xf32>
    %57 = vector.extract_strided_slice %56 {offsets = [0, 0], sizes = [16, 32], strides = [1, 1]} : vector<16x128xf32> to vector<16x32xf32>
    %58 = arith.negf %57 : vector<16x32xf32>
    %59 = math.exp %58 : vector<16x32xf32>
    %cst_16 = arith.constant 1.000000e+00 : f32
    %60 = vector.broadcast %cst_16 : f32 to vector<16x32xf32>
    %61 = arith.addf %60, %59 : vector<16x32xf32>
    %62 = arith.divf %60, %61 : vector<16x32xf32>
    %63 = vector.extract_strided_slice %56 {offsets = [0, 32], sizes = [16, 32], strides = [1, 1]} : vector<16x128xf32> to vector<16x32xf32>
    %64 = arith.negf %63 : vector<16x32xf32>
    %65 = math.exp %64 : vector<16x32xf32>
    %cst_17 = arith.constant 1.000000e+00 : f32
    %66 = vector.broadcast %cst_17 : f32 to vector<16x32xf32>
    %67 = arith.addf %66, %65 : vector<16x32xf32>
    %68 = arith.divf %66, %67 : vector<16x32xf32>
    %69 = vector.extract_strided_slice %56 {offsets = [0, 64], sizes = [16, 32], strides = [1, 1]} : vector<16x128xf32> to vector<16x32xf32>
    %70 = math.tanh %69 : vector<16x32xf32>
    %71 = vector.extract_strided_slice %56 {offsets = [0, 96], sizes = [16, 32], strides = [1, 1]} : vector<16x128xf32> to vector<16x32xf32>
    %72 = arith.negf %71 : vector<16x32xf32>
    %73 = math.exp %72 : vector<16x32xf32>
    %cst_18 = arith.constant 1.000000e+00 : f32
    %74 = vector.broadcast %cst_18 : f32 to vector<16x32xf32>
    %75 = arith.addf %74, %73 : vector<16x32xf32>
    %76 = arith.divf %74, %75 : vector<16x32xf32>
    %77 = arith.mulf %68, %52 : vector<16x32xf32>
    %78 = arith.mulf %62, %70 : vector<16x32xf32>
    %79 = arith.addf %77, %78 : vector<16x32xf32>
    %80 = math.tanh %79 : vector<16x32xf32>
    %81 = arith.mulf %76, %80 : vector<16x32xf32>
    %82 = arith.truncf %81 : vector<16x32xf32> to vector<16x32xbf16>
    %c16_i32_19 = arith.constant 16 : i32
    %83 = arith.muli %40, %c16_i32_19 : i32
    %84 = tpu.assume_multiple %83, 16 : i32
    %85 = arith.index_cast %84 : i32 to index
    %c0_20 = arith.constant 0 : index
    %86 = vector.load %arg11[%85, %c0_20] : memref<128x32xbf16, #tpu.memory_space<vmem>>, vector<16x32xbf16>
    tpu.vector_store %arg11[%85, %c0_20], %82 {strides = array<i32>} : memref<128x32xbf16, #tpu.memory_space<vmem>>, vector<16x32xbf16>,
    %c1_i32_21 = arith.constant 1 : i32
    %87 = arith.index_cast %c1_i32_21 : i32 to index
    %c0_22 = arith.constant 0 : index
    %c0_23 = arith.constant 0 : index
    %88 = vector.load %arg1[%87, %c0_22, %c0_23] : memref<8x16x128xbf16, #tpu.memory_space<vmem>>, vector<1x16x128xbf16>
    %89 = vector.shape_cast %88 : vector<1x16x128xbf16> to vector<16x128xbf16>
    %90 = arith.extf %89 : vector<16x128xbf16> to vector<16x128xf32>
    %91 = arith.truncf %34 : vector<16x32xf32> to vector<16x32xbf16>
    %cst_24 = arith.constant dense<0.000000e+00> : vector<16x128xf32>
    %92 = tpu.matmul %91, %0, %cst_24 {dimension_numbers = #tpu.dot_dimension_numbers<[1], [0], [0], [1], [0, 0, 1, 1], [], []>} : vector<16x32xbf16>, vector<32x128xbf16>, vector<16x128xf32> -> vector<16x128xf32>
    %93 = arith.addf %90, %92 : vector<16x128xf32>
    %94 = vector.extract_strided_slice %93 {offsets = [0, 0], sizes = [16, 32], strides = [1, 1]} : vector<16x128xf32> to vector<16x32xf32>
    %95 = arith.negf %94 : vector<16x32xf32>
    %96 = math.exp %95 : vector<16x32xf32>
    %cst_25 = arith.constant 1.000000e+00 : f32
    %97 = vector.broadcast %cst_25 : f32 to vector<16x32xf32>
    %98 = arith.addf %97, %96 : vector<16x32xf32>
    %99 = arith.divf %97, %98 : vector<16x32xf32>
    %100 = vector.extract_strided_slice %93 {offsets = [0, 32], sizes = [16, 32], strides = [1, 1]} : vector<16x128xf32> to vector<16x32xf32>
    %101 = arith.negf %100 : vector<16x32xf32>
    %102 = math.exp %101 : vector<16x32xf32>
    %cst_26 = arith.constant 1.000000e+00 : f32
    %103 = vector.broadcast %cst_26 : f32 to vector<16x32xf32>
    %104 = arith.addf %103, %102 : vector<16x32xf32>
    %105 = arith.divf %103, %104 : vector<16x32xf32>
    %106 = vector.extract_strided_slice %93 {offsets = [0, 64], sizes = [16, 32], strides = [1, 1]} : vector<16x128xf32> to vector<16x32xf32>
    %107 = math.tanh %106 : vector<16x32xf32>
    %108 = vector.extract_strided_slice %93 {offsets = [0, 96], sizes = [16, 32], strides = [1, 1]} : vector<16x128xf32> to vector<16x32xf32>
    %109 = arith.negf %108 : vector<16x32xf32>
    %110 = math.exp %109 : vector<16x32xf32>
    %cst_27 = arith.constant 1.000000e+00 : f32
    %111 = vector.broadcast %cst_27 : f32 to vector<16x32xf32>
    %112 = arith.addf %111, %110 : vector<16x32xf32>
    %113 = arith.divf %111, %112 : vector<16x32xf32>
    %114 = arith.mulf %105, %32 : vector<16x32xf32>
    %115 = arith.mulf %99, %107 : vector<16x32xf32>
    %116 = arith.addf %114, %115 : vector<16x32xf32>
    %117 = math.tanh %116 : vector<16x32xf32>
    %118 = arith.mulf %113, %117 : vector<16x32xf32>
    %119 = arith.truncf %118 : vector<16x32xf32> to vector<16x32xbf16>
    %c16_i32_28 = arith.constant 16 : i32
    %120 = arith.muli %c1_i32_21, %c16_i32_28 : i32
    %121 = tpu.assume_multiple %120, 16 : i32
    %122 = arith.index_cast %121 : i32 to index
    %c0_29 = arith.constant 0 : index
    %123 = vector.load %arg10[%122, %c0_29] : memref<128x32xbf16, #tpu.memory_space<vmem>>, vector<16x32xbf16>
    tpu.vector_store %arg10[%122, %c0_29], %119 {strides = array<i32>} : memref<128x32xbf16, #tpu.memory_space<vmem>>, vector<16x32xbf16>,
    %c7_i32_30 = arith.constant 7 : i32
    %124 = arith.subi %c7_i32_30, %c1_i32_21 : i32
    %c1_i32_31 = arith.constant 1 : i32
    %125 = arith.addi %124, %c1_i32_31 : i32
    %c7_i32_32 = arith.constant 7 : i32
    %126 = arith.minsi %125, %c7_i32_32 : i32
    %127 = arith.index_cast %126 : i32 to index
    %c0_33 = arith.constant 0 : index
    %c0_34 = arith.constant 0 : index
    %128 = vector.load %arg3[%127, %c0_33, %c0_34] : memref<8x16x1xf32, #tpu.memory_space<vmem>>, vector<1x16x1xf32>
    %129 = vector.shape_cast %128 : vector<1x16x1xf32> to vector<16x1xf32>
    %130 = arith.index_cast %124 : i32 to index
    %c0_35 = arith.constant 0 : index
    %c0_36 = arith.constant 0 : index
    %131 = vector.load %arg2[%130, %c0_35, %c0_36] : memref<8x16x128xbf16, #tpu.memory_space<vmem>>, vector<1x16x128xbf16>
    %132 = vector.shape_cast %131 : vector<1x16x128xbf16> to vector<16x128xbf16>
    %133 = vector.broadcast %129 : vector<16x1xf32> to vector<16x32xf32>
    %134 = arith.mulf %81, %133 : vector<16x32xf32>
    %135 = vector.broadcast %129 : vector<16x1xf32> to vector<16x32xf32>
    %136 = arith.mulf %79, %135 : vector<16x32xf32>
    %137 = arith.extf %132 : vector<16x128xbf16> to vector<16x128xf32>
    %138 = arith.truncf %134 : vector<16x32xf32> to vector<16x32xbf16>
    %cst_37 = arith.constant dense<0.000000e+00> : vector<16x128xf32>
    %139 = tpu.matmul %138, %1, %cst_37 {dimension_numbers = #tpu.dot_dimension_numbers<[1], [0], [0], [1], [0, 0, 1, 1], [], []>} : vector<16x32xbf16>, vector<32x128xbf16>, vector<16x128xf32> -> vector<16x128xf32>
    %140 = arith.addf %137, %139 : vector<16x128xf32>
    %141 = vector.extract_strided_slice %140 {offsets = [0, 0], sizes = [16, 32], strides = [1, 1]} : vector<16x128xf32> to vector<16x32xf32>
    %142 = arith.negf %141 : vector<16x32xf32>
    %143 = math.exp %142 : vector<16x32xf32>
    %cst_38 = arith.constant 1.000000e+00 : f32
    %144 = vector.broadcast %cst_38 : f32 to vector<16x32xf32>
    %145 = arith.addf %144, %143 : vector<16x32xf32>
    %146 = arith.divf %144, %145 : vector<16x32xf32>
    %147 = vector.extract_strided_slice %140 {offsets = [0, 32], sizes = [16, 32], strides = [1, 1]} : vector<16x128xf32> to vector<16x32xf32>
    %148 = arith.negf %147 : vector<16x32xf32>
    %149 = math.exp %148 : vector<16x32xf32>
    %cst_39 = arith.constant 1.000000e+00 : f32
    %150 = vector.broadcast %cst_39 : f32 to vector<16x32xf32>
    %151 = arith.addf %150, %149 : vector<16x32xf32>
    %152 = arith.divf %150, %151 : vector<16x32xf32>
    %153 = vector.extract_strided_slice %140 {offsets = [0, 64], sizes = [16, 32], strides = [1, 1]} : vector<16x128xf32> to vector<16x32xf32>
    %154 = math.tanh %153 : vector<16x32xf32>
    %155 = vector.extract_strided_slice %140 {offsets = [0, 96], sizes = [16, 32], strides = [1, 1]} : vector<16x128xf32> to vector<16x32xf32>
    %156 = arith.negf %155 : vector<16x32xf32>
    %157 = math.exp %156 : vector<16x32xf32>
    %cst_40 = arith.constant 1.000000e+00 : f32
    %158 = vector.broadcast %cst_40 : f32 to vector<16x32xf32>
    %159 = arith.addf %158, %157 : vector<16x32xf32>
    %160 = arith.divf %158, %159 : vector<16x32xf32>
    %161 = arith.mulf %152, %136 : vector<16x32xf32>
    %162 = arith.mulf %146, %154 : vector<16x32xf32>
    %163 = arith.addf %161, %162 : vector<16x32xf32>
    %164 = math.tanh %163 : vector<16x32xf32>
    %165 = arith.mulf %160, %164 : vector<16x32xf32>
    %166 = arith.truncf %165 : vector<16x32xf32> to vector<16x32xbf16>
    %c16_i32_41 = arith.constant 16 : i32
    %167 = arith.muli %124, %c16_i32_41 : i32
    %168 = tpu.assume_multiple %167, 16 : i32
    %169 = arith.index_cast %168 : i32 to index
    %c0_42 = arith.constant 0 : index
    %170 = vector.load %arg11[%169, %c0_42] : memref<128x32xbf16, #tpu.memory_space<vmem>>, vector<16x32xbf16>
    tpu.vector_store %arg11[%169, %c0_42], %166 {strides = array<i32>} : memref<128x32xbf16, #tpu.memory_space<vmem>>, vector<16x32xbf16>,
    %c2_i32 = arith.constant 2 : i32
    %171 = arith.index_cast %c2_i32 : i32 to index
    %c0_43 = arith.constant 0 : index
    %c0_44 = arith.constant 0 : index
    %172 = vector.load %arg1[%171, %c0_43, %c0_44] : memref<8x16x128xbf16, #tpu.memory_space<vmem>>, vector<1x16x128xbf16>
    %173 = vector.shape_cast %172 : vector<1x16x128xbf16> to vector<16x128xbf16>
    %174 = arith.extf %173 : vector<16x128xbf16> to vector<16x128xf32>
    %175 = arith.truncf %118 : vector<16x32xf32> to vector<16x32xbf16>
    %cst_45 = arith.constant dense<0.000000e+00> : vector<16x128xf32>
    %176 = tpu.matmul %175, %0, %cst_45 {dimension_numbers = #tpu.dot_dimension_numbers<[1], [0], [0], [1], [0, 0, 1, 1], [], []>} : vector<16x32xbf16>, vector<32x128xbf16>, vector<16x128xf32> -> vector<16x128xf32>
    %177 = arith.addf %174, %176 : vector<16x128xf32>
    %178 = vector.extract_strided_slice %177 {offsets = [0, 0], sizes = [16, 32], strides = [1, 1]} : vector<16x128xf32> to vector<16x32xf32>
    %179 = arith.negf %178 : vector<16x32xf32>
    %180 = math.exp %179 : vector<16x32xf32>
    %cst_46 = arith.constant 1.000000e+00 : f32
    %181 = vector.broadcast %cst_46 : f32 to vector<16x32xf32>
    %182 = arith.addf %181, %180 : vector<16x32xf32>
    %183 = arith.divf %181, %182 : vector<16x32xf32>
    %184 = vector.extract_strided_slice %177 {offsets = [0, 32], sizes = [16, 32], strides = [1, 1]} : vector<16x128xf32> to vector<16x32xf32>
    %185 = arith.negf %184 : vector<16x32xf32>
    %186 = math.exp %185 : vector<16x32xf32>
    %cst_47 = arith.constant 1.000000e+00 : f32
    %187 = vector.broadcast %cst_47 : f32 to vector<16x32xf32>
    %188 = arith.addf %187, %186 : vector<16x32xf32>
    %189 = arith.divf %187, %188 : vector<16x32xf32>
    %190 = vector.extract_strided_slice %177 {offsets = [0, 64], sizes = [16, 32], strides = [1, 1]} : vector<16x128xf32> to vector<16x32xf32>
    %191 = math.tanh %190 : vector<16x32xf32>
    %192 = vector.extract_strided_slice %177 {offsets = [0, 96], sizes = [16, 32], strides = [1, 1]} : vector<16x128xf32> to vector<16x32xf32>
    %193 = arith.negf %192 : vector<16x32xf32>
    %194 = math.exp %193 : vector<16x32xf32>
    %cst_48 = arith.constant 1.000000e+00 : f32
    %195 = vector.broadcast %cst_48 : f32 to vector<16x32xf32>
    %196 = arith.addf %195, %194 : vector<16x32xf32>
    %197 = arith.divf %195, %196 : vector<16x32xf32>
    %198 = arith.mulf %189, %116 : vector<16x32xf32>
    %199 = arith.mulf %183, %191 : vector<16x32xf32>
    %200 = arith.addf %198, %199 : vector<16x32xf32>
    %201 = math.tanh %200 : vector<16x32xf32>
    %202 = arith.mulf %197, %201 : vector<16x32xf32>
    %203 = arith.truncf %202 : vector<16x32xf32> to vector<16x32xbf16>
    %c16_i32_49 = arith.constant 16 : i32
    %204 = arith.muli %c2_i32, %c16_i32_49 : i32
    %205 = tpu.assume_multiple %204, 16 : i32
    %206 = arith.index_cast %205 : i32 to index
    %c0_50 = arith.constant 0 : index
    %207 = vector.load %arg10[%206, %c0_50] : memref<128x32xbf16, #tpu.memory_space<vmem>>, vector<16x32xbf16>
    tpu.vector_store %arg10[%206, %c0_50], %203 {strides = array<i32>} : memref<128x32xbf16, #tpu.memory_space<vmem>>, vector<16x32xbf16>,
    %c7_i32_51 = arith.constant 7 : i32
    %208 = arith.subi %c7_i32_51, %c2_i32 : i32
    %c1_i32_52 = arith.constant 1 : i32
    %209 = arith.addi %208, %c1_i32_52 : i32
    %c7_i32_53 = arith.constant 7 : i32
    %210 = arith.minsi %209, %c7_i32_53 : i32
    %211 = arith.index_cast %210 : i32 to index
    %c0_54 = arith.constant 0 : index
    %c0_55 = arith.constant 0 : index
    %212 = vector.load %arg3[%211, %c0_54, %c0_55] : memref<8x16x1xf32, #tpu.memory_space<vmem>>, vector<1x16x1xf32>
    %213 = vector.shape_cast %212 : vector<1x16x1xf32> to vector<16x1xf32>
    %214 = arith.index_cast %208 : i32 to index
    %c0_56 = arith.constant 0 : index
    %c0_57 = arith.constant 0 : index
    %215 = vector.load %arg2[%214, %c0_56, %c0_57] : memref<8x16x128xbf16, #tpu.memory_space<vmem>>, vector<1x16x128xbf16>
    %216 = vector.shape_cast %215 : vector<1x16x128xbf16> to vector<16x128xbf16>
    %217 = vector.broadcast %213 : vector<16x1xf32> to vector<16x32xf32>
    %218 = arith.mulf %165, %217 : vector<16x32xf32>
    %219 = vector.broadcast %213 : vector<16x1xf32> to vector<16x32xf32>
    %220 = arith.mulf %163, %219 : vector<16x32xf32>
    %221 = arith.extf %216 : vector<16x128xbf16> to vector<16x128xf32>
    %222 = arith.truncf %218 : vector<16x32xf32> to vector<16x32xbf16>
    %cst_58 = arith.constant dense<0.000000e+00> : vector<16x128xf32>
    %223 = tpu.matmul %222, %1, %cst_58 {dimension_numbers = #tpu.dot_dimension_numbers<[1], [0], [0], [1], [0, 0, 1, 1], [], []>} : vector<16x32xbf16>, vector<32x128xbf16>, vector<16x128xf32> -> vector<16x128xf32>
    %224 = arith.addf %221, %223 : vector<16x128xf32>
    %225 = vector.extract_strided_slice %224 {offsets = [0, 0], sizes = [16, 32], strides = [1, 1]} : vector<16x128xf32> to vector<16x32xf32>
    %226 = arith.negf %225 : vector<16x32xf32>
    %227 = math.exp %226 : vector<16x32xf32>
    %cst_59 = arith.constant 1.000000e+00 : f32
    %228 = vector.broadcast %cst_59 : f32 to vector<16x32xf32>
    %229 = arith.addf %228, %227 : vector<16x32xf32>
    %230 = arith.divf %228, %229 : vector<16x32xf32>
    %231 = vector.extract_strided_slice %224 {offsets = [0, 32], sizes = [16, 32], strides = [1, 1]} : vector<16x128xf32> to vector<16x32xf32>
    %232 = arith.negf %231 : vector<16x32xf32>
    %233 = math.exp %232 : vector<16x32xf32>
    %cst_60 = arith.constant 1.000000e+00 : f32
    %234 = vector.broadcast %cst_60 : f32 to vector<16x32xf32>
    %235 = arith.addf %234, %233 : vector<16x32xf32>
    %236 = arith.divf %234, %235 : vector<16x32xf32>
    %237 = vector.extract_strided_slice %224 {offsets = [0, 64], sizes = [16, 32], strides = [1, 1]} : vector<16x128xf32> to vector<16x32xf32>
    %238 = math.tanh %237 : vector<16x32xf32>
    %239 = vector.extract_strided_slice %224 {offsets = [0, 96], sizes = [16, 32], strides = [1, 1]} : vector<16x128xf32> to vector<16x32xf32>
    %240 = arith.negf %239 : vector<16x32xf32>
    %241 = math.exp %240 : vector<16x32xf32>
    %cst_61 = arith.constant 1.000000e+00 : f32
    %242 = vector.broadcast %cst_61 : f32 to vector<16x32xf32>
    %243 = arith.addf %242, %241 : vector<16x32xf32>
    %244 = arith.divf %242, %243 : vector<16x32xf32>
    %245 = arith.mulf %236, %220 : vector<16x32xf32>
    %246 = arith.mulf %230, %238 : vector<16x32xf32>
    %247 = arith.addf %245, %246 : vector<16x32xf32>
    %248 = math.tanh %247 : vector<16x32xf32>
    %249 = arith.mulf %244, %248 : vector<16x32xf32>
    %250 = arith.truncf %249 : vector<16x32xf32> to vector<16x32xbf16>
    %c16_i32_62 = arith.constant 16 : i32
    %251 = arith.muli %208, %c16_i32_62 : i32
    %252 = tpu.assume_multiple %251, 16 : i32
    %253 = arith.index_cast %252 : i32 to index
    %c0_63 = arith.constant 0 : index
    %254 = vector.load %arg11[%253, %c0_63] : memref<128x32xbf16, #tpu.memory_space<vmem>>, vector<16x32xbf16>
    tpu.vector_store %arg11[%253, %c0_63], %250 {strides = array<i32>} : memref<128x32xbf16, #tpu.memory_space<vmem>>, vector<16x32xbf16>,
    %c3_i32 = arith.constant 3 : i32
    %255 = arith.index_cast %c3_i32 : i32 to index
    %c0_64 = arith.constant 0 : index
    %c0_65 = arith.constant 0 : index
    %256 = vector.load %arg1[%255, %c0_64, %c0_65] : memref<8x16x128xbf16, #tpu.memory_space<vmem>>, vector<1x16x128xbf16>
    %257 = vector.shape_cast %256 : vector<1x16x128xbf16> to vector<16x128xbf16>
    %258 = arith.extf %257 : vector<16x128xbf16> to vector<16x128xf32>
    %259 = arith.truncf %202 : vector<16x32xf32> to vector<16x32xbf16>
    %cst_66 = arith.constant dense<0.000000e+00> : vector<16x128xf32>
    %260 = tpu.matmul %259, %0, %cst_66 {dimension_numbers = #tpu.dot_dimension_numbers<[1], [0], [0], [1], [0, 0, 1, 1], [], []>} : vector<16x32xbf16>, vector<32x128xbf16>, vector<16x128xf32> -> vector<16x128xf32>
    %261 = arith.addf %258, %260 : vector<16x128xf32>
    %262 = vector.extract_strided_slice %261 {offsets = [0, 0], sizes = [16, 32], strides = [1, 1]} : vector<16x128xf32> to vector<16x32xf32>
    %263 = arith.negf %262 : vector<16x32xf32>
    %264 = math.exp %263 : vector<16x32xf32>
    %cst_67 = arith.constant 1.000000e+00 : f32
    %265 = vector.broadcast %cst_67 : f32 to vector<16x32xf32>
    %266 = arith.addf %265, %264 : vector<16x32xf32>
    %267 = arith.divf %265, %266 : vector<16x32xf32>
    %268 = vector.extract_strided_slice %261 {offsets = [0, 32], sizes = [16, 32], strides = [1, 1]} : vector<16x128xf32> to vector<16x32xf32>
    %269 = arith.negf %268 : vector<16x32xf32>
    %270 = math.exp %269 : vector<16x32xf32>
    %cst_68 = arith.constant 1.000000e+00 : f32
    %271 = vector.broadcast %cst_68 : f32 to vector<16x32xf32>
    %272 = arith.addf %271, %270 : vector<16x32xf32>
    %273 = arith.divf %271, %272 : vector<16x32xf32>
    %274 = vector.extract_strided_slice %261 {offsets = [0, 64], sizes = [16, 32], strides = [1, 1]} : vector<16x128xf32> to vector<16x32xf32>
    %275 = math.tanh %274 : vector<16x32xf32>
    %276 = vector.extract_strided_slice %261 {offsets = [0, 96], sizes = [16, 32], strides = [1, 1]} : vector<16x128xf32> to vector<16x32xf32>
    %277 = arith.negf %276 : vector<16x32xf32>
    %278 = math.exp %277 : vector<16x32xf32>
    %cst_69 = arith.constant 1.000000e+00 : f32
    %279 = vector.broadcast %cst_69 : f32 to vector<16x32xf32>
    %280 = arith.addf %279, %278 : vector<16x32xf32>
    %281 = arith.divf %279, %280 : vector<16x32xf32>
    %282 = arith.mulf %273, %200 : vector<16x32xf32>
    %283 = arith.mulf %267, %275 : vector<16x32xf32>
    %284 = arith.addf %282, %283 : vector<16x32xf32>
    %285 = math.tanh %284 : vector<16x32xf32>
    %286 = arith.mulf %281, %285 : vector<16x32xf32>
    %287 = arith.truncf %286 : vector<16x32xf32> to vector<16x32xbf16>
    %c16_i32_70 = arith.constant 16 : i32
    %288 = arith.muli %c3_i32, %c16_i32_70 : i32
    %289 = tpu.assume_multiple %288, 16 : i32
    %290 = arith.index_cast %289 : i32 to index
    %c0_71 = arith.constant 0 : index
    %291 = vector.load %arg10[%290, %c0_71] : memref<128x32xbf16, #tpu.memory_space<vmem>>, vector<16x32xbf16>
    tpu.vector_store %arg10[%290, %c0_71], %287 {strides = array<i32>} : memref<128x32xbf16, #tpu.memory_space<vmem>>, vector<16x32xbf16>,
    %c7_i32_72 = arith.constant 7 : i32
    %292 = arith.subi %c7_i32_72, %c3_i32 : i32
    %c1_i32_73 = arith.constant 1 : i32
    %293 = arith.addi %292, %c1_i32_73 : i32
    %c7_i32_74 = arith.constant 7 : i32
    %294 = arith.minsi %293, %c7_i32_74 : i32
    %295 = arith.index_cast %294 : i32 to index
    %c0_75 = arith.constant 0 : index
    %c0_76 = arith.constant 0 : index
    %296 = vector.load %arg3[%295, %c0_75, %c0_76] : memref<8x16x1xf32, #tpu.memory_space<vmem>>, vector<1x16x1xf32>
    %297 = vector.shape_cast %296 : vector<1x16x1xf32> to vector<16x1xf32>
    %298 = arith.index_cast %292 : i32 to index
    %c0_77 = arith.constant 0 : index
    %c0_78 = arith.constant 0 : index
    %299 = vector.load %arg2[%298, %c0_77, %c0_78] : memref<8x16x128xbf16, #tpu.memory_space<vmem>>, vector<1x16x128xbf16>
    %300 = vector.shape_cast %299 : vector<1x16x128xbf16> to vector<16x128xbf16>
    %301 = vector.broadcast %297 : vector<16x1xf32> to vector<16x32xf32>
    %302 = arith.mulf %249, %301 : vector<16x32xf32>
    %303 = vector.broadcast %297 : vector<16x1xf32> to vector<16x32xf32>
    %304 = arith.mulf %247, %303 : vector<16x32xf32>
    %305 = arith.extf %300 : vector<16x128xbf16> to vector<16x128xf32>
    %306 = arith.truncf %302 : vector<16x32xf32> to vector<16x32xbf16>
    %cst_79 = arith.constant dense<0.000000e+00> : vector<16x128xf32>
    %307 = tpu.matmul %306, %1, %cst_79 {dimension_numbers = #tpu.dot_dimension_numbers<[1], [0], [0], [1], [0, 0, 1, 1], [], []>} : vector<16x32xbf16>, vector<32x128xbf16>, vector<16x128xf32> -> vector<16x128xf32>
    %308 = arith.addf %305, %307 : vector<16x128xf32>
    %309 = vector.extract_strided_slice %308 {offsets = [0, 0], sizes = [16, 32], strides = [1, 1]} : vector<16x128xf32> to vector<16x32xf32>
    %310 = arith.negf %309 : vector<16x32xf32>
    %311 = math.exp %310 : vector<16x32xf32>
    %cst_80 = arith.constant 1.000000e+00 : f32
    %312 = vector.broadcast %cst_80 : f32 to vector<16x32xf32>
    %313 = arith.addf %312, %311 : vector<16x32xf32>
    %314 = arith.divf %312, %313 : vector<16x32xf32>
    %315 = vector.extract_strided_slice %308 {offsets = [0, 32], sizes = [16, 32], strides = [1, 1]} : vector<16x128xf32> to vector<16x32xf32>
    %316 = arith.negf %315 : vector<16x32xf32>
    %317 = math.exp %316 : vector<16x32xf32>
    %cst_81 = arith.constant 1.000000e+00 : f32
    %318 = vector.broadcast %cst_81 : f32 to vector<16x32xf32>
    %319 = arith.addf %318, %317 : vector<16x32xf32>
    %320 = arith.divf %318, %319 : vector<16x32xf32>
    %321 = vector.extract_strided_slice %308 {offsets = [0, 64], sizes = [16, 32], strides = [1, 1]} : vector<16x128xf32> to vector<16x32xf32>
    %322 = math.tanh %321 : vector<16x32xf32>
    %323 = vector.extract_strided_slice %308 {offsets = [0, 96], sizes = [16, 32], strides = [1, 1]} : vector<16x128xf32> to vector<16x32xf32>
    %324 = arith.negf %323 : vector<16x32xf32>
    %325 = math.exp %324 : vector<16x32xf32>
    %cst_82 = arith.constant 1.000000e+00 : f32
    %326 = vector.broadcast %cst_82 : f32 to vector<16x32xf32>
    %327 = arith.addf %326, %325 : vector<16x32xf32>
    %328 = arith.divf %326, %327 : vector<16x32xf32>
    %329 = arith.mulf %320, %304 : vector<16x32xf32>
    %330 = arith.mulf %314, %322 : vector<16x32xf32>
    %331 = arith.addf %329, %330 : vector<16x32xf32>
    %332 = math.tanh %331 : vector<16x32xf32>
    %333 = arith.mulf %328, %332 : vector<16x32xf32>
    %334 = arith.truncf %333 : vector<16x32xf32> to vector<16x32xbf16>
    %c16_i32_83 = arith.constant 16 : i32
    %335 = arith.muli %292, %c16_i32_83 : i32
    %336 = tpu.assume_multiple %335, 16 : i32
    %337 = arith.index_cast %336 : i32 to index
    %c0_84 = arith.constant 0 : index
    %338 = vector.load %arg11[%337, %c0_84] : memref<128x32xbf16, #tpu.memory_space<vmem>>, vector<16x32xbf16>
    tpu.vector_store %arg11[%337, %c0_84], %334 {strides = array<i32>} : memref<128x32xbf16, #tpu.memory_space<vmem>>, vector<16x32xbf16>,
    %c4_i32 = arith.constant 4 : i32
    %339 = arith.index_cast %c4_i32 : i32 to index
    %c0_85 = arith.constant 0 : index
    %c0_86 = arith.constant 0 : index
    %340 = vector.load %arg1[%339, %c0_85, %c0_86] : memref<8x16x128xbf16, #tpu.memory_space<vmem>>, vector<1x16x128xbf16>
    %341 = vector.shape_cast %340 : vector<1x16x128xbf16> to vector<16x128xbf16>
    %342 = arith.extf %341 : vector<16x128xbf16> to vector<16x128xf32>
    %343 = arith.truncf %286 : vector<16x32xf32> to vector<16x32xbf16>
    %cst_87 = arith.constant dense<0.000000e+00> : vector<16x128xf32>
    %344 = tpu.matmul %343, %0, %cst_87 {dimension_numbers = #tpu.dot_dimension_numbers<[1], [0], [0], [1], [0, 0, 1, 1], [], []>} : vector<16x32xbf16>, vector<32x128xbf16>, vector<16x128xf32> -> vector<16x128xf32>
    %345 = arith.addf %342, %344 : vector<16x128xf32>
    %346 = vector.extract_strided_slice %345 {offsets = [0, 0], sizes = [16, 32], strides = [1, 1]} : vector<16x128xf32> to vector<16x32xf32>
    %347 = arith.negf %346 : vector<16x32xf32>
    %348 = math.exp %347 : vector<16x32xf32>
    %cst_88 = arith.constant 1.000000e+00 : f32
    %349 = vector.broadcast %cst_88 : f32 to vector<16x32xf32>
    %350 = arith.addf %349, %348 : vector<16x32xf32>
    %351 = arith.divf %349, %350 : vector<16x32xf32>
    %352 = vector.extract_strided_slice %345 {offsets = [0, 32], sizes = [16, 32], strides = [1, 1]} : vector<16x128xf32> to vector<16x32xf32>
    %353 = arith.negf %352 : vector<16x32xf32>
    %354 = math.exp %353 : vector<16x32xf32>
    %cst_89 = arith.constant 1.000000e+00 : f32
    %355 = vector.broadcast %cst_89 : f32 to vector<16x32xf32>
    %356 = arith.addf %355, %354 : vector<16x32xf32>
    %357 = arith.divf %355, %356 : vector<16x32xf32>
    %358 = vector.extract_strided_slice %345 {offsets = [0, 64], sizes = [16, 32], strides = [1, 1]} : vector<16x128xf32> to vector<16x32xf32>
    %359 = math.tanh %358 : vector<16x32xf32>
    %360 = vector.extract_strided_slice %345 {offsets = [0, 96], sizes = [16, 32], strides = [1, 1]} : vector<16x128xf32> to vector<16x32xf32>
    %361 = arith.negf %360 : vector<16x32xf32>
    %362 = math.exp %361 : vector<16x32xf32>
    %cst_90 = arith.constant 1.000000e+00 : f32
    %363 = vector.broadcast %cst_90 : f32 to vector<16x32xf32>
    %364 = arith.addf %363, %362 : vector<16x32xf32>
    %365 = arith.divf %363, %364 : vector<16x32xf32>
    %366 = arith.mulf %357, %284 : vector<16x32xf32>
    %367 = arith.mulf %351, %359 : vector<16x32xf32>
    %368 = arith.addf %366, %367 : vector<16x32xf32>
    %369 = math.tanh %368 : vector<16x32xf32>
    %370 = arith.mulf %365, %369 : vector<16x32xf32>
    %371 = arith.truncf %370 : vector<16x32xf32> to vector<16x32xbf16>
    %c16_i32_91 = arith.constant 16 : i32
    %372 = arith.muli %c4_i32, %c16_i32_91 : i32
    %373 = tpu.assume_multiple %372, 16 : i32
    %374 = arith.index_cast %373 : i32 to index
    %c0_92 = arith.constant 0 : index
    %375 = vector.load %arg10[%374, %c0_92] : memref<128x32xbf16, #tpu.memory_space<vmem>>, vector<16x32xbf16>
    tpu.vector_store %arg10[%374, %c0_92], %371 {strides = array<i32>} : memref<128x32xbf16, #tpu.memory_space<vmem>>, vector<16x32xbf16>,
    %c7_i32_93 = arith.constant 7 : i32
    %376 = arith.subi %c7_i32_93, %c4_i32 : i32
    %c1_i32_94 = arith.constant 1 : i32
    %377 = arith.addi %376, %c1_i32_94 : i32
    %c7_i32_95 = arith.constant 7 : i32
    %378 = arith.minsi %377, %c7_i32_95 : i32
    %379 = arith.index_cast %378 : i32 to index
    %c0_96 = arith.constant 0 : index
    %c0_97 = arith.constant 0 : index
    %380 = vector.load %arg3[%379, %c0_96, %c0_97] : memref<8x16x1xf32, #tpu.memory_space<vmem>>, vector<1x16x1xf32>
    %381 = vector.shape_cast %380 : vector<1x16x1xf32> to vector<16x1xf32>
    %382 = arith.index_cast %376 : i32 to index
    %c0_98 = arith.constant 0 : index
    %c0_99 = arith.constant 0 : index
    %383 = vector.load %arg2[%382, %c0_98, %c0_99] : memref<8x16x128xbf16, #tpu.memory_space<vmem>>, vector<1x16x128xbf16>
    %384 = vector.shape_cast %383 : vector<1x16x128xbf16> to vector<16x128xbf16>
    %385 = vector.broadcast %381 : vector<16x1xf32> to vector<16x32xf32>
    %386 = arith.mulf %333, %385 : vector<16x32xf32>
    %387 = vector.broadcast %381 : vector<16x1xf32> to vector<16x32xf32>
    %388 = arith.mulf %331, %387 : vector<16x32xf32>
    %389 = arith.extf %384 : vector<16x128xbf16> to vector<16x128xf32>
    %390 = arith.truncf %386 : vector<16x32xf32> to vector<16x32xbf16>
    %cst_100 = arith.constant dense<0.000000e+00> : vector<16x128xf32>
    %391 = tpu.matmul %390, %1, %cst_100 {dimension_numbers = #tpu.dot_dimension_numbers<[1], [0], [0], [1], [0, 0, 1, 1], [], []>} : vector<16x32xbf16>, vector<32x128xbf16>, vector<16x128xf32> -> vector<16x128xf32>
    %392 = arith.addf %389, %391 : vector<16x128xf32>
    %393 = vector.extract_strided_slice %392 {offsets = [0, 0], sizes = [16, 32], strides = [1, 1]} : vector<16x128xf32> to vector<16x32xf32>
    %394 = arith.negf %393 : vector<16x32xf32>
    %395 = math.exp %394 : vector<16x32xf32>
    %cst_101 = arith.constant 1.000000e+00 : f32
    %396 = vector.broadcast %cst_101 : f32 to vector<16x32xf32>
    %397 = arith.addf %396, %395 : vector<16x32xf32>
    %398 = arith.divf %396, %397 : vector<16x32xf32>
    %399 = vector.extract_strided_slice %392 {offsets = [0, 32], sizes = [16, 32], strides = [1, 1]} : vector<16x128xf32> to vector<16x32xf32>
    %400 = arith.negf %399 : vector<16x32xf32>
    %401 = math.exp %400 : vector<16x32xf32>
    %cst_102 = arith.constant 1.000000e+00 : f32
    %402 = vector.broadcast %cst_102 : f32 to vector<16x32xf32>
    %403 = arith.addf %402, %401 : vector<16x32xf32>
    %404 = arith.divf %402, %403 : vector<16x32xf32>
    %405 = vector.extract_strided_slice %392 {offsets = [0, 64], sizes = [16, 32], strides = [1, 1]} : vector<16x128xf32> to vector<16x32xf32>
    %406 = math.tanh %405 : vector<16x32xf32>
    %407 = vector.extract_strided_slice %392 {offsets = [0, 96], sizes = [16, 32], strides = [1, 1]} : vector<16x128xf32> to vector<16x32xf32>
    %408 = arith.negf %407 : vector<16x32xf32>
    %409 = math.exp %408 : vector<16x32xf32>
    %cst_103 = arith.constant 1.000000e+00 : f32
    %410 = vector.broadcast %cst_103 : f32 to vector<16x32xf32>
    %411 = arith.addf %410, %409 : vector<16x32xf32>
    %412 = arith.divf %410, %411 : vector<16x32xf32>
    %413 = arith.mulf %404, %388 : vector<16x32xf32>
    %414 = arith.mulf %398, %406 : vector<16x32xf32>
    %415 = arith.addf %413, %414 : vector<16x32xf32>
    %416 = math.tanh %415 : vector<16x32xf32>
    %417 = arith.mulf %412, %416 : vector<16x32xf32>
    %418 = arith.truncf %417 : vector<16x32xf32> to vector<16x32xbf16>
    %c16_i32_104 = arith.constant 16 : i32
    %419 = arith.muli %376, %c16_i32_104 : i32
    %420 = tpu.assume_multiple %419, 16 : i32
    %421 = arith.index_cast %420 : i32 to index
    %c0_105 = arith.constant 0 : index
    %422 = vector.load %arg11[%421, %c0_105] : memref<128x32xbf16, #tpu.memory_space<vmem>>, vector<16x32xbf16>
    tpu.vector_store %arg11[%421, %c0_105], %418 {strides = array<i32>} : memref<128x32xbf16, #tpu.memory_space<vmem>>, vector<16x32xbf16>,
    %c5_i32 = arith.constant 5 : i32
    %423 = arith.index_cast %c5_i32 : i32 to index
    %c0_106 = arith.constant 0 : index
    %c0_107 = arith.constant 0 : index
    %424 = vector.load %arg1[%423, %c0_106, %c0_107] : memref<8x16x128xbf16, #tpu.memory_space<vmem>>, vector<1x16x128xbf16>
    %425 = vector.shape_cast %424 : vector<1x16x128xbf16> to vector<16x128xbf16>
    %426 = arith.extf %425 : vector<16x128xbf16> to vector<16x128xf32>
    %427 = arith.truncf %370 : vector<16x32xf32> to vector<16x32xbf16>
    %cst_108 = arith.constant dense<0.000000e+00> : vector<16x128xf32>
    %428 = tpu.matmul %427, %0, %cst_108 {dimension_numbers = #tpu.dot_dimension_numbers<[1], [0], [0], [1], [0, 0, 1, 1], [], []>} : vector<16x32xbf16>, vector<32x128xbf16>, vector<16x128xf32> -> vector<16x128xf32>
    %429 = arith.addf %426, %428 : vector<16x128xf32>
    %430 = vector.extract_strided_slice %429 {offsets = [0, 0], sizes = [16, 32], strides = [1, 1]} : vector<16x128xf32> to vector<16x32xf32>
    %431 = arith.negf %430 : vector<16x32xf32>
    %432 = math.exp %431 : vector<16x32xf32>
    %cst_109 = arith.constant 1.000000e+00 : f32
    %433 = vector.broadcast %cst_109 : f32 to vector<16x32xf32>
    %434 = arith.addf %433, %432 : vector<16x32xf32>
    %435 = arith.divf %433, %434 : vector<16x32xf32>
    %436 = vector.extract_strided_slice %429 {offsets = [0, 32], sizes = [16, 32], strides = [1, 1]} : vector<16x128xf32> to vector<16x32xf32>
    %437 = arith.negf %436 : vector<16x32xf32>
    %438 = math.exp %437 : vector<16x32xf32>
    %cst_110 = arith.constant 1.000000e+00 : f32
    %439 = vector.broadcast %cst_110 : f32 to vector<16x32xf32>
    %440 = arith.addf %439, %438 : vector<16x32xf32>
    %441 = arith.divf %439, %440 : vector<16x32xf32>
    %442 = vector.extract_strided_slice %429 {offsets = [0, 64], sizes = [16, 32], strides = [1, 1]} : vector<16x128xf32> to vector<16x32xf32>
    %443 = math.tanh %442 : vector<16x32xf32>
    %444 = vector.extract_strided_slice %429 {offsets = [0, 96], sizes = [16, 32], strides = [1, 1]} : vector<16x128xf32> to vector<16x32xf32>
    %445 = arith.negf %444 : vector<16x32xf32>
    %446 = math.exp %445 : vector<16x32xf32>
    %cst_111 = arith.constant 1.000000e+00 : f32
    %447 = vector.broadcast %cst_111 : f32 to vector<16x32xf32>
    %448 = arith.addf %447, %446 : vector<16x32xf32>
    %449 = arith.divf %447, %448 : vector<16x32xf32>
    %450 = arith.mulf %441, %368 : vector<16x32xf32>
    %451 = arith.mulf %435, %443 : vector<16x32xf32>
    %452 = arith.addf %450, %451 : vector<16x32xf32>
    %453 = math.tanh %452 : vector<16x32xf32>
    %454 = arith.mulf %449, %453 : vector<16x32xf32>
    %455 = arith.truncf %454 : vector<16x32xf32> to vector<16x32xbf16>
    %c16_i32_112 = arith.constant 16 : i32
    %456 = arith.muli %c5_i32, %c16_i32_112 : i32
    %457 = tpu.assume_multiple %456, 16 : i32
    %458 = arith.index_cast %457 : i32 to index
    %c0_113 = arith.constant 0 : index
    %459 = vector.load %arg10[%458, %c0_113] : memref<128x32xbf16, #tpu.memory_space<vmem>>, vector<16x32xbf16>
    tpu.vector_store %arg10[%458, %c0_113], %455 {strides = array<i32>} : memref<128x32xbf16, #tpu.memory_space<vmem>>, vector<16x32xbf16>,
    %c7_i32_114 = arith.constant 7 : i32
    %460 = arith.subi %c7_i32_114, %c5_i32 : i32
    %c1_i32_115 = arith.constant 1 : i32
    %461 = arith.addi %460, %c1_i32_115 : i32
    %c7_i32_116 = arith.constant 7 : i32
    %462 = arith.minsi %461, %c7_i32_116 : i32
    %463 = arith.index_cast %462 : i32 to index
    %c0_117 = arith.constant 0 : index
    %c0_118 = arith.constant 0 : index
    %464 = vector.load %arg3[%463, %c0_117, %c0_118] : memref<8x16x1xf32, #tpu.memory_space<vmem>>, vector<1x16x1xf32>
    %465 = vector.shape_cast %464 : vector<1x16x1xf32> to vector<16x1xf32>
    %466 = arith.index_cast %460 : i32 to index
    %c0_119 = arith.constant 0 : index
    %c0_120 = arith.constant 0 : index
    %467 = vector.load %arg2[%466, %c0_119, %c0_120] : memref<8x16x128xbf16, #tpu.memory_space<vmem>>, vector<1x16x128xbf16>
    %468 = vector.shape_cast %467 : vector<1x16x128xbf16> to vector<16x128xbf16>
    %469 = vector.broadcast %465 : vector<16x1xf32> to vector<16x32xf32>
    %470 = arith.mulf %417, %469 : vector<16x32xf32>
    %471 = vector.broadcast %465 : vector<16x1xf32> to vector<16x32xf32>
    %472 = arith.mulf %415, %471 : vector<16x32xf32>
    %473 = arith.extf %468 : vector<16x128xbf16> to vector<16x128xf32>
    %474 = arith.truncf %470 : vector<16x32xf32> to vector<16x32xbf16>
    %cst_121 = arith.constant dense<0.000000e+00> : vector<16x128xf32>
    %475 = tpu.matmul %474, %1, %cst_121 {dimension_numbers = #tpu.dot_dimension_numbers<[1], [0], [0], [1], [0, 0, 1, 1], [], []>} : vector<16x32xbf16>, vector<32x128xbf16>, vector<16x128xf32> -> vector<16x128xf32>
    %476 = arith.addf %473, %475 : vector<16x128xf32>
    %477 = vector.extract_strided_slice %476 {offsets = [0, 0], sizes = [16, 32], strides = [1, 1]} : vector<16x128xf32> to vector<16x32xf32>
    %478 = arith.negf %477 : vector<16x32xf32>
    %479 = math.exp %478 : vector<16x32xf32>
    %cst_122 = arith.constant 1.000000e+00 : f32
    %480 = vector.broadcast %cst_122 : f32 to vector<16x32xf32>
    %481 = arith.addf %480, %479 : vector<16x32xf32>
    %482 = arith.divf %480, %481 : vector<16x32xf32>
    %483 = vector.extract_strided_slice %476 {offsets = [0, 32], sizes = [16, 32], strides = [1, 1]} : vector<16x128xf32> to vector<16x32xf32>
    %484 = arith.negf %483 : vector<16x32xf32>
    %485 = math.exp %484 : vector<16x32xf32>
    %cst_123 = arith.constant 1.000000e+00 : f32
    %486 = vector.broadcast %cst_123 : f32 to vector<16x32xf32>
    %487 = arith.addf %486, %485 : vector<16x32xf32>
    %488 = arith.divf %486, %487 : vector<16x32xf32>
    %489 = vector.extract_strided_slice %476 {offsets = [0, 64], sizes = [16, 32], strides = [1, 1]} : vector<16x128xf32> to vector<16x32xf32>
    %490 = math.tanh %489 : vector<16x32xf32>
    %491 = vector.extract_strided_slice %476 {offsets = [0, 96], sizes = [16, 32], strides = [1, 1]} : vector<16x128xf32> to vector<16x32xf32>
    %492 = arith.negf %491 : vector<16x32xf32>
    %493 = math.exp %492 : vector<16x32xf32>
    %cst_124 = arith.constant 1.000000e+00 : f32
    %494 = vector.broadcast %cst_124 : f32 to vector<16x32xf32>
    %495 = arith.addf %494, %493 : vector<16x32xf32>
    %496 = arith.divf %494, %495 : vector<16x32xf32>
    %497 = arith.mulf %488, %472 : vector<16x32xf32>
    %498 = arith.mulf %482, %490 : vector<16x32xf32>
    %499 = arith.addf %497, %498 : vector<16x32xf32>
    %500 = math.tanh %499 : vector<16x32xf32>
    %501 = arith.mulf %496, %500 : vector<16x32xf32>
    %502 = arith.truncf %501 : vector<16x32xf32> to vector<16x32xbf16>
    %c16_i32_125 = arith.constant 16 : i32
    %503 = arith.muli %460, %c16_i32_125 : i32
    %504 = tpu.assume_multiple %503, 16 : i32
    %505 = arith.index_cast %504 : i32 to index
    %c0_126 = arith.constant 0 : index
    %506 = vector.load %arg11[%505, %c0_126] : memref<128x32xbf16, #tpu.memory_space<vmem>>, vector<16x32xbf16>
    tpu.vector_store %arg11[%505, %c0_126], %502 {strides = array<i32>} : memref<128x32xbf16, #tpu.memory_space<vmem>>, vector<16x32xbf16>,
    %c6_i32 = arith.constant 6 : i32
    %507 = arith.index_cast %c6_i32 : i32 to index
    %c0_127 = arith.constant 0 : index
    %c0_128 = arith.constant 0 : index
    %508 = vector.load %arg1[%507, %c0_127, %c0_128] : memref<8x16x128xbf16, #tpu.memory_space<vmem>>, vector<1x16x128xbf16>
    %509 = vector.shape_cast %508 : vector<1x16x128xbf16> to vector<16x128xbf16>
    %510 = arith.extf %509 : vector<16x128xbf16> to vector<16x128xf32>
    %511 = arith.truncf %454 : vector<16x32xf32> to vector<16x32xbf16>
    %cst_129 = arith.constant dense<0.000000e+00> : vector<16x128xf32>
    %512 = tpu.matmul %511, %0, %cst_129 {dimension_numbers = #tpu.dot_dimension_numbers<[1], [0], [0], [1], [0, 0, 1, 1], [], []>} : vector<16x32xbf16>, vector<32x128xbf16>, vector<16x128xf32> -> vector<16x128xf32>
    %513 = arith.addf %510, %512 : vector<16x128xf32>
    %514 = vector.extract_strided_slice %513 {offsets = [0, 0], sizes = [16, 32], strides = [1, 1]} : vector<16x128xf32> to vector<16x32xf32>
    %515 = arith.negf %514 : vector<16x32xf32>
    %516 = math.exp %515 : vector<16x32xf32>
    %cst_130 = arith.constant 1.000000e+00 : f32
    %517 = vector.broadcast %cst_130 : f32 to vector<16x32xf32>
    %518 = arith.addf %517, %516 : vector<16x32xf32>
    %519 = arith.divf %517, %518 : vector<16x32xf32>
    %520 = vector.extract_strided_slice %513 {offsets = [0, 32], sizes = [16, 32], strides = [1, 1]} : vector<16x128xf32> to vector<16x32xf32>
    %521 = arith.negf %520 : vector<16x32xf32>
    %522 = math.exp %521 : vector<16x32xf32>
    %cst_131 = arith.constant 1.000000e+00 : f32
    %523 = vector.broadcast %cst_131 : f32 to vector<16x32xf32>
    %524 = arith.addf %523, %522 : vector<16x32xf32>
    %525 = arith.divf %523, %524 : vector<16x32xf32>
    %526 = vector.extract_strided_slice %513 {offsets = [0, 64], sizes = [16, 32], strides = [1, 1]} : vector<16x128xf32> to vector<16x32xf32>
    %527 = math.tanh %526 : vector<16x32xf32>
    %528 = vector.extract_strided_slice %513 {offsets = [0, 96], sizes = [16, 32], strides = [1, 1]} : vector<16x128xf32> to vector<16x32xf32>
    %529 = arith.negf %528 : vector<16x32xf32>
    %530 = math.exp %529 : vector<16x32xf32>
    %cst_132 = arith.constant 1.000000e+00 : f32
    %531 = vector.broadcast %cst_132 : f32 to vector<16x32xf32>
    %532 = arith.addf %531, %530 : vector<16x32xf32>
    %533 = arith.divf %531, %532 : vector<16x32xf32>
    %534 = arith.mulf %525, %452 : vector<16x32xf32>
    %535 = arith.mulf %519, %527 : vector<16x32xf32>
    %536 = arith.addf %534, %535 : vector<16x32xf32>
    %537 = math.tanh %536 : vector<16x32xf32>
    %538 = arith.mulf %533, %537 : vector<16x32xf32>
    %539 = arith.truncf %538 : vector<16x32xf32> to vector<16x32xbf16>
    %c16_i32_133 = arith.constant 16 : i32
    %540 = arith.muli %c6_i32, %c16_i32_133 : i32
    %541 = tpu.assume_multiple %540, 16 : i32
    %542 = arith.index_cast %541 : i32 to index
    %c0_134 = arith.constant 0 : index
    %543 = vector.load %arg10[%542, %c0_134] : memref<128x32xbf16, #tpu.memory_space<vmem>>, vector<16x32xbf16>
    tpu.vector_store %arg10[%542, %c0_134], %539 {strides = array<i32>} : memref<128x32xbf16, #tpu.memory_space<vmem>>, vector<16x32xbf16>,
    %c7_i32_135 = arith.constant 7 : i32
    %544 = arith.subi %c7_i32_135, %c6_i32 : i32
    %c1_i32_136 = arith.constant 1 : i32
    %545 = arith.addi %544, %c1_i32_136 : i32
    %c7_i32_137 = arith.constant 7 : i32
    %546 = arith.minsi %545, %c7_i32_137 : i32
    %547 = arith.index_cast %546 : i32 to index
    %c0_138 = arith.constant 0 : index
    %c0_139 = arith.constant 0 : index
    %548 = vector.load %arg3[%547, %c0_138, %c0_139] : memref<8x16x1xf32, #tpu.memory_space<vmem>>, vector<1x16x1xf32>
    %549 = vector.shape_cast %548 : vector<1x16x1xf32> to vector<16x1xf32>
    %550 = arith.index_cast %544 : i32 to index
    %c0_140 = arith.constant 0 : index
    %c0_141 = arith.constant 0 : index
    %551 = vector.load %arg2[%550, %c0_140, %c0_141] : memref<8x16x128xbf16, #tpu.memory_space<vmem>>, vector<1x16x128xbf16>
    %552 = vector.shape_cast %551 : vector<1x16x128xbf16> to vector<16x128xbf16>
    %553 = vector.broadcast %549 : vector<16x1xf32> to vector<16x32xf32>
    %554 = arith.mulf %501, %553 : vector<16x32xf32>
    %555 = vector.broadcast %549 : vector<16x1xf32> to vector<16x32xf32>
    %556 = arith.mulf %499, %555 : vector<16x32xf32>
    %557 = arith.extf %552 : vector<16x128xbf16> to vector<16x128xf32>
    %558 = arith.truncf %554 : vector<16x32xf32> to vector<16x32xbf16>
    %cst_142 = arith.constant dense<0.000000e+00> : vector<16x128xf32>
    %559 = tpu.matmul %558, %1, %cst_142 {dimension_numbers = #tpu.dot_dimension_numbers<[1], [0], [0], [1], [0, 0, 1, 1], [], []>} : vector<16x32xbf16>, vector<32x128xbf16>, vector<16x128xf32> -> vector<16x128xf32>
    %560 = arith.addf %557, %559 : vector<16x128xf32>
    %561 = vector.extract_strided_slice %560 {offsets = [0, 0], sizes = [16, 32], strides = [1, 1]} : vector<16x128xf32> to vector<16x32xf32>
    %562 = arith.negf %561 : vector<16x32xf32>
    %563 = math.exp %562 : vector<16x32xf32>
    %cst_143 = arith.constant 1.000000e+00 : f32
    %564 = vector.broadcast %cst_143 : f32 to vector<16x32xf32>
    %565 = arith.addf %564, %563 : vector<16x32xf32>
    %566 = arith.divf %564, %565 : vector<16x32xf32>
    %567 = vector.extract_strided_slice %560 {offsets = [0, 32], sizes = [16, 32], strides = [1, 1]} : vector<16x128xf32> to vector<16x32xf32>
    %568 = arith.negf %567 : vector<16x32xf32>
    %569 = math.exp %568 : vector<16x32xf32>
    %cst_144 = arith.constant 1.000000e+00 : f32
    %570 = vector.broadcast %cst_144 : f32 to vector<16x32xf32>
    %571 = arith.addf %570, %569 : vector<16x32xf32>
    %572 = arith.divf %570, %571 : vector<16x32xf32>
    %573 = vector.extract_strided_slice %560 {offsets = [0, 64], sizes = [16, 32], strides = [1, 1]} : vector<16x128xf32> to vector<16x32xf32>
    %574 = math.tanh %573 : vector<16x32xf32>
    %575 = vector.extract_strided_slice %560 {offsets = [0, 96], sizes = [16, 32], strides = [1, 1]} : vector<16x128xf32> to vector<16x32xf32>
    %576 = arith.negf %575 : vector<16x32xf32>
    %577 = math.exp %576 : vector<16x32xf32>
    %cst_145 = arith.constant 1.000000e+00 : f32
    %578 = vector.broadcast %cst_145 : f32 to vector<16x32xf32>
    %579 = arith.addf %578, %577 : vector<16x32xf32>
    %580 = arith.divf %578, %579 : vector<16x32xf32>
    %581 = arith.mulf %572, %556 : vector<16x32xf32>
    %582 = arith.mulf %566, %574 : vector<16x32xf32>
    %583 = arith.addf %581, %582 : vector<16x32xf32>
    %584 = math.tanh %583 : vector<16x32xf32>
    %585 = arith.mulf %580, %584 : vector<16x32xf32>
    %586 = arith.truncf %585 : vector<16x32xf32> to vector<16x32xbf16>
    %c16_i32_146 = arith.constant 16 : i32
    %587 = arith.muli %544, %c16_i32_146 : i32
    %588 = tpu.assume_multiple %587, 16 : i32
    %589 = arith.index_cast %588 : i32 to index
    %c0_147 = arith.constant 0 : index
    %590 = vector.load %arg11[%589, %c0_147] : memref<128x32xbf16, #tpu.memory_space<vmem>>, vector<16x32xbf16>
    tpu.vector_store %arg11[%589, %c0_147], %586 {strides = array<i32>} : memref<128x32xbf16, #tpu.memory_space<vmem>>, vector<16x32xbf16>,
    %c7_i32_148 = arith.constant 7 : i32
    %591 = arith.index_cast %c7_i32_148 : i32 to index
    %c0_149 = arith.constant 0 : index
    %c0_150 = arith.constant 0 : index
    %592 = vector.load %arg1[%591, %c0_149, %c0_150] : memref<8x16x128xbf16, #tpu.memory_space<vmem>>, vector<1x16x128xbf16>
    %593 = vector.shape_cast %592 : vector<1x16x128xbf16> to vector<16x128xbf16>
    %594 = arith.extf %593 : vector<16x128xbf16> to vector<16x128xf32>
    %595 = arith.truncf %538 : vector<16x32xf32> to vector<16x32xbf16>
    %cst_151 = arith.constant dense<0.000000e+00> : vector<16x128xf32>
    %596 = tpu.matmul %595, %0, %cst_151 {dimension_numbers = #tpu.dot_dimension_numbers<[1], [0], [0], [1], [0, 0, 1, 1], [], []>} : vector<16x32xbf16>, vector<32x128xbf16>, vector<16x128xf32> -> vector<16x128xf32>
    %597 = arith.addf %594, %596 : vector<16x128xf32>
    %598 = vector.extract_strided_slice %597 {offsets = [0, 0], sizes = [16, 32], strides = [1, 1]} : vector<16x128xf32> to vector<16x32xf32>
    %599 = arith.negf %598 : vector<16x32xf32>
    %600 = math.exp %599 : vector<16x32xf32>
    %cst_152 = arith.constant 1.000000e+00 : f32
    %601 = vector.broadcast %cst_152 : f32 to vector<16x32xf32>
    %602 = arith.addf %601, %600 : vector<16x32xf32>
    %603 = arith.divf %601, %602 : vector<16x32xf32>
    %604 = vector.extract_strided_slice %597 {offsets = [0, 32], sizes = [16, 32], strides = [1, 1]} : vector<16x128xf32> to vector<16x32xf32>
    %605 = arith.negf %604 : vector<16x32xf32>
    %606 = math.exp %605 : vector<16x32xf32>
    %cst_153 = arith.constant 1.000000e+00 : f32
    %607 = vector.broadcast %cst_153 : f32 to vector<16x32xf32>
    %608 = arith.addf %607, %606 : vector<16x32xf32>
    %609 = arith.divf %607, %608 : vector<16x32xf32>
    %610 = vector.extract_strided_slice %597 {offsets = [0, 64], sizes = [16, 32], strides = [1, 1]} : vector<16x128xf32> to vector<16x32xf32>
    %611 = math.tanh %610 : vector<16x32xf32>
    %612 = vector.extract_strided_slice %597 {offsets = [0, 96], sizes = [16, 32], strides = [1, 1]} : vector<16x128xf32> to vector<16x32xf32>
    %613 = arith.negf %612 : vector<16x32xf32>
    %614 = math.exp %613 : vector<16x32xf32>
    %cst_154 = arith.constant 1.000000e+00 : f32
    %615 = vector.broadcast %cst_154 : f32 to vector<16x32xf32>
    %616 = arith.addf %615, %614 : vector<16x32xf32>
    %617 = arith.divf %615, %616 : vector<16x32xf32>
    %618 = arith.mulf %609, %536 : vector<16x32xf32>
    %619 = arith.mulf %603, %611 : vector<16x32xf32>
    %620 = arith.addf %618, %619 : vector<16x32xf32>
    %621 = math.tanh %620 : vector<16x32xf32>
    %622 = arith.mulf %617, %621 : vector<16x32xf32>
    %623 = arith.truncf %622 : vector<16x32xf32> to vector<16x32xbf16>
    %c16_i32_155 = arith.constant 16 : i32
    %624 = arith.muli %c7_i32_148, %c16_i32_155 : i32
    %625 = tpu.assume_multiple %624, 16 : i32
    %626 = arith.index_cast %625 : i32 to index
    %c0_156 = arith.constant 0 : index
    %627 = vector.load %arg10[%626, %c0_156] : memref<128x32xbf16, #tpu.memory_space<vmem>>, vector<16x32xbf16>
    tpu.vector_store %arg10[%626, %c0_156], %623 {strides = array<i32>} : memref<128x32xbf16, #tpu.memory_space<vmem>>, vector<16x32xbf16>,
    %c7_i32_157 = arith.constant 7 : i32
    %628 = arith.subi %c7_i32_157, %c7_i32_148 : i32
    %c1_i32_158 = arith.constant 1 : i32
    %629 = arith.addi %628, %c1_i32_158 : i32
    %c7_i32_159 = arith.constant 7 : i32
    %630 = arith.minsi %629, %c7_i32_159 : i32
    %631 = arith.index_cast %630 : i32 to index
    %c0_160 = arith.constant 0 : index
    %c0_161 = arith.constant 0 : index
    %632 = vector.load %arg3[%631, %c0_160, %c0_161] : memref<8x16x1xf32, #tpu.memory_space<vmem>>, vector<1x16x1xf32>
    %633 = vector.shape_cast %632 : vector<1x16x1xf32> to vector<16x1xf32>
    %634 = arith.index_cast %628 : i32 to index
    %c0_162 = arith.constant 0 : index
    %c0_163 = arith.constant 0 : index
    %635 = vector.load %arg2[%634, %c0_162, %c0_163] : memref<8x16x128xbf16, #tpu.memory_space<vmem>>, vector<1x16x128xbf16>
    %636 = vector.shape_cast %635 : vector<1x16x128xbf16> to vector<16x128xbf16>
    %637 = vector.broadcast %633 : vector<16x1xf32> to vector<16x32xf32>
    %638 = arith.mulf %585, %637 : vector<16x32xf32>
    %639 = vector.broadcast %633 : vector<16x1xf32> to vector<16x32xf32>
    %640 = arith.mulf %583, %639 : vector<16x32xf32>
    %641 = arith.extf %636 : vector<16x128xbf16> to vector<16x128xf32>
    %642 = arith.truncf %638 : vector<16x32xf32> to vector<16x32xbf16>
    %cst_164 = arith.constant dense<0.000000e+00> : vector<16x128xf32>
    %643 = tpu.matmul %642, %1, %cst_164 {dimension_numbers = #tpu.dot_dimension_numbers<[1], [0], [0], [1], [0, 0, 1, 1], [], []>} : vector<16x32xbf16>, vector<32x128xbf16>, vector<16x128xf32> -> vector<16x128xf32>
    %644 = arith.addf %641, %643 : vector<16x128xf32>
    %645 = vector.extract_strided_slice %644 {offsets = [0, 0], sizes = [16, 32], strides = [1, 1]} : vector<16x128xf32> to vector<16x32xf32>
    %646 = arith.negf %645 : vector<16x32xf32>
    %647 = math.exp %646 : vector<16x32xf32>
    %cst_165 = arith.constant 1.000000e+00 : f32
    %648 = vector.broadcast %cst_165 : f32 to vector<16x32xf32>
    %649 = arith.addf %648, %647 : vector<16x32xf32>
    %650 = arith.divf %648, %649 : vector<16x32xf32>
    %651 = vector.extract_strided_slice %644 {offsets = [0, 32], sizes = [16, 32], strides = [1, 1]} : vector<16x128xf32> to vector<16x32xf32>
    %652 = arith.negf %651 : vector<16x32xf32>
    %653 = math.exp %652 : vector<16x32xf32>
    %cst_166 = arith.constant 1.000000e+00 : f32
    %654 = vector.broadcast %cst_166 : f32 to vector<16x32xf32>
    %655 = arith.addf %654, %653 : vector<16x32xf32>
    %656 = arith.divf %654, %655 : vector<16x32xf32>
    %657 = vector.extract_strided_slice %644 {offsets = [0, 64], sizes = [16, 32], strides = [1, 1]} : vector<16x128xf32> to vector<16x32xf32>
    %658 = math.tanh %657 : vector<16x32xf32>
    %659 = vector.extract_strided_slice %644 {offsets = [0, 96], sizes = [16, 32], strides = [1, 1]} : vector<16x128xf32> to vector<16x32xf32>
    %660 = arith.negf %659 : vector<16x32xf32>
    %661 = math.exp %660 : vector<16x32xf32>
    %cst_167 = arith.constant 1.000000e+00 : f32
    %662 = vector.broadcast %cst_167 : f32 to vector<16x32xf32>
    %663 = arith.addf %662, %661 : vector<16x32xf32>
    %664 = arith.divf %662, %663 : vector<16x32xf32>
    %665 = arith.mulf %656, %640 : vector<16x32xf32>
    %666 = arith.mulf %650, %658 : vector<16x32xf32>
    %667 = arith.addf %665, %666 : vector<16x32xf32>
    %668 = math.tanh %667 : vector<16x32xf32>
    %669 = arith.mulf %664, %668 : vector<16x32xf32>
    %670 = arith.truncf %669 : vector<16x32xf32> to vector<16x32xbf16>
    %c16_i32_168 = arith.constant 16 : i32
    %671 = arith.muli %628, %c16_i32_168 : i32
    %672 = tpu.assume_multiple %671, 16 : i32
    %673 = arith.index_cast %672 : i32 to index
    %c0_169 = arith.constant 0 : index
    %674 = vector.load %arg11[%673, %c0_169] : memref<128x32xbf16, #tpu.memory_space<vmem>>, vector<16x32xbf16>
    tpu.vector_store %arg11[%673, %c0_169], %670 {strides = array<i32>} : memref<128x32xbf16, #tpu.memory_space<vmem>>, vector<16x32xbf16>,
    %c8_i32 = arith.constant 8 : i32
    %c0_170 = arith.constant 0 : index
    %c0_171 = arith.constant 0 : index
    %675 = vector.load %arg6[%c0_170, %c0_171] : memref<32x128xbf16, #tpu.memory_space<vmem>>, vector<32x128xbf16>
    %c0_172 = arith.constant 0 : index
    %c0_173 = arith.constant 0 : index
    %676 = vector.load %arg7[%c0_172, %c0_173] : memref<32x128xbf16, #tpu.memory_space<vmem>>, vector<32x128xbf16>
    %cst_174 = arith.constant -1.000000e+07 : f32
    %677 = vector.broadcast %cst_174 : f32 to vector<16x128xf32>
    %c0_175 = arith.constant 0 : index
    %c0_176 = arith.constant 0 : index
    %678 = vector.load %arg9[%c0_175, %c0_176] : memref<16x128xf32, #tpu.memory_space<vmem>>, vector<16x128xf32>
    tpu.vector_store %arg9[%c0_175, %c0_176], %677 {strides = array<i32>} : memref<16x128xf32, #tpu.memory_space<vmem>>, vector<16x128xf32>,
    %c0_177 = arith.constant 0 : index
    %c0_178 = arith.constant 0 : index
    %679 = vector.load %arg10[%c0_177, %c0_178] : memref<128x32xbf16, #tpu.memory_space<vmem>>, vector<128x32xbf16>
    %cst_179 = arith.constant dense<0.000000e+00> : vector<128x128xf32>
    %680 = tpu.matmul %679, %675, %cst_179 {dimension_numbers = #tpu.dot_dimension_numbers<[1], [0], [0], [1], [0, 0, 1, 1], [], []>} : vector<128x32xbf16>, vector<32x128xbf16>, vector<128x128xf32> -> vector<128x128xf32>
    %c0_180 = arith.constant 0 : index
    %c0_181 = arith.constant 0 : index
    %681 = vector.load %arg11[%c0_180, %c0_181] : memref<128x32xbf16, #tpu.memory_space<vmem>>, vector<128x32xbf16>
    %cst_182 = arith.constant dense<0.000000e+00> : vector<128x128xf32>
    %682 = tpu.matmul %681, %676, %cst_182 {dimension_numbers = #tpu.dot_dimension_numbers<[1], [0], [0], [1], [0, 0, 1, 1], [], []>} : vector<128x32xbf16>, vector<32x128xbf16>, vector<128x128xf32> -> vector<128x128xf32>
    %683 = arith.addf %680, %682 : vector<128x128xf32>
    %c0_183 = arith.constant 0 : index
    %c0_184 = arith.constant 0 : index
    %c0_185 = arith.constant 0 : index
    %684 = vector.load %arg3[%c0_183, %c0_184, %c0_185] : memref<8x16x1xf32, #tpu.memory_space<vmem>>, vector<8x16x1xf32>
    %685 = vector.extract_strided_slice %684 {offsets = [0, 0, 0], sizes = [1, 16, 1], strides = [1, 1, 1]} : vector<8x16x1xf32> to vector<1x16x1xf32>
    %686 = vector.shape_cast %685 : vector<1x16x1xf32> to vector<16x1xf32>
    %cst_186 = arith.constant 0.000000e+00 : f32
    %687 = vector.broadcast %cst_186 : f32 to vector<16x1xf32>
    %688 = arith.cmpf ogt, %686, %687 : vector<16x1xf32>
    %689 = vector.extract_strided_slice %683 {offsets = [0, 0], sizes = [16, 128], strides = [1, 1]} : vector<128x128xf32> to vector<16x128xf32>
    %cst_187 = arith.constant -1.000000e+07 : f32
    %690 = vector.shape_cast %688 : vector<16x1xi1> to vector<16x1xi1>
    %691 = vector.broadcast %690 : vector<16x1xi1> to vector<16x128xi1>
    %692 = vector.broadcast %cst_187 : f32 to vector<16x128xf32>
    %693 = arith.select %691, %689, %692 : vector<16x128xi1>, vector<16x128xf32>
    %694 = vector.extract_strided_slice %684 {offsets = [1, 0, 0], sizes = [1, 16, 1], strides = [1, 1, 1]} : vector<8x16x1xf32> to vector<1x16x1xf32>
    %695 = vector.shape_cast %694 : vector<1x16x1xf32> to vector<16x1xf32>
    %cst_188 = arith.constant 0.000000e+00 : f32
    %696 = vector.broadcast %cst_188 : f32 to vector<16x1xf32>
    %697 = arith.cmpf ogt, %695, %696 : vector<16x1xf32>
    %698 = vector.extract_strided_slice %683 {offsets = [16, 0], sizes = [16, 128], strides = [1, 1]} : vector<128x128xf32> to vector<16x128xf32>
    %cst_189 = arith.constant -1.000000e+07 : f32
    %699 = vector.shape_cast %697 : vector<16x1xi1> to vector<16x1xi1>
    %700 = vector.broadcast %699 : vector<16x1xi1> to vector<16x128xi1>
    %701 = vector.broadcast %cst_189 : f32 to vector<16x128xf32>
    %702 = arith.select %700, %698, %701 : vector<16x128xi1>, vector<16x128xf32>
    %703 = arith.maximumf %693, %702 : vector<16x128xf32>
    %704 = vector.extract_strided_slice %684 {offsets = [2, 0, 0], sizes = [1, 16, 1], strides = [1, 1, 1]} : vector<8x16x1xf32> to vector<1x16x1xf32>
    %705 = vector.shape_cast %704 : vector<1x16x1xf32> to vector<16x1xf32>
    %cst_190 = arith.constant 0.000000e+00 : f32
    %706 = vector.broadcast %cst_190 : f32 to vector<16x1xf32>
    %707 = arith.cmpf ogt, %705, %706 : vector<16x1xf32>
    %708 = vector.extract_strided_slice %683 {offsets = [32, 0], sizes = [16, 128], strides = [1, 1]} : vector<128x128xf32> to vector<16x128xf32>
    %cst_191 = arith.constant -1.000000e+07 : f32
    %709 = vector.shape_cast %707 : vector<16x1xi1> to vector<16x1xi1>
    %710 = vector.broadcast %709 : vector<16x1xi1> to vector<16x128xi1>
    %711 = vector.broadcast %cst_191 : f32 to vector<16x128xf32>
    %712 = arith.select %710, %708, %711 : vector<16x128xi1>, vector<16x128xf32>
    %713 = arith.maximumf %703, %712 : vector<16x128xf32>
    %714 = vector.extract_strided_slice %684 {offsets = [3, 0, 0], sizes = [1, 16, 1], strides = [1, 1, 1]} : vector<8x16x1xf32> to vector<1x16x1xf32>
    %715 = vector.shape_cast %714 : vector<1x16x1xf32> to vector<16x1xf32>
    %cst_192 = arith.constant 0.000000e+00 : f32
    %716 = vector.broadcast %cst_192 : f32 to vector<16x1xf32>
    %717 = arith.cmpf ogt, %715, %716 : vector<16x1xf32>
    %718 = vector.extract_strided_slice %683 {offsets = [48, 0], sizes = [16, 128], strides = [1, 1]} : vector<128x128xf32> to vector<16x128xf32>
    %cst_193 = arith.constant -1.000000e+07 : f32
    %719 = vector.shape_cast %717 : vector<16x1xi1> to vector<16x1xi1>
    %720 = vector.broadcast %719 : vector<16x1xi1> to vector<16x128xi1>
    %721 = vector.broadcast %cst_193 : f32 to vector<16x128xf32>
    %722 = arith.select %720, %718, %721 : vector<16x128xi1>, vector<16x128xf32>
    %723 = arith.maximumf %713, %722 : vector<16x128xf32>
    %724 = vector.extract_strided_slice %684 {offsets = [4, 0, 0], sizes = [1, 16, 1], strides = [1, 1, 1]} : vector<8x16x1xf32> to vector<1x16x1xf32>
    %725 = vector.shape_cast %724 : vector<1x16x1xf32> to vector<16x1xf32>
    %cst_194 = arith.constant 0.000000e+00 : f32
    %726 = vector.broadcast %cst_194 : f32 to vector<16x1xf32>
    %727 = arith.cmpf ogt, %725, %726 : vector<16x1xf32>
    %728 = vector.extract_strided_slice %683 {offsets = [64, 0], sizes = [16, 128], strides = [1, 1]} : vector<128x128xf32> to vector<16x128xf32>
    %cst_195 = arith.constant -1.000000e+07 : f32
    %729 = vector.shape_cast %727 : vector<16x1xi1> to vector<16x1xi1>
    %730 = vector.broadcast %729 : vector<16x1xi1> to vector<16x128xi1>
    %731 = vector.broadcast %cst_195 : f32 to vector<16x128xf32>
    %732 = arith.select %730, %728, %731 : vector<16x128xi1>, vector<16x128xf32>
    %733 = arith.maximumf %723, %732 : vector<16x128xf32>
    %734 = vector.extract_strided_slice %684 {offsets = [5, 0, 0], sizes = [1, 16, 1], strides = [1, 1, 1]} : vector<8x16x1xf32> to vector<1x16x1xf32>
    %735 = vector.shape_cast %734 : vector<1x16x1xf32> to vector<16x1xf32>
    %cst_196 = arith.constant 0.000000e+00 : f32
    %736 = vector.broadcast %cst_196 : f32 to vector<16x1xf32>
    %737 = arith.cmpf ogt, %735, %736 : vector<16x1xf32>
    %738 = vector.extract_strided_slice %683 {offsets = [80, 0], sizes = [16, 128], strides = [1, 1]} : vector<128x128xf32> to vector<16x128xf32>
    %cst_197 = arith.constant -1.000000e+07 : f32
    %739 = vector.shape_cast %737 : vector<16x1xi1> to vector<16x1xi1>
    %740 = vector.broadcast %739 : vector<16x1xi1> to vector<16x128xi1>
    %741 = vector.broadcast %cst_197 : f32 to vector<16x128xf32>
    %742 = arith.select %740, %738, %741 : vector<16x128xi1>, vector<16x128xf32>
    %743 = arith.maximumf %733, %742 : vector<16x128xf32>
    %744 = vector.extract_strided_slice %684 {offsets = [6, 0, 0], sizes = [1, 16, 1], strides = [1, 1, 1]} : vector<8x16x1xf32> to vector<1x16x1xf32>
    %745 = vector.shape_cast %744 : vector<1x16x1xf32> to vector<16x1xf32>
    %cst_198 = arith.constant 0.000000e+00 : f32
    %746 = vector.broadcast %cst_198 : f32 to vector<16x1xf32>
    %747 = arith.cmpf ogt, %745, %746 : vector<16x1xf32>
    %748 = vector.extract_strided_slice %683 {offsets = [96, 0], sizes = [16, 128], strides = [1, 1]} : vector<128x128xf32> to vector<16x128xf32>
    %cst_199 = arith.constant -1.000000e+07 : f32
    %749 = vector.shape_cast %747 : vector<16x1xi1> to vector<16x1xi1>
    %750 = vector.broadcast %749 : vector<16x1xi1> to vector<16x128xi1>
    %751 = vector.broadcast %cst_199 : f32 to vector<16x128xf32>
    %752 = arith.select %750, %748, %751 : vector<16x128xi1>, vector<16x128xf32>
    %753 = arith.maximumf %743, %752 : vector<16x128xf32>
    %754 = vector.extract_strided_slice %684 {offsets = [7, 0, 0], sizes = [1, 16, 1], strides = [1, 1, 1]} : vector<8x16x1xf32> to vector<1x16x1xf32>
    %755 = vector.shape_cast %754 : vector<1x16x1xf32> to vector<16x1xf32>
    %cst_200 = arith.constant 0.000000e+00 : f32
    %756 = vector.broadcast %cst_200 : f32 to vector<16x1xf32>
    %757 = arith.cmpf ogt, %755, %756 : vector<16x1xf32>
    %758 = vector.extract_strided_slice %683 {offsets = [112, 0], sizes = [16, 128], strides = [1, 1]} : vector<128x128xf32> to vector<16x128xf32>
    %cst_201 = arith.constant -1.000000e+07 : f32
    %759 = vector.shape_cast %757 : vector<16x1xi1> to vector<16x1xi1>
    %760 = vector.broadcast %759 : vector<16x1xi1> to vector<16x128xi1>
    %761 = vector.broadcast %cst_201 : f32 to vector<16x128xf32>
    %762 = arith.select %760, %758, %761 : vector<16x128xi1>, vector<16x128xf32>
    %763 = arith.maximumf %753, %762 : vector<16x128xf32>
    %c0_202 = arith.constant 0 : index
    %c0_203 = arith.constant 0 : index
    %764 = vector.load %arg9[%c0_202, %c0_203] : memref<16x128xf32, #tpu.memory_space<vmem>>, vector<16x128xf32>
    %765 = arith.maximumf %764, %763 : vector<16x128xf32>
    %c0_204 = arith.constant 0 : index
    %c0_205 = arith.constant 0 : index
    %766 = vector.load %arg9[%c0_204, %c0_205] : memref<16x128xf32, #tpu.memory_space<vmem>>, vector<16x128xf32>
    tpu.vector_store %arg9[%c0_204, %c0_205], %765 {strides = array<i32>} : memref<16x128xf32, #tpu.memory_space<vmem>>, vector<16x128xf32>,
    %c0_206 = arith.constant 0 : index
    %c0_207 = arith.constant 0 : index
    %767 = vector.load %arg9[%c0_206, %c0_207] : memref<16x128xf32, #tpu.memory_space<vmem>>, vector<16x128xf32>
    %c0_208 = arith.constant 0 : index
    %c0_209 = arith.constant 0 : index
    %768 = vector.load %arg8[%c0_208, %c0_209] : memref<1x128xf32, #tpu.memory_space<vmem>>, vector<1x128xf32>
    %769 = vector.broadcast %768 : vector<1x128xf32> to vector<16x128xf32>
    %770 = arith.addf %767, %769 : vector<16x128xf32>
    %c0_210 = arith.constant 0 : index
    %c0_211 = arith.constant 0 : index
    %771 = vector.load %arg9[%c0_210, %c0_211] : memref<16x128xf32, #tpu.memory_space<vmem>>, vector<16x128xf32>
    tpu.vector_store %arg9[%c0_210, %c0_211], %770 {strides = array<i32>} : memref<16x128xf32, #tpu.memory_space<vmem>>, vector<16x128xf32>,
    return
  }
  func.func @transform_0(%arg0: i32) -> (i32, i32, i32) {
    %c0_i32 = arith.constant 0 : i32
    %c0_i32_0 = arith.constant 0 : i32
    %c0_i32_1 = arith.constant 0 : i32
    return %c0_i32, %arg0, %c0_i32_0 : i32, i32, i32
  }
  func.func @transform_1(%arg0: i32) -> (i32, i32, i32) {
    %c0_i32 = arith.constant 0 : i32
    %c0_i32_0 = arith.constant 0 : i32
    %c0_i32_1 = arith.constant 0 : i32
    return %c0_i32, %arg0, %c0_i32_0 : i32, i32, i32
  }
  func.func @transform_2(%arg0: i32) -> (i32, i32, i32) {
    %c0_i32 = arith.constant 0 : i32
    %c0_i32_0 = arith.constant 0 : i32
    %c0_i32_1 = arith.constant 0 : i32
    return %c0_i32, %arg0, %c0_i32_0 : i32, i32, i32
  }
  func.func @transform_3(%arg0: i32) -> (i32, i32) {
    %c0_i32 = arith.constant 0 : i32
    %c0_i32_0 = arith.constant 0 : i32
    %c0_i32_1 = arith.constant 0 : i32
    return %c0_i32, %c0_i32_0 : i32, i32
  }
  func.func @transform_4(%arg0: i32) -> (i32, i32) {
    %c0_i32 = arith.constant 0 : i32
    %c0_i32_0 = arith.constant 0 : i32
    %c0_i32_1 = arith.constant 0 : i32
    return %c0_i32, %c0_i32_0 : i32, i32
  }
  func.func @transform_5(%arg0: i32) -> (i32, i32) {
    %c0_i32 = arith.constant 0 : i32
    %c0_i32_0 = arith.constant 0 : i32
    %c0_i32_1 = arith.constant 0 : i32
    return %c0_i32, %c0_i32_0 : i32, i32
  }
  func.func @transform_6(%arg0: i32) -> (i32, i32) {
    %c0_i32 = arith.constant 0 : i32
    %c0_i32_0 = arith.constant 0 : i32
    %c0_i32_1 = arith.constant 0 : i32
    return %c0_i32, %c0_i32_0 : i32, i32
  }
  func.func @transform_7(%arg0: i32) -> (i32, i32) {
    %c0_i32 = arith.constant 0 : i32
    %c0_i32_0 = arith.constant 0 : i32
    %c0_i32_1 = arith.constant 0 : i32
    return %c0_i32, %c0_i32_0 : i32, i32
  }
  func.func @transform_8(%arg0: i32) -> (i32, i32) {
    %c0_i32 = arith.constant 0 : i32
    %c0_i32_0 = arith.constant 0 : i32
    return %arg0, %c0_i32 : i32, i32
  }
}

</mosaic_0001>

<llo_original>
// kernel: splstm_forward.1
$region0: #{splstm_forward.1}
  #allocation0 [shape = 'u32[]', space=smem, size = 0x4, offset = 0x4, fixed_abs, tag = 'smem constant byte address 0x4 - core index']
  #allocation1 [shape = 'u32[144,128]{1,0:T(1,128)}', space=vmem, size = 0x12000, scoped, tag = 'internal scratch']
  #allocation2 [shape = 'bf16[128,32]{1,0:T(16,128)(2,1)}', space=vmem, size = 0x8000, scoped, tag = 'scratch operand']
  #allocation3 [shape = 'bf16[128,32]{1,0:T(16,128)(2,1)}', space=vmem, size = 0x8000, scoped, tag = 'scratch operand']
  %s0 = inlined_call_operand.hbm [shape: bf16[8,16,128], index: 0, kind: input, shape index: {}]
  %s1 = inlined_call_operand.hbm [shape: bf16[8,16,128], index: 1, kind: input, shape index: {}]
  %s2 = inlined_call_operand.hbm [shape: f32[8,16,1], index: 2, kind: input, shape index: {}]
  %s3 = inlined_call_operand.hbm [shape: bf16[32,128], index: 3, kind: input, shape index: {}]
  %s4 = inlined_call_operand.hbm [shape: bf16[32,128], index: 4, kind: input, shape index: {}]
  %s5 = inlined_call_operand.hbm [shape: bf16[32,128], index: 5, kind: input, shape index: {}]
  %s6 = inlined_call_operand.hbm [shape: bf16[32,128], index: 6, kind: input, shape index: {}]
  %s7 = inlined_call_operand.hbm [shape: f32[1,128], index: 7, kind: input, shape index: {}]
  %s8 = inlined_call_operand.hbm [shape: f32[16,128], index: 8, kind: output, shape index: {}]
  %s9 = sld [smem:[#allocation0]]
  $region74: #{splstm_forward.1} parent=0
    _
  %s11 = ssub.s32 1, %s9
  %s12 = scalar_select 0, %s11, %s9
  $region1: #{splstm_forward.1} parent=0
    #allocation4 [shape = 'u8[32768]{0}', space=vmem, size = 0x8000, scoped, tag = 'input window, operand 0, single buffered']
    #allocation5 [shape = 's32[1]{0}', space=sflag, size = 0x4, scoped, tag = 'scoped memory for splstm_forward.1']
    #allocation6 [shape = 's32[1]{0}', space=sflag, size = 0x4, scoped, tag = 'scoped memory for splstm_forward.1']
    #allocation7 [shape = 'u8[32768]{0}', space=vmem, size = 0x8000, scoped, tag = 'input window, operand 1, single buffered']
    #allocation8 [shape = 's32[1]{0}', space=sflag, size = 0x4, scoped, tag = 'scoped memory for splstm_forward.1']
    #allocation9 [shape = 'u8[65536]{0}', space=vmem, size = 0x10000, scoped, tag = 'input window, operand 2, single buffered']
    #allocation10 [shape = 'u8[8192]{0}', space=vmem, size = 0x2000, scoped, tag = 'input window, operand 3, single buffered']
    #allocation11 [shape = 's32[1]{0}', space=sflag, size = 0x4, scoped, tag = 'scoped memory for splstm_forward.1']
    #allocation12 [shape = 'u8[8192]{0}', space=vmem, size = 0x2000, scoped, tag = 'input window, operand 4, single buffered']
    #allocation13 [shape = 'u8[8192]{0}', space=vmem, size = 0x2000, scoped, tag = 'input window, operand 5, single buffered']
    #allocation14 [shape = 's32[1]{0}', space=sflag, size = 0x4, scoped, tag = 'scoped memory for splstm_forward.1']
    #allocation15 [shape = 'u8[8192]{0}', space=vmem, size = 0x2000, scoped, tag = 'input window, operand 6, single buffered']
    #allocation16 [shape = 'u8[512]{0}', space=vmem, size = 0x400, scoped, tag = 'input window, operand 7, single buffered']
    #allocation17 [shape = 's32[1]{0}', space=sflag, size = 0x4, scoped, tag = 'scoped memory for splstm_forward.1']
    #allocation18 [shape = 'u8[8192]{0}', space=vmem, size = 0x2000, scoped, tag = 'output window, operand 0, single buffered']
    %13 = vsyncpa [#allocation5], 0
    %14 = vsyncpa [#allocation8], 0
    %15 = vsyncpa [#allocation11], 0
    %16 = vsyncpa [#allocation14], 0
    %17 = vsyncpa [#allocation17], 0
    %18 = vsyncpa [#allocation6], 0
    // Predicated region
    $region2: #{splstm_forward.1} parent=1 // pred_check
      _
    $region3: #{splstm_forward.1} parent=1 // pred_check_branch
      %20 = sbr.rel (0) target = $region5
    $region4: #{splstm_forward.1} parent=1 // pred_region
      %s22 = ssub.s32 1024, 1024
      %23 = vsyncadd [#allocation5], %s22
      %s24 = sshll.u32 [#allocation4], 4
      %s25 = int_to_ptr.vmem [resolvable:$true] %s24
      %30 = dma.hbm_to_vmem [thread:$0]  %s0, 1024, %s25, [#allocation5], 64, 64, 4
    $region5: #{splstm_forward.1} parent=1 // pred_fallthru
      _
    // Predicated region
    $region6: #{splstm_forward.1} parent=1 // pred_check
      _
    $region7: #{splstm_forward.1} parent=1 // pred_check_branch
      %32 = sbr.rel (0) target = $region9
    $region8: #{splstm_forward.1} parent=1 // pred_region
      %s34 = ssub.s32 1024, 1024
      %35 = vsyncadd [#allocation8], %s34
      %s36 = sshll.u32 [#allocation7], 4
      %s37 = int_to_ptr.vmem [resolvable:$true] %s36
      %42 = dma.hbm_to_vmem [thread:$0]  %s1, 1024, %s37, [#allocation8], 64, 64, 4
    $region9: #{splstm_forward.1} parent=1 // pred_fallthru
      _
    // Predicated region
    $region10: #{splstm_forward.1} parent=1 // pred_check
      _
    $region11: #{splstm_forward.1} parent=1 // pred_check_branch
      %44 = sbr.rel (0) target = $region13
    $region12: #{splstm_forward.1} parent=1 // pred_region
      %s46 = ssub.s32 2048, 2048
      %47 = vsyncadd [#allocation8], %s46
      %s48 = sshll.u32 [#allocation9], 4
      %s49 = int_to_ptr.vmem [resolvable:$true] %s48
      %54 = dma.hbm_to_vmem [thread:$0]  %s2, 2048, %s49, [#allocation8], 128, 128, 8
    $region13: #{splstm_forward.1} parent=1 // pred_fallthru
      _
    // Predicated region
    $region14: #{splstm_forward.1} parent=1 // pred_check
      _
    $region15: #{splstm_forward.1} parent=1 // pred_check_branch
      %56 = sbr.rel (0) target = $region17
    $region16: #{splstm_forward.1} parent=1 // pred_region
      %s58 = ssub.s32 256, 256
      %59 = vsyncadd [#allocation11], %s58
      %s60 = sshll.u32 [#allocation10], 4
      %s61 = int_to_ptr.vmem [resolvable:$true] %s60
      %66 = dma.hbm_to_vmem [thread:$0]  %s3, 256, %s61, [#allocation11], 64, 64, 4
    $region17: #{splstm_forward.1} parent=1 // pred_fallthru
      _
    // Predicated region
    $region18: #{splstm_forward.1} parent=1 // pred_check
      _
    $region19: #{splstm_forward.1} parent=1 // pred_check_branch
      %68 = sbr.rel (0) target = $region21
    $region20: #{splstm_forward.1} parent=1 // pred_region
      %s70 = ssub.s32 256, 256
      %71 = vsyncadd [#allocation11], %s70
      %s72 = sshll.u32 [#allocation12], 4
      %s73 = int_to_ptr.vmem [resolvable:$true] %s72
      %78 = dma.hbm_to_vmem [thread:$0]  %s4, 256, %s73, [#allocation11], 64, 64, 4
    $region21: #{splstm_forward.1} parent=1 // pred_fallthru
      _
    // Predicated region
    $region22: #{splstm_forward.1} parent=1 // pred_check
      _
    $region23: #{splstm_forward.1} parent=1 // pred_check_branch
      %80 = sbr.rel (0) target = $region25
    $region24: #{splstm_forward.1} parent=1 // pred_region
      %s82 = ssub.s32 256, 256
      %83 = vsyncadd [#allocation14], %s82
      %s84 = sshll.u32 [#allocation13], 4
      %s85 = int_to_ptr.vmem [resolvable:$true] %s84
      %90 = dma.hbm_to_vmem [thread:$0]  %s5, 256, %s85, [#allocation14], 64, 64, 4
    $region25: #{splstm_forward.1} parent=1 // pred_fallthru
      _
    // Predicated region
    $region26: #{splstm_forward.1} parent=1 // pred_check
      _
    $region27: #{splstm_forward.1} parent=1 // pred_check_branch
      %92 = sbr.rel (0) target = $region29
    $region28: #{splstm_forward.1} parent=1 // pred_region
      %s94 = ssub.s32 256, 256
      %95 = vsyncadd [#allocation14], %s94
      %s96 = sshll.u32 [#allocation15], 4
      %s97 = int_to_ptr.vmem [resolvable:$true] %s96
      %102 = dma.hbm_to_vmem [thread:$0]  %s6, 256, %s97, [#allocation14], 64, 64, 4
    $region29: #{splstm_forward.1} parent=1 // pred_fallthru
      _
    // Predicated region
    $region30: #{splstm_forward.1} parent=1 // pred_check
      _
    $region31: #{splstm_forward.1} parent=1 // pred_check_branch
      %104 = sbr.rel (0) target = $region33
    $region32: #{splstm_forward.1} parent=1 // pred_region
      %s106 = ssub.s32 16, 16
      %107 = vsyncadd [#allocation17], %s106
      %s109 = sshll.u32 [#allocation16], 4
      %s110 = int_to_ptr.vmem [resolvable:$true] %s109
      %112 = dma.hbm_to_vmem [thread:$0]  %s7, 16, %s110, [#allocation17]
    $region33: #{splstm_forward.1} parent=1 // pred_fallthru
      _
    // Predicated region
    $region34: #{splstm_forward.1} parent=1 // pred_check
      _
    $region35: #{splstm_forward.1} parent=1 // pred_check_branch
      %114 = sbr.rel (0) target = $region37
    $region36: #{splstm_forward.1} parent=1 // pred_region
      %115 = dma.done [#allocation5], 1024
    $region37: #{splstm_forward.1} parent=1 // pred_fallthru
      _
    // Predicated region
    $region38: #{splstm_forward.1} parent=1 // pred_check
      _
    $region39: #{splstm_forward.1} parent=1 // pred_check_branch
      %117 = sbr.rel (0) target = $region41
    $region40: #{splstm_forward.1} parent=1 // pred_region
      %118 = dma.done [#allocation8], 1024
    $region41: #{splstm_forward.1} parent=1 // pred_fallthru
      _
    // Predicated region
    $region42: #{splstm_forward.1} parent=1 // pred_check
      _
    $region43: #{splstm_forward.1} parent=1 // pred_check_branch
      %120 = sbr.rel (0) target = $region45
    $region44: #{splstm_forward.1} parent=1 // pred_region
      %121 = dma.done [#allocation8], 2048
    $region45: #{splstm_forward.1} parent=1 // pred_fallthru
      _
    // Predicated region
    $region46: #{splstm_forward.1} parent=1 // pred_check
      _
    $region47: #{splstm_forward.1} parent=1 // pred_check_branch
      %123 = sbr.rel (0) target = $region49
    $region48: #{splstm_forward.1} parent=1 // pred_region
      %124 = dma.done [#allocation11], 256
    $region49: #{splstm_forward.1} parent=1 // pred_fallthru
      _
    // Predicated region
    $region50: #{splstm_forward.1} parent=1 // pred_check
      _
    $region51: #{splstm_forward.1} parent=1 // pred_check_branch
      %126 = sbr.rel (0) target = $region53
    $region52: #{splstm_forward.1} parent=1 // pred_region
      %127 = dma.done [#allocation11], 256
    $region53: #{splstm_forward.1} parent=1 // pred_fallthru
      _
    // Predicated region
    $region54: #{splstm_forward.1} parent=1 // pred_check
      _
    $region55: #{splstm_forward.1} parent=1 // pred_check_branch
      %129 = sbr.rel (0) target = $region57
    $region56: #{splstm_forward.1} parent=1 // pred_region
      %130 = dma.done [#allocation14], 256
    $region57: #{splstm_forward.1} parent=1 // pred_fallthru
      _
    // Predicated region
    $region58: #{splstm_forward.1} parent=1 // pred_check
      _
    $region59: #{splstm_forward.1} parent=1 // pred_check_branch
      %132 = sbr.rel (0) target = $region61
    $region60: #{splstm_forward.1} parent=1 // pred_region
      %133 = dma.done [#allocation14], 256
    $region61: #{splstm_forward.1} parent=1 // pred_fallthru
      _
    // Predicated region
    $region62: #{splstm_forward.1} parent=1 // pred_check
      _
    $region63: #{splstm_forward.1} parent=1 // pred_check_branch
      %135 = sbr.rel (0) target = $region65
    $region64: #{splstm_forward.1} parent=1 // pred_region
      %136 = dma.done [#allocation17], 16
    $region65: #{splstm_forward.1} parent=1 // pred_fallthru
      _
    %v138 = vld [vmem:[#allocation10] sm:$0xf]
    %v139 = vld [vmem:[#allocation10 + $0x4] sm:$0xf]
    %v140 = vld [vmem:[#allocation10 + $0x8] sm:$0xf]
    %v141 = vld [vmem:[#allocation10 + $0xc] sm:$0xf]
    %v142 = vld [vmem:[#allocation12] sm:$0xf]
    %v143 = vld [vmem:[#allocation12 + $0x4] sm:$0xf]
    %v144 = vld [vmem:[#allocation12 + $0x8] sm:$0xf]
    %v145 = vld [vmem:[#allocation12 + $0xc] sm:$0xf]
    %v146 = vld [vmem:[#allocation4] sm:$0xf]
    %v147 = vld [vmem:[#allocation4 + $0x4] sm:$0xf]
    %v148 = vunpack.c.l.bf16 %v146
    %v149 = vunpack.c.l.bf16 %v147
    %v154 = vunpack.c.l.b16 %v138
    %v155 = vunpack.c.l.b16 %v139
    %v156 = vunpack.c.l.b16 %v140
    %v157 = vunpack.c.l.b16 %v141
    %v158 = vpack.c.b16 %v155, %v154
    %v159 = vpack.c.b16 %v157, %v156
    %vm162 = vcmask 261120
    %v164 = vsel %vm162, 0, 0
    %166 = vmatprep.subr.bf16.mxu0 0
    %167 = vmatpush1.bf16.msra.mxu0 %v158
    %168 = vmatprep.subr.bf16.mxu0 0
    %169 = vmatpush1.bf16.msra.mxu0 %v159
    %170 = vmatprep.subr.bf16.mxu0 0
    %171 = vmatpush1.bf16.msra.mxu0 0
    %172 = vmatprep.subr.bf16.mxu0 0
    %173 = vmatpush1.bf16.msra.mxu0 0
    %174 = vmatprep.subr.bf16.mxu0 0
    %175 = vmatpush1.bf16.msra.mxu0 0
    %176 = vmatprep.subr.bf16.mxu0 0
    %177 = vmatpush1.bf16.msra.mxu0 0
    %178 = vmatprep.subr.bf16.mxu0 0
    %179 = vmatpush1.bf16.msra.mxu0 0
    %180 = vmatprep.subr.bf16.mxu0 0
    %181 = vmatpush1.bf16.msra.mxu0 0
    %182 = vmatprep.subr.bf16.mxu0 0
    %183 = vmatpush1.bf16.msra.mxu0 0
    %184 = vmatprep.subr.bf16.mxu0 0
    %185 = vmatpush1.bf16.msra.mxu0 0
    %186 = vmatprep.subr.bf16.mxu0 0
    %187 = vmatpush1.bf16.msra.mxu0 0
    %188 = vmatprep.subr.bf16.mxu0 0
    %189 = vmatpush1.bf16.msra.mxu0 0
    %190 = vmatprep.subr.bf16.mxu0 0
    %191 = vmatpush1.bf16.msra.mxu0 0
    %192 = vmatprep.subr.bf16.mxu0 0
    %193 = vmatpush1.bf16.msra.mxu0 0
    %194 = vmatprep.subr.bf16.mxu0 0
    %195 = vmatpush1.bf16.msra.mxu0 0
    %196 = vmatprep.subr.bf16.mxu0 0
    %197 = vmatpush1.bf16.msra.mxu0 0
    %198 = vmatprep.mubr.bf16.mxu0 0
    %199 = vmatmul.mubr.bf16.gmra.mrb[0].mxu0 %v164
    %v200 = vpop.f32.mrb[0].mxu0
    %v201 = vadd.f32 0.0, %v200
    %v202 = vpop.f32.mrb[0].mxu0
    %v203 = vpop.f32.mrb[0].mxu0
    %v204 = vadd.f32 0.0, %v203
    %v205 = vpop.f32.mrb[0].mxu0
    %206 = vdwg.mxu0
    %v207 = vadd.f32 %v148, %v201
    %v208 = vadd.f32 %v149, %v204
    %v209 = vxor.u32 %v207, 2147483648
    %v210 = vxor.u32 %v208, 2147483648
    %v211 = vmul.f32 %v209, 1.442695
    %v212 = vpow.pop %v211
    %v213 = vmul.f32 %v210, 1.442695
    %v214 = vpow.pop %v213
    %v215 = vadd.f32 %v212, 1.0
    %v216 = vadd.f32 %v214, 1.0
    %v217 = vrcp.pop %v215
    %v218 = vmul.f32 1.0, %v217
    %v219 = vrcp.pop %v216
    %v220 = vmul.f32 1.0, %v219
    %v221 = vtanh.pop %v207
    %v222 = vtanh.pop %v208
    %v223 = vmul.f32 %v218, 0.0
    %v224 = vmul.f32 %v220, 0.0
    %227 = vrot.lane.b32.xlu0 %v221, 64
    %v228 = vpop.permute.xlu0 %227
    %229 = vrot.lane.b32.xlu0 %v222, 64
    %v230 = vpop.permute.xlu0 %229
    %v233 = vmul.f32 %v218, %v228
    %v234 = vmul.f32 %v220, %v230
    %237 = vrot.lane.b32.xlu0 %v233, 32
    %v238 = vpop.permute.xlu0 %237
    %239 = vrot.lane.b32.xlu0 %v234, 32
    %v240 = vpop.permute.xlu0 %239
    %v243 = vadd.f32 %v223, %v238
    %v244 = vadd.f32 %v224, %v240
    %v245 = vtanh.pop %v243
    %v246 = vtanh.pop %v244
    %249 = vrot.lane.b32.xlu0 %v245, 64
    %v250 = vpop.permute.xlu0 %249
    %251 = vrot.lane.b32.xlu0 %v246, 64
    %v252 = vpop.permute.xlu0 %251
    %v255 = vmul.f32 %v218, %v250
    %v256 = vmul.f32 %v220, %v252
    %v257 = vpack.c.bf16 %v256, %v255
    %259 = vrot.lane.b32.xlu0 %v257, 32
    %v260 = vpop.permute.xlu0 %259
    %262 = vst.msk [vmem:[#allocation2] sm:$0xff] %vm162, %v260
    %s263 = scalar_lea.vmem [#allocation9], 112
    %v264 = vld [vmem:[%s263] sm:$0xff]
    %v265 = vld [vmem:[%s263 + $0x8] sm:$0xff]
    %s266 = scalar_lea.vmem [#allocation7], 56
    %v267 = vld [vmem:[%s266] sm:$0xf]
    %v268 = vld [vmem:[%s266 + $0x4] sm:$0xf]
    %270 = vset.pattern.permute.xlu0 0
    %271 = vperm.xlu0 %270, %v264
    %v272 = vpop.permute.xlu0 %271
    %275 = vset.pattern.permute.xlu0 0
    %276 = vperm.xlu0 %275, %v265
    %v277 = vpop.permute.xlu0 %276
    %v279 = vmul.f32 %v272, 0.0
    %v280 = vmul.f32 %v277, 0.0
    %v281 = vunpack.c.l.bf16 %v267
    %v282 = vunpack.c.l.bf16 %v268
    %v283 = vpack.c.bf16 %v280, %v279
    %v288 = vunpack.c.l.b16 %v142
    %v289 = vunpack.c.l.b16 %v143
    %v290 = vunpack.c.l.b16 %v144
    %v291 = vunpack.c.l.b16 %v145
    %v292 = vpack.c.b16 %v289, %v288
    %v293 = vpack.c.b16 %v291, %v290
    %v297 = vsel %vm162, %v283, 0
    %299 = vmatprep.subr.bf16.mxu0 0
    %300 = vmatpush1.bf16.msra.mxu0 %v292
    %301 = vmatprep.subr.bf16.mxu0 0
    %302 = vmatpush1.bf16.msra.mxu0 %v293
    %303 = vmatprep.subr.bf16.mxu0 0
    %304 = vmatpush1.bf16.msra.mxu0 0
    %305 = vmatprep.subr.bf16.mxu0 0
    %306 = vmatpush1.bf16.msra.mxu0 0
    %307 = vmatprep.subr.bf16.mxu0 0
    %308 = vmatpush1.bf16.msra.mxu0 0
    %309 = vmatprep.subr.bf16.mxu0 0
    %310 = vmatpush1.bf16.msra.mxu0 0
    %311 = vmatprep.subr.bf16.mxu0 0
    %312 = vmatpush1.bf16.msra.mxu0 0
    %313 = vmatprep.subr.bf16.mxu0 0
    %314 = vmatpush1.bf16.msra.mxu0 0
    %315 = vmatprep.subr.bf16.mxu0 0
    %316 = vmatpush1.bf16.msra.mxu0 0
    %317 = vmatprep.subr.bf16.mxu0 0
    %318 = vmatpush1.bf16.msra.mxu0 0
    %319 = vmatprep.subr.bf16.mxu0 0
    %320 = vmatpush1.bf16.msra.mxu0 0
    %321 = vmatprep.subr.bf16.mxu0 0
    %322 = vmatpush1.bf16.msra.mxu0 0
    %323 = vmatprep.subr.bf16.mxu0 0
    %324 = vmatpush1.bf16.msra.mxu0 0
    %325 = vmatprep.subr.bf16.mxu0 0
    %326 = vmatpush1.bf16.msra.mxu0 0
    %327 = vmatprep.subr.bf16.mxu0 0
    %328 = vmatpush1.bf16.msra.mxu0 0
    %329 = vmatprep.subr.bf16.mxu0 0
    %330 = vmatpush1.bf16.msra.mxu0 0
    %331 = vmatprep.mubr.bf16.mxu0 0
    %332 = vmatmul.mubr.bf16.gmra.mrb[0].mxu0 %v297
    %v333 = vpop.f32.mrb[0].mxu0
    %v334 = vadd.f32 0.0, %v333
    %v335 = vpop.f32.mrb[0].mxu0
    %v336 = vpop.f32.mrb[0].mxu0
    %v337 = vadd.f32 0.0, %v336
    %v338 = vpop.f32.mrb[0].mxu0
    %339 = vdwg.mxu0
    %v340 = vadd.f32 %v281, %v334
    %v341 = vadd.f32 %v282, %v337
    %v342 = vxor.u32 %v340, 2147483648
    %v343 = vxor.u32 %v341, 2147483648
    %v344 = vmul.f32 %v342, 1.442695
    %v345 = vpow.pop %v344
    %v346 = vmul.f32 %v343, 1.442695
    %v347 = vpow.pop %v346
    %v348 = vadd.f32 %v345, 1.0
    %v349 = vadd.f32 %v347, 1.0
    %v350 = vrcp.pop %v348
    %v351 = vmul.f32 1.0, %v350
    %v352 = vrcp.pop %v349
    %v353 = vmul.f32 1.0, %v352
    %v354 = vtanh.pop %v340
    %v355 = vtanh.pop %v341
    %v356 = vmul.f32 %v351, %v279
    %v357 = vmul.f32 %v353, %v280
    %360 = vrot.lane.b32.xlu0 %v354, 64
    %v361 = vpop.permute.xlu0 %360
    %362 = vrot.lane.b32.xlu0 %v355, 64
    %v363 = vpop.permute.xlu0 %362
    %v366 = vmul.f32 %v351, %v361
    %v367 = vmul.f32 %v353, %v363
    %370 = vrot.lane.b32.xlu0 %v366, 32
    %v371 = vpop.permute.xlu0 %370
    %372 = vrot.lane.b32.xlu0 %v367, 32
    %v373 = vpop.permute.xlu0 %372
    %v376 = vadd.f32 %v356, %v371
    %v377 = vadd.f32 %v357, %v373
    %v378 = vtanh.pop %v376
    %v379 = vtanh.pop %v377
    %382 = vrot.lane.b32.xlu0 %v378, 64
    %v383 = vpop.permute.xlu0 %382
    %384 = vrot.lane.b32.xlu0 %v379, 64
    %v385 = vpop.permute.xlu0 %384
    %v388 = vmul.f32 %v351, %v383
    %v389 = vmul.f32 %v353, %v385
    %v390 = vpack.c.bf16 %v389, %v388
    %392 = vrot.lane.b32.xlu0 %v390, 32
    %v393 = vpop.permute.xlu0 %392
    %s395 = scalar_lea.vmem [#allocation3], 56
    %396 = vst.msk [vmem:[%s395] sm:$0xff] %vm162, %v393
    %s397 = scalar_lea.vmem [#allocation4], 8
    %v398 = vld [vmem:[%s397] sm:$0xf]
    %v399 = vld [vmem:[%s397 + $0x4] sm:$0xf]
    %v400 = vunpack.c.l.bf16 %v398
    %v401 = vunpack.c.l.bf16 %v399
    %v403 = vsel %vm162, %v260, 0
    %405 = vmatprep.subr.bf16.mxu0 0
    %406 = vmatpush1.bf16.msra.mxu0 %v158
    %407 = vmatprep.subr.bf16.mxu0 0
    %408 = vmatpush1.bf16.msra.mxu0 %v159
    %409 = vmatprep.subr.bf16.mxu0 0
    %410 = vmatpush1.bf16.msra.mxu0 0
    %411 = vmatprep.subr.bf16.mxu0 0
    %412 = vmatpush1.bf16.msra.mxu0 0
    %413 = vmatprep.subr.bf16.mxu0 0
    %414 = vmatpush1.bf16.msra.mxu0 0
    %415 = vmatprep.subr.bf16.mxu0 0
    %416 = vmatpush1.bf16.msra.mxu0 0
    %417 = vmatprep.subr.bf16.mxu0 0
    %418 = vmatpush1.bf16.msra.mxu0 0
    %419 = vmatprep.subr.bf16.mxu0 0
    %420 = vmatpush1.bf16.msra.mxu0 0
    %421 = vmatprep.subr.bf16.mxu0 0
    %422 = vmatpush1.bf16.msra.mxu0 0
    %423 = vmatprep.subr.bf16.mxu0 0
    %424 = vmatpush1.bf16.msra.mxu0 0
    %425 = vmatprep.subr.bf16.mxu0 0
    %426 = vmatpush1.bf16.msra.mxu0 0
    %427 = vmatprep.subr.bf16.mxu0 0
    %428 = vmatpush1.bf16.msra.mxu0 0
    %429 = vmatprep.subr.bf16.mxu0 0
    %430 = vmatpush1.bf16.msra.mxu0 0
    %431 = vmatprep.subr.bf16.mxu0 0
    %432 = vmatpush1.bf16.msra.mxu0 0
    %433 = vmatprep.subr.bf16.mxu0 0
    %434 = vmatpush1.bf16.msra.mxu0 0
    %435 = vmatprep.subr.bf16.mxu0 0
    %436 = vmatpush1.bf16.msra.mxu0 0
    %437 = vmatprep.mubr.bf16.mxu0 0
    %438 = vmatmul.mubr.bf16.gmra.mrb[0].mxu0 %v403
    %v439 = vpop.f32.mrb[0].mxu0
    %v440 = vadd.f32 0.0, %v439
    %v441 = vpop.f32.mrb[0].mxu0
    %v442 = vpop.f32.mrb[0].mxu0
    %v443 = vadd.f32 0.0, %v442
    %v444 = vpop.f32.mrb[0].mxu0
    %445 = vdwg.mxu0
    %v446 = vadd.f32 %v400, %v440
    %v447 = vadd.f32 %v401, %v443
    %v448 = vxor.u32 %v446, 2147483648
    %v449 = vxor.u32 %v447, 2147483648
    %v450 = vmul.f32 %v448, 1.442695
    %v451 = vpow.pop %v450
    %v452 = vmul.f32 %v449, 1.442695
    %v453 = vpow.pop %v452
    %v454 = vadd.f32 %v451, 1.0
    %v455 = vadd.f32 %v453, 1.0
    %v456 = vrcp.pop %v454
    %v457 = vmul.f32 1.0, %v456
    %v458 = vrcp.pop %v455
    %v459 = vmul.f32 1.0, %v458
    %v460 = vtanh.pop %v446
    %v461 = vtanh.pop %v447
    %v462 = vmul.f32 %v457, %v243
    %v463 = vmul.f32 %v459, %v244
    %466 = vrot.lane.b32.xlu0 %v460, 64
    %v467 = vpop.permute.xlu0 %466
    %468 = vrot.lane.b32.xlu0 %v461, 64
    %v469 = vpop.permute.xlu0 %468
    %v472 = vmul.f32 %v457, %v467
    %v473 = vmul.f32 %v459, %v469
    %476 = vrot.lane.b32.xlu0 %v472, 32
    %v477 = vpop.permute.xlu0 %476
    %478 = vrot.lane.b32.xlu0 %v473, 32
    %v479 = vpop.permute.xlu0 %478
    %v482 = vadd.f32 %v462, %v477
    %v483 = vadd.f32 %v463, %v479
    %v484 = vtanh.pop %v482
    %v485 = vtanh.pop %v483
    %488 = vrot.lane.b32.xlu0 %v484, 64
    %v489 = vpop.permute.xlu0 %488
    %490 = vrot.lane.b32.xlu0 %v485, 64
    %v491 = vpop.permute.xlu0 %490
    %v494 = vmul.f32 %v457, %v489
    %v495 = vmul.f32 %v459, %v491
    %v496 = vpack.c.bf16 %v495, %v494
    %498 = vrot.lane.b32.xlu0 %v496, 32
    %v499 = vpop.permute.xlu0 %498
    %s501 = scalar_lea.vmem [#allocation2], 8
    %502 = vst.msk [vmem:[%s501] sm:$0xff] %vm162, %v499
    %v503 = vld [vmem:[%s263] sm:$0xff]
    %v504 = vld [vmem:[%s263 + $0x8] sm:$0xff]
    %s505 = scalar_lea.vmem [#allocation7], 48
    %v506 = vld [vmem:[%s505] sm:$0xf]
    %v507 = vld [vmem:[%s505 + $0x4] sm:$0xf]
    %509 = vset.pattern.permute.xlu0 0
    %510 = vperm.xlu0 %509, %v503
    %v511 = vpop.permute.xlu0 %510
    %514 = vset.pattern.permute.xlu0 0
    %515 = vperm.xlu0 %514, %v504
    %v516 = vpop.permute.xlu0 %515
    %v518 = vmul.f32 %v388, %v511
    %v519 = vmul.f32 %v389, %v516
    %v520 = vmul.f32 %v376, %v511
    %v521 = vmul.f32 %v377, %v516
    %v522 = vunpack.c.l.bf16 %v506
    %v523 = vunpack.c.l.bf16 %v507
    %v524 = vpack.c.bf16 %v519, %v518
    %526 = vrot.lane.b32.xlu0 %v524, 32
    %v527 = vpop.permute.xlu0 %526
    %v529 = vsel %vm162, %v527, 0
    %531 = vmatprep.subr.bf16.mxu0 0
    %532 = vmatpush1.bf16.msra.mxu0 %v292
    %533 = vmatprep.subr.bf16.mxu0 0
    %534 = vmatpush1.bf16.msra.mxu0 %v293
    %535 = vmatprep.subr.bf16.mxu0 0
    %536 = vmatpush1.bf16.msra.mxu0 0
    %537 = vmatprep.subr.bf16.mxu0 0
    %538 = vmatpush1.bf16.msra.mxu0 0
    %539 = vmatprep.subr.bf16.mxu0 0
    %540 = vmatpush1.bf16.msra.mxu0 0
    %541 = vmatprep.subr.bf16.mxu0 0
    %542 = vmatpush1.bf16.msra.mxu0 0
    %543 = vmatprep.subr.bf16.mxu0 0
    %544 = vmatpush1.bf16.msra.mxu0 0
    %545 = vmatprep.subr.bf16.mxu0 0
    %546 = vmatpush1.bf16.msra.mxu0 0
    %547 = vmatprep.subr.bf16.mxu0 0
    %548 = vmatpush1.bf16.msra.mxu0 0
    %549 = vmatprep.subr.bf16.mxu0 0
    %550 = vmatpush1.bf16.msra.mxu0 0
    %551 = vmatprep.subr.bf16.mxu0 0
    %552 = vmatpush1.bf16.msra.mxu0 0
    %553 = vmatprep.subr.bf16.mxu0 0
    %554 = vmatpush1.bf16.msra.mxu0 0
    %555 = vmatprep.subr.bf16.mxu0 0
    %556 = vmatpush1.bf16.msra.mxu0 0
    %557 = vmatprep.subr.bf16.mxu0 0
    %558 = vmatpush1.bf16.msra.mxu0 0
    %559 = vmatprep.subr.bf16.mxu0 0
    %560 = vmatpush1.bf16.msra.mxu0 0
    %561 = vmatprep.subr.bf16.mxu0 0
    %562 = vmatpush1.bf16.msra.mxu0 0
    %563 = vmatprep.mubr.bf16.mxu0 0
    %564 = vmatmul.mubr.bf16.gmra.mrb[0].mxu0 %v529
    %v565 = vpop.f32.mrb[0].mxu0
    %v566 = vadd.f32 0.0, %v565
    %v567 = vpop.f32.mrb[0].mxu0
    %v568 = vpop.f32.mrb[0].mxu0
    %v569 = vadd.f32 0.0, %v568
    %v570 = vpop.f32.mrb[0].mxu0
    %571 = vdwg.mxu0
    %v572 = vadd.f32 %v522, %v566
    %v573 = vadd.f32 %v523, %v569
    %v574 = vxor.u32 %v572, 2147483648
    %v575 = vxor.u32 %v573, 2147483648
    %v576 = vmul.f32 %v574, 1.442695
    %v577 = vpow.pop %v576
    %v578 = vmul.f32 %v575, 1.442695
    %v579 = vpow.pop %v578
    %v580 = vadd.f32 %v577, 1.0
    %v581 = vadd.f32 %v579, 1.0
    %v582 = vrcp.pop %v580
    %v583 = vmul.f32 1.0, %v582
    %v584 = vrcp.pop %v581
    %v585 = vmul.f32 1.0, %v584
    %v586 = vtanh.pop %v572
    %v587 = vtanh.pop %v573
    %v588 = vmul.f32 %v583, %v520
    %v589 = vmul.f32 %v585, %v521
    %592 = vrot.lane.b32.xlu0 %v586, 64
    %v593 = vpop.permute.xlu0 %592
    %594 = vrot.lane.b32.xlu0 %v587, 64
    %v595 = vpop.permute.xlu0 %594
    %v598 = vmul.f32 %v583, %v593
    %v599 = vmul.f32 %v585, %v595
    %602 = vrot.lane.b32.xlu0 %v598, 32
    %v603 = vpop.permute.xlu0 %602
    %604 = vrot.lane.b32.xlu0 %v599, 32
    %v605 = vpop.permute.xlu0 %604
    %v608 = vadd.f32 %v588, %v603
    %v609 = vadd.f32 %v589, %v605
    %v610 = vtanh.pop %v608
    %v611 = vtanh.pop %v609
    %614 = vrot.lane.b32.xlu0 %v610, 64
    %v615 = vpop.permute.xlu0 %614
    %616 = vrot.lane.b32.xlu0 %v611, 64
    %v617 = vpop.permute.xlu0 %616
    %v620 = vmul.f32 %v583, %v615
    %v621 = vmul.f32 %v585, %v617
    %v622 = vpack.c.bf16 %v621, %v620
    %624 = vrot.lane.b32.xlu0 %v622, 32
    %v625 = vpop.permute.xlu0 %624
    %s627 = scalar_lea.vmem [#allocation3], 48
    %628 = vst.msk [vmem:[%s627] sm:$0xff] %vm162, %v625
    %s629 = scalar_lea.vmem [#allocation4], 16
    %v630 = vld [vmem:[%s629] sm:$0xf]
    %v631 = vld [vmem:[%s629 + $0x4] sm:$0xf]
    %v632 = vunpack.c.l.bf16 %v630
    %v633 = vunpack.c.l.bf16 %v631
    %v635 = vsel %vm162, %v499, 0
    %637 = vmatprep.subr.bf16.mxu0 0
    %638 = vmatpush1.bf16.msra.mxu0 %v158
    %639 = vmatprep.subr.bf16.mxu0 0
    %640 = vmatpush1.bf16.msra.mxu0 %v159
    %641 = vmatprep.subr.bf16.mxu0 0
    %642 = vmatpush1.bf16.msra.mxu0 0
    %643 = vmatprep.subr.bf16.mxu0 0
    %644 = vmatpush1.bf16.msra.mxu0 0
    %645 = vmatprep.subr.bf16.mxu0 0
    %646 = vmatpush1.bf16.msra.mxu0 0
    %647 = vmatprep.subr.bf16.mxu0 0
    %648 = vmatpush1.bf16.msra.mxu0 0
    %649 = vmatprep.subr.bf16.mxu0 0
    %650 = vmatpush1.bf16.msra.mxu0 0
    %651 = vmatprep.subr.bf16.mxu0 0
    %652 = vmatpush1.bf16.msra.mxu0 0
    %653 = vmatprep.subr.bf16.mxu0 0
    %654 = vmatpush1.bf16.msra.mxu0 0
    %655 = vmatprep.subr.bf16.mxu0 0
    %656 = vmatpush1.bf16.msra.mxu0 0
    %657 = vmatprep.subr.bf16.mxu0 0
    %658 = vmatpush1.bf16.msra.mxu0 0
    %659 = vmatprep.subr.bf16.mxu0 0
    %660 = vmatpush1.bf16.msra.mxu0 0
    %661 = vmatprep.subr.bf16.mxu0 0
    %662 = vmatpush1.bf16.msra.mxu0 0
    %663 = vmatprep.subr.bf16.mxu0 0
    %664 = vmatpush1.bf16.msra.mxu0 0
    %665 = vmatprep.subr.bf16.mxu0 0
    %666 = vmatpush1.bf16.msra.mxu0 0
    %667 = vmatprep.subr.bf16.mxu0 0
    %668 = vmatpush1.bf16.msra.mxu0 0
    %669 = vmatprep.mubr.bf16.mxu0 0
    %670 = vmatmul.mubr.bf16.gmra.mrb[0].mxu0 %v635
    %v671 = vpop.f32.mrb[0].mxu0
    %v672 = vadd.f32 0.0, %v671
    %v673 = vpop.f32.mrb[0].mxu0
    %v674 = vpop.f32.mrb[0].mxu0
    %v675 = vadd.f32 0.0, %v674
    %v676 = vpop.f32.mrb[0].mxu0
    %677 = vdwg.mxu0
    %v678 = vadd.f32 %v632, %v672
    %v679 = vadd.f32 %v633, %v675
    %v680 = vxor.u32 %v678, 2147483648
    %v681 = vxor.u32 %v679, 2147483648
    %v682 = vmul.f32 %v680, 1.442695
    %v683 = vpow.pop %v682
    %v684 = vmul.f32 %v681, 1.442695
    %v685 = vpow.pop %v684
    %v686 = vadd.f32 %v683, 1.0
    %v687 = vadd.f32 %v685, 1.0
    %v688 = vrcp.pop %v686
    %v689 = vmul.f32 1.0, %v688
    %v690 = vrcp.pop %v687
    %v691 = vmul.f32 1.0, %v690
    %v692 = vtanh.pop %v678
    %v693 = vtanh.pop %v679
    %v694 = vmul.f32 %v689, %v482
    %v695 = vmul.f32 %v691, %v483
    %698 = vrot.lane.b32.xlu0 %v692, 64
    %v699 = vpop.permute.xlu0 %698
    %700 = vrot.lane.b32.xlu0 %v693, 64
    %v701 = vpop.permute.xlu0 %700
    %v704 = vmul.f32 %v689, %v699
    %v705 = vmul.f32 %v691, %v701
    %708 = vrot.lane.b32.xlu0 %v704, 32
    %v709 = vpop.permute.xlu0 %708
    %710 = vrot.lane.b32.xlu0 %v705, 32
    %v711 = vpop.permute.xlu0 %710
    %v714 = vadd.f32 %v694, %v709
    %v715 = vadd.f32 %v695, %v711
    %v716 = vtanh.pop %v714
    %v717 = vtanh.pop %v715
    %720 = vrot.lane.b32.xlu0 %v716, 64
    %v721 = vpop.permute.xlu0 %720
    %722 = vrot.lane.b32.xlu0 %v717, 64
    %v723 = vpop.permute.xlu0 %722
    %v726 = vmul.f32 %v689, %v721
    %v727 = vmul.f32 %v691, %v723
    %v728 = vpack.c.bf16 %v727, %v726
    %730 = vrot.lane.b32.xlu0 %v728, 32
    %v731 = vpop.permute.xlu0 %730
    %s733 = scalar_lea.vmem [#allocation2], 16
    %734 = vst.msk [vmem:[%s733] sm:$0xff] %vm162, %v731
    %s735 = scalar_lea.vmem [#allocation9], 96
    %v736 = vld [vmem:[%s735] sm:$0xff]
    %v737 = vld [vmem:[%s735 + $0x8] sm:$0xff]
    %s738 = scalar_lea.vmem [#allocation7], 40
    %v739 = vld [vmem:[%s738] sm:$0xf]
    %v740 = vld [vmem:[%s738 + $0x4] sm:$0xf]
    %742 = vset.pattern.permute.xlu0 0
    %743 = vperm.xlu0 %742, %v736
    %v744 = vpop.permute.xlu0 %743
    %747 = vset.pattern.permute.xlu0 0
    %748 = vperm.xlu0 %747, %v737
    %v749 = vpop.permute.xlu0 %748
    %v751 = vmul.f32 %v620, %v744
    %v752 = vmul.f32 %v621, %v749
    %v753 = vmul.f32 %v608, %v744
    %v754 = vmul.f32 %v609, %v749
    %v755 = vunpack.c.l.bf16 %v739
    %v756 = vunpack.c.l.bf16 %v740
    %v757 = vpack.c.bf16 %v752, %v751
    %759 = vrot.lane.b32.xlu0 %v757, 32
    %v760 = vpop.permute.xlu0 %759
    %v762 = vsel %vm162, %v760, 0
    %764 = vmatprep.subr.bf16.mxu0 0
    %765 = vmatpush1.bf16.msra.mxu0 %v292
    %766 = vmatprep.subr.bf16.mxu0 0
    %767 = vmatpush1.bf16.msra.mxu0 %v293
    %768 = vmatprep.subr.bf16.mxu0 0
    %769 = vmatpush1.bf16.msra.mxu0 0
    %770 = vmatprep.subr.bf16.mxu0 0
    %771 = vmatpush1.bf16.msra.mxu0 0
    %772 = vmatprep.subr.bf16.mxu0 0
    %773 = vmatpush1.bf16.msra.mxu0 0
    %774 = vmatprep.subr.bf16.mxu0 0
    %775 = vmatpush1.bf16.msra.mxu0 0
    %776 = vmatprep.subr.bf16.mxu0 0
    %777 = vmatpush1.bf16.msra.mxu0 0
    %778 = vmatprep.subr.bf16.mxu0 0
    %779 = vmatpush1.bf16.msra.mxu0 0
    %780 = vmatprep.subr.bf16.mxu0 0
    %781 = vmatpush1.bf16.msra.mxu0 0
    %782 = vmatprep.subr.bf16.mxu0 0
    %783 = vmatpush1.bf16.msra.mxu0 0
    %784 = vmatprep.subr.bf16.mxu0 0
    %785 = vmatpush1.bf16.msra.mxu0 0
    %786 = vmatprep.subr.bf16.mxu0 0
    %787 = vmatpush1.bf16.msra.mxu0 0
    %788 = vmatprep.subr.bf16.mxu0 0
    %789 = vmatpush1.bf16.msra.mxu0 0
    %790 = vmatprep.subr.bf16.mxu0 0
    %791 = vmatpush1.bf16.msra.mxu0 0
    %792 = vmatprep.subr.bf16.mxu0 0
    %793 = vmatpush1.bf16.msra.mxu0 0
    %794 = vmatprep.subr.bf16.mxu0 0
    %795 = vmatpush1.bf16.msra.mxu0 0
    %796 = vmatprep.mubr.bf16.mxu0 0
    %797 = vmatmul.mubr.bf16.gmra.mrb[0].mxu0 %v762
    %v798 = vpop.f32.mrb[0].mxu0
    %v799 = vadd.f32 0.0, %v798
    %v800 = vpop.f32.mrb[0].mxu0
    %v801 = vpop.f32.mrb[0].mxu0
    %v802 = vadd.f32 0.0, %v801
    %v803 = vpop.f32.mrb[0].mxu0
    %804 = vdwg.mxu0
    %v805 = vadd.f32 %v755, %v799
    %v806 = vadd.f32 %v756, %v802
    %v807 = vxor.u32 %v805, 2147483648
    %v808 = vxor.u32 %v806, 2147483648
    %v809 = vmul.f32 %v807, 1.442695
    %v810 = vpow.pop %v809
    %v811 = vmul.f32 %v808, 1.442695
    %v812 = vpow.pop %v811
    %v813 = vadd.f32 %v810, 1.0
    %v814 = vadd.f32 %v812, 1.0
    %v815 = vrcp.pop %v813
    %v816 = vmul.f32 1.0, %v815
    %v817 = vrcp.pop %v814
    %v818 = vmul.f32 1.0, %v817
    %v819 = vtanh.pop %v805
    %v820 = vtanh.pop %v806
    %v821 = vmul.f32 %v816, %v753
    %v822 = vmul.f32 %v818, %v754
    %825 = vrot.lane.b32.xlu0 %v819, 64
    %v826 = vpop.permute.xlu0 %825
    %827 = vrot.lane.b32.xlu0 %v820, 64
    %v828 = vpop.permute.xlu0 %827
    %v831 = vmul.f32 %v816, %v826
    %v832 = vmul.f32 %v818, %v828
    %835 = vrot.lane.b32.xlu0 %v831, 32
    %v836 = vpop.permute.xlu0 %835
    %837 = vrot.lane.b32.xlu0 %v832, 32
    %v838 = vpop.permute.xlu0 %837
    %v841 = vadd.f32 %v821, %v836
    %v842 = vadd.f32 %v822, %v838
    %v843 = vtanh.pop %v841
    %v844 = vtanh.pop %v842
    %847 = vrot.lane.b32.xlu0 %v843, 64
    %v848 = vpop.permute.xlu0 %847
    %849 = vrot.lane.b32.xlu0 %v844, 64
    %v850 = vpop.permute.xlu0 %849
    %v853 = vmul.f32 %v816, %v848
    %v854 = vmul.f32 %v818, %v850
    %v855 = vpack.c.bf16 %v854, %v853
    %857 = vrot.lane.b32.xlu0 %v855, 32
    %v858 = vpop.permute.xlu0 %857
    %s860 = scalar_lea.vmem [#allocation3], 40
    %861 = vst.msk [vmem:[%s860] sm:$0xff] %vm162, %v858
    %s862 = scalar_lea.vmem [#allocation4], 24
    %v863 = vld [vmem:[%s862] sm:$0xf]
    %v864 = vld [vmem:[%s862 + $0x4] sm:$0xf]
    %v865 = vunpack.c.l.bf16 %v863
    %v866 = vunpack.c.l.bf16 %v864
    %v868 = vsel %vm162, %v731, 0
    %870 = vmatprep.subr.bf16.mxu0 0
    %871 = vmatpush1.bf16.msra.mxu0 %v158
    %872 = vmatprep.subr.bf16.mxu0 0
    %873 = vmatpush1.bf16.msra.mxu0 %v159
    %874 = vmatprep.subr.bf16.mxu0 0
    %875 = vmatpush1.bf16.msra.mxu0 0
    %876 = vmatprep.subr.bf16.mxu0 0
    %877 = vmatpush1.bf16.msra.mxu0 0
    %878 = vmatprep.subr.bf16.mxu0 0
    %879 = vmatpush1.bf16.msra.mxu0 0
    %880 = vmatprep.subr.bf16.mxu0 0
    %881 = vmatpush1.bf16.msra.mxu0 0
    %882 = vmatprep.subr.bf16.mxu0 0
    %883 = vmatpush1.bf16.msra.mxu0 0
    %884 = vmatprep.subr.bf16.mxu0 0
    %885 = vmatpush1.bf16.msra.mxu0 0
    %886 = vmatprep.subr.bf16.mxu0 0
    %887 = vmatpush1.bf16.msra.mxu0 0
    %888 = vmatprep.subr.bf16.mxu0 0
    %889 = vmatpush1.bf16.msra.mxu0 0
    %890 = vmatprep.subr.bf16.mxu0 0
    %891 = vmatpush1.bf16.msra.mxu0 0
    %892 = vmatprep.subr.bf16.mxu0 0
    %893 = vmatpush1.bf16.msra.mxu0 0
    %894 = vmatprep.subr.bf16.mxu0 0
    %895 = vmatpush1.bf16.msra.mxu0 0
    %896 = vmatprep.subr.bf16.mxu0 0
    %897 = vmatpush1.bf16.msra.mxu0 0
    %898 = vmatprep.subr.bf16.mxu0 0
    %899 = vmatpush1.bf16.msra.mxu0 0
    %900 = vmatprep.subr.bf16.mxu0 0
    %901 = vmatpush1.bf16.msra.mxu0 0
    %902 = vmatprep.mubr.bf16.mxu0 0
    %903 = vmatmul.mubr.bf16.gmra.mrb[0].mxu0 %v868
    %v904 = vpop.f32.mrb[0].mxu0
    %v905 = vadd.f32 0.0, %v904
    %v906 = vpop.f32.mrb[0].mxu0
    %v907 = vpop.f32.mrb[0].mxu0
    %v908 = vadd.f32 0.0, %v907
    %v909 = vpop.f32.mrb[0].mxu0
    %910 = vdwg.mxu0
    %v911 = vadd.f32 %v865, %v905
    %v912 = vadd.f32 %v866, %v908
    %v913 = vxor.u32 %v911, 2147483648
    %v914 = vxor.u32 %v912, 2147483648
    %v915 = vmul.f32 %v913, 1.442695
    %v916 = vpow.pop %v915
    %v917 = vmul.f32 %v914, 1.442695
    %v918 = vpow.pop %v917
    %v919 = vadd.f32 %v916, 1.0
    %v920 = vadd.f32 %v918, 1.0
    %v921 = vrcp.pop %v919
    %v922 = vmul.f32 1.0, %v921
    %v923 = vrcp.pop %v920
    %v924 = vmul.f32 1.0, %v923
    %v925 = vtanh.pop %v911
    %v926 = vtanh.pop %v912
    %v927 = vmul.f32 %v922, %v714
    %v928 = vmul.f32 %v924, %v715
    %931 = vrot.lane.b32.xlu0 %v925, 64
    %v932 = vpop.permute.xlu0 %931
    %933 = vrot.lane.b32.xlu0 %v926, 64
    %v934 = vpop.permute.xlu0 %933
    %v937 = vmul.f32 %v922, %v932
    %v938 = vmul.f32 %v924, %v934
    %941 = vrot.lane.b32.xlu0 %v937, 32
    %v942 = vpop.permute.xlu0 %941
    %943 = vrot.lane.b32.xlu0 %v938, 32
    %v944 = vpop.permute.xlu0 %943
    %v947 = vadd.f32 %v927, %v942
    %v948 = vadd.f32 %v928, %v944
    %v949 = vtanh.pop %v947
    %v950 = vtanh.pop %v948
    %953 = vrot.lane.b32.xlu0 %v949, 64
    %v954 = vpop.permute.xlu0 %953
    %955 = vrot.lane.b32.xlu0 %v950, 64
    %v956 = vpop.permute.xlu0 %955
    %v959 = vmul.f32 %v922, %v954
    %v960 = vmul.f32 %v924, %v956
    %v961 = vpack.c.bf16 %v960, %v959
    %963 = vrot.lane.b32.xlu0 %v961, 32
    %v964 = vpop.permute.xlu0 %963
    %s966 = scalar_lea.vmem [#allocation2], 24
    %967 = vst.msk [vmem:[%s966] sm:$0xff] %vm162, %v964
    %s968 = scalar_lea.vmem [#allocation9], 80
    %v969 = vld [vmem:[%s968] sm:$0xff]
    %v970 = vld [vmem:[%s968 + $0x8] sm:$0xff]
    %s971 = scalar_lea.vmem [#allocation7], 32
    %v972 = vld [vmem:[%s971] sm:$0xf]
    %v973 = vld [vmem:[%s971 + $0x4] sm:$0xf]
    %975 = vset.pattern.permute.xlu0 0
    %976 = vperm.xlu0 %975, %v969
    %v977 = vpop.permute.xlu0 %976
    %980 = vset.pattern.permute.xlu0 0
    %981 = vperm.xlu0 %980, %v970
    %v982 = vpop.permute.xlu0 %981
    %v984 = vmul.f32 %v853, %v977
    %v985 = vmul.f32 %v854, %v982
    %v986 = vmul.f32 %v841, %v977
    %v987 = vmul.f32 %v842, %v982
    %v988 = vunpack.c.l.bf16 %v972
    %v989 = vunpack.c.l.bf16 %v973
    %v990 = vpack.c.bf16 %v985, %v984
    %992 = vrot.lane.b32.xlu0 %v990, 32
    %v993 = vpop.permute.xlu0 %992
    %v995 = vsel %vm162, %v993, 0
    %997 = vmatprep.subr.bf16.mxu0 0
    %998 = vmatpush1.bf16.msra.mxu0 %v292
    %999 = vmatprep.subr.bf16.mxu0 0
    %1000 = vmatpush1.bf16.msra.mxu0 %v293
    %1001 = vmatprep.subr.bf16.mxu0 0
    %1002 = vmatpush1.bf16.msra.mxu0 0
    %1003 = vmatprep.subr.bf16.mxu0 0
    %1004 = vmatpush1.bf16.msra.mxu0 0
    %1005 = vmatprep.subr.bf16.mxu0 0
    %1006 = vmatpush1.bf16.msra.mxu0 0
    %1007 = vmatprep.subr.bf16.mxu0 0
    %1008 = vmatpush1.bf16.msra.mxu0 0
    %1009 = vmatprep.subr.bf16.mxu0 0
    %1010 = vmatpush1.bf16.msra.mxu0 0
    %1011 = vmatprep.subr.bf16.mxu0 0
    %1012 = vmatpush1.bf16.msra.mxu0 0
    %1013 = vmatprep.subr.bf16.mxu0 0
    %1014 = vmatpush1.bf16.msra.mxu0 0
    %1015 = vmatprep.subr.bf16.mxu0 0
    %1016 = vmatpush1.bf16.msra.mxu0 0
    %1017 = vmatprep.subr.bf16.mxu0 0
    %1018 = vmatpush1.bf16.msra.mxu0 0
    %1019 = vmatprep.subr.bf16.mxu0 0
    %1020 = vmatpush1.bf16.msra.mxu0 0
    %1021 = vmatprep.subr.bf16.mxu0 0
    %1022 = vmatpush1.bf16.msra.mxu0 0
    %1023 = vmatprep.subr.bf16.mxu0 0
    %1024 = vmatpush1.bf16.msra.mxu0 0
    %1025 = vmatprep.subr.bf16.mxu0 0
    %1026 = vmatpush1.bf16.msra.mxu0 0
    %1027 = vmatprep.subr.bf16.mxu0 0
    %1028 = vmatpush1.bf16.msra.mxu0 0
    %1029 = vmatprep.mubr.bf16.mxu0 0
    %1030 = vmatmul.mubr.bf16.gmra.mrb[0].mxu0 %v995
    %v1031 = vpop.f32.mrb[0].mxu0
    %v1032 = vadd.f32 0.0, %v1031
    %v1033 = vpop.f32.mrb[0].mxu0
    %v1034 = vpop.f32.mrb[0].mxu0
    %v1035 = vadd.f32 0.0, %v1034
    %v1036 = vpop.f32.mrb[0].mxu0
    %1037 = vdwg.mxu0
    %v1038 = vadd.f32 %v988, %v1032
    %v1039 = vadd.f32 %v989, %v1035
    %v1040 = vxor.u32 %v1038, 2147483648
    %v1041 = vxor.u32 %v1039, 2147483648
    %v1042 = vmul.f32 %v1040, 1.442695
    %v1043 = vpow.pop %v1042
    %v1044 = vmul.f32 %v1041, 1.442695
    %v1045 = vpow.pop %v1044
    %v1046 = vadd.f32 %v1043, 1.0
    %v1047 = vadd.f32 %v1045, 1.0
    %v1048 = vrcp.pop %v1046
    %v1049 = vmul.f32 1.0, %v1048
    %v1050 = vrcp.pop %v1047
    %v1051 = vmul.f32 1.0, %v1050
    %v1052 = vtanh.pop %v1038
    %v1053 = vtanh.pop %v1039
    %v1054 = vmul.f32 %v1049, %v986
    %v1055 = vmul.f32 %v1051, %v987
    %1058 = vrot.lane.b32.xlu0 %v1052, 64
    %v1059 = vpop.permute.xlu0 %1058
    %1060 = vrot.lane.b32.xlu0 %v1053, 64
    %v1061 = vpop.permute.xlu0 %1060
    %v1064 = vmul.f32 %v1049, %v1059
    %v1065 = vmul.f32 %v1051, %v1061
    %1068 = vrot.lane.b32.xlu0 %v1064, 32
    %v1069 = vpop.permute.xlu0 %1068
    %1070 = vrot.lane.b32.xlu0 %v1065, 32
    %v1071 = vpop.permute.xlu0 %1070
    %v1074 = vadd.f32 %v1054, %v1069
    %v1075 = vadd.f32 %v1055, %v1071
    %v1076 = vtanh.pop %v1074
    %v1077 = vtanh.pop %v1075
    %1080 = vrot.lane.b32.xlu0 %v1076, 64
    %v1081 = vpop.permute.xlu0 %1080
    %1082 = vrot.lane.b32.xlu0 %v1077, 64
    %v1083 = vpop.permute.xlu0 %1082
    %v1086 = vmul.f32 %v1049, %v1081
    %v1087 = vmul.f32 %v1051, %v1083
    %v1088 = vpack.c.bf16 %v1087, %v1086
    %1090 = vrot.lane.b32.xlu0 %v1088, 32
    %v1091 = vpop.permute.xlu0 %1090
    %s1093 = scalar_lea.vmem [#allocation3], 32
    %1094 = vst.msk [vmem:[%s1093] sm:$0xff] %vm162, %v1091
    %s1095 = scalar_lea.vmem [#allocation4], 32
    %v1096 = vld [vmem:[%s1095] sm:$0xf]
    %v1097 = vld [vmem:[%s1095 + $0x4] sm:$0xf]
    %v1098 = vunpack.c.l.bf16 %v1096
    %v1099 = vunpack.c.l.bf16 %v1097
    %v1101 = vsel %vm162, %v964, 0
    %1103 = vmatprep.subr.bf16.mxu0 0
    %1104 = vmatpush1.bf16.msra.mxu0 %v158
    %1105 = vmatprep.subr.bf16.mxu0 0
    %1106 = vmatpush1.bf16.msra.mxu0 %v159
    %1107 = vmatprep.subr.bf16.mxu0 0
    %1108 = vmatpush1.bf16.msra.mxu0 0
    %1109 = vmatprep.subr.bf16.mxu0 0
    %1110 = vmatpush1.bf16.msra.mxu0 0
    %1111 = vmatprep.subr.bf16.mxu0 0
    %1112 = vmatpush1.bf16.msra.mxu0 0
    %1113 = vmatprep.subr.bf16.mxu0 0
    %1114 = vmatpush1.bf16.msra.mxu0 0
    %1115 = vmatprep.subr.bf16.mxu0 0
    %1116 = vmatpush1.bf16.msra.mxu0 0
    %1117 = vmatprep.subr.bf16.mxu0 0
    %1118 = vmatpush1.bf16.msra.mxu0 0
    %1119 = vmatprep.subr.bf16.mxu0 0
    %1120 = vmatpush1.bf16.msra.mxu0 0
    %1121 = vmatprep.subr.bf16.mxu0 0
    %1122 = vmatpush1.bf16.msra.mxu0 0
    %1123 = vmatprep.subr.bf16.mxu0 0
    %1124 = vmatpush1.bf16.msra.mxu0 0
    %1125 = vmatprep.subr.bf16.mxu0 0
    %1126 = vmatpush1.bf16.msra.mxu0 0
    %1127 = vmatprep.subr.bf16.mxu0 0
    %1128 = vmatpush1.bf16.msra.mxu0 0
    %1129 = vmatprep.subr.bf16.mxu0 0
    %1130 = vmatpush1.bf16.msra.mxu0 0
    %1131 = vmatprep.subr.bf16.mxu0 0
    %1132 = vmatpush1.bf16.msra.mxu0 0
    %1133 = vmatprep.subr.bf16.mxu0 0
    %1134 = vmatpush1.bf16.msra.mxu0 0
    %1135 = vmatprep.mubr.bf16.mxu0 0
    %1136 = vmatmul.mubr.bf16.gmra.mrb[0].mxu0 %v1101
    %v1137 = vpop.f32.mrb[0].mxu0
    %v1138 = vadd.f32 0.0, %v1137
    %v1139 = vpop.f32.mrb[0].mxu0
    %v1140 = vpop.f32.mrb[0].mxu0
    %v1141 = vadd.f32 0.0, %v1140
    %v1142 = vpop.f32.mrb[0].mxu0
    %1143 = vdwg.mxu0
    %v1144 = vadd.f32 %v1098, %v1138
    %v1145 = vadd.f32 %v1099, %v1141
    %v1146 = vxor.u32 %v1144, 2147483648
    %v1147 = vxor.u32 %v1145, 2147483648
    %v1148 = vmul.f32 %v1146, 1.442695
    %v1149 = vpow.pop %v1148
    %v1150 = vmul.f32 %v1147, 1.442695
    %v1151 = vpow.pop %v1150
    %v1152 = vadd.f32 %v1149, 1.0
    %v1153 = vadd.f32 %v1151, 1.0
    %v1154 = vrcp.pop %v1152
    %v1155 = vmul.f32 1.0, %v1154
    %v1156 = vrcp.pop %v1153
    %v1157 = vmul.f32 1.0, %v1156
    %v1158 = vtanh.pop %v1144
    %v1159 = vtanh.pop %v1145
    %v1160 = vmul.f32 %v1155, %v947
    %v1161 = vmul.f32 %v1157, %v948
    %1164 = vrot.lane.b32.xlu0 %v1158, 64
    %v1165 = vpop.permute.xlu0 %1164
    %1166 = vrot.lane.b32.xlu0 %v1159, 64
    %v1167 = vpop.permute.xlu0 %1166
    %v1170 = vmul.f32 %v1155, %v1165
    %v1171 = vmul.f32 %v1157, %v1167
    %1174 = vrot.lane.b32.xlu0 %v1170, 32
    %v1175 = vpop.permute.xlu0 %1174
    %1176 = vrot.lane.b32.xlu0 %v1171, 32
    %v1177 = vpop.permute.xlu0 %1176
    %v1180 = vadd.f32 %v1160, %v1175
    %v1181 = vadd.f32 %v1161, %v1177
    %v1182 = vtanh.pop %v1180
    %v1183 = vtanh.pop %v1181
    %1186 = vrot.lane.b32.xlu0 %v1182, 64
    %v1187 = vpop.permute.xlu0 %1186
    %1188 = vrot.lane.b32.xlu0 %v1183, 64
    %v1189 = vpop.permute.xlu0 %1188
    %v1192 = vmul.f32 %v1155, %v1187
    %v1193 = vmul.f32 %v1157, %v1189
    %v1194 = vpack.c.bf16 %v1193, %v1192
    %1196 = vrot.lane.b32.xlu0 %v1194, 32
    %v1197 = vpop.permute.xlu0 %1196
    %s1199 = scalar_lea.vmem [#allocation2], 32
    %1200 = vst.msk [vmem:[%s1199] sm:$0xff] %vm162, %v1197
    %s1201 = scalar_lea.vmem [#allocation9], 64
    %v1202 = vld [vmem:[%s1201] sm:$0xff]
    %v1203 = vld [vmem:[%s1201 + $0x8] sm:$0xff]
    %s1204 = scalar_lea.vmem [#allocation7], 24
    %v1205 = vld [vmem:[%s1204] sm:$0xf]
    %v1206 = vld [vmem:[%s1204 + $0x4] sm:$0xf]
    %1208 = vset.pattern.permute.xlu0 0
    %1209 = vperm.xlu0 %1208, %v1202
    %v1210 = vpop.permute.xlu0 %1209
    %1213 = vset.pattern.permute.xlu0 0
    %1214 = vperm.xlu0 %1213, %v1203
    %v1215 = vpop.permute.xlu0 %1214
    %v1217 = vmul.f32 %v1086, %v1210
    %v1218 = vmul.f32 %v1087, %v1215
    %v1219 = vmul.f32 %v1074, %v1210
    %v1220 = vmul.f32 %v1075, %v1215
    %v1221 = vunpack.c.l.bf16 %v1205
    %v1222 = vunpack.c.l.bf16 %v1206
    %v1223 = vpack.c.bf16 %v1218, %v1217
    %1225 = vrot.lane.b32.xlu0 %v1223, 32
    %v1226 = vpop.permute.xlu0 %1225
    %v1228 = vsel %vm162, %v1226, 0
    %1230 = vmatprep.subr.bf16.mxu0 0
    %1231 = vmatpush1.bf16.msra.mxu0 %v292
    %1232 = vmatprep.subr.bf16.mxu0 0
    %1233 = vmatpush1.bf16.msra.mxu0 %v293
    %1234 = vmatprep.subr.bf16.mxu0 0
    %1235 = vmatpush1.bf16.msra.mxu0 0
    %1236 = vmatprep.subr.bf16.mxu0 0
    %1237 = vmatpush1.bf16.msra.mxu0 0
    %1238 = vmatprep.subr.bf16.mxu0 0
    %1239 = vmatpush1.bf16.msra.mxu0 0
    %1240 = vmatprep.subr.bf16.mxu0 0
    %1241 = vmatpush1.bf16.msra.mxu0 0
    %1242 = vmatprep.subr.bf16.mxu0 0
    %1243 = vmatpush1.bf16.msra.mxu0 0
    %1244 = vmatprep.subr.bf16.mxu0 0
    %1245 = vmatpush1.bf16.msra.mxu0 0
    %1246 = vmatprep.subr.bf16.mxu0 0
    %1247 = vmatpush1.bf16.msra.mxu0 0
    %1248 = vmatprep.subr.bf16.mxu0 0
    %1249 = vmatpush1.bf16.msra.mxu0 0
    %1250 = vmatprep.subr.bf16.mxu0 0
    %1251 = vmatpush1.bf16.msra.mxu0 0
    %1252 = vmatprep.subr.bf16.mxu0 0
    %1253 = vmatpush1.bf16.msra.mxu0 0
    %1254 = vmatprep.subr.bf16.mxu0 0
    %1255 = vmatpush1.bf16.msra.mxu0 0
    %1256 = vmatprep.subr.bf16.mxu0 0
    %1257 = vmatpush1.bf16.msra.mxu0 0
    %1258 = vmatprep.subr.bf16.mxu0 0
    %1259 = vmatpush1.bf16.msra.mxu0 0
    %1260 = vmatprep.subr.bf16.mxu0 0
    %1261 = vmatpush1.bf16.msra.mxu0 0
    %1262 = vmatprep.mubr.bf16.mxu0 0
    %1263 = vmatmul.mubr.bf16.gmra.mrb[0].mxu0 %v1228
    %v1264 = vpop.f32.mrb[0].mxu0
    %v1265 = vadd.f32 0.0, %v1264
    %v1266 = vpop.f32.mrb[0].mxu0
    %v1267 = vpop.f32.mrb[0].mxu0
    %v1268 = vadd.f32 0.0, %v1267
    %v1269 = vpop.f32.mrb[0].mxu0
    %1270 = vdwg.mxu0
    %v1271 = vadd.f32 %v1221, %v1265
    %v1272 = vadd.f32 %v1222, %v1268
    %v1273 = vxor.u32 %v1271, 2147483648
    %v1274 = vxor.u32 %v1272, 2147483648
    %v1275 = vmul.f32 %v1273, 1.442695
    %v1276 = vpow.pop %v1275
    %v1277 = vmul.f32 %v1274, 1.442695
    %v1278 = vpow.pop %v1277
    %v1279 = vadd.f32 %v1276, 1.0
    %v1280 = vadd.f32 %v1278, 1.0
    %v1281 = vrcp.pop %v1279
    %v1282 = vmul.f32 1.0, %v1281
    %v1283 = vrcp.pop %v1280
    %v1284 = vmul.f32 1.0, %v1283
    %v1285 = vtanh.pop %v1271
    %v1286 = vtanh.pop %v1272
    %v1287 = vmul.f32 %v1282, %v1219
    %v1288 = vmul.f32 %v1284, %v1220
    %1291 = vrot.lane.b32.xlu0 %v1285, 64
    %v1292 = vpop.permute.xlu0 %1291
    %1293 = vrot.lane.b32.xlu0 %v1286, 64
    %v1294 = vpop.permute.xlu0 %1293
    %v1297 = vmul.f32 %v1282, %v1292
    %v1298 = vmul.f32 %v1284, %v1294
    %1301 = vrot.lane.b32.xlu0 %v1297, 32
    %v1302 = vpop.permute.xlu0 %1301
    %1303 = vrot.lane.b32.xlu0 %v1298, 32
    %v1304 = vpop.permute.xlu0 %1303
    %v1307 = vadd.f32 %v1287, %v1302
    %v1308 = vadd.f32 %v1288, %v1304
    %v1309 = vtanh.pop %v1307
    %v1310 = vtanh.pop %v1308
    %1313 = vrot.lane.b32.xlu0 %v1309, 64
    %v1314 = vpop.permute.xlu0 %1313
    %1315 = vrot.lane.b32.xlu0 %v1310, 64
    %v1316 = vpop.permute.xlu0 %1315
    %v1319 = vmul.f32 %v1282, %v1314
    %v1320 = vmul.f32 %v1284, %v1316
    %v1321 = vpack.c.bf16 %v1320, %v1319
    %1323 = vrot.lane.b32.xlu0 %v1321, 32
    %v1324 = vpop.permute.xlu0 %1323
    %s1326 = scalar_lea.vmem [#allocation3], 24
    %1327 = vst.msk [vmem:[%s1326] sm:$0xff] %vm162, %v1324
    %s1328 = scalar_lea.vmem [#allocation4], 40
    %v1329 = vld [vmem:[%s1328] sm:$0xf]
    %v1330 = vld [vmem:[%s1328 + $0x4] sm:$0xf]
    %v1331 = vunpack.c.l.bf16 %v1329
    %v1332 = vunpack.c.l.bf16 %v1330
    %v1334 = vsel %vm162, %v1197, 0
    %1336 = vmatprep.subr.bf16.mxu0 0
    %1337 = vmatpush1.bf16.msra.mxu0 %v158
    %1338 = vmatprep.subr.bf16.mxu0 0
    %1339 = vmatpush1.bf16.msra.mxu0 %v159
    %1340 = vmatprep.subr.bf16.mxu0 0
    %1341 = vmatpush1.bf16.msra.mxu0 0
    %1342 = vmatprep.subr.bf16.mxu0 0
    %1343 = vmatpush1.bf16.msra.mxu0 0
    %1344 = vmatprep.subr.bf16.mxu0 0
    %1345 = vmatpush1.bf16.msra.mxu0 0
    %1346 = vmatprep.subr.bf16.mxu0 0
    %1347 = vmatpush1.bf16.msra.mxu0 0
    %1348 = vmatprep.subr.bf16.mxu0 0
    %1349 = vmatpush1.bf16.msra.mxu0 0
    %1350 = vmatprep.subr.bf16.mxu0 0
    %1351 = vmatpush1.bf16.msra.mxu0 0
    %1352 = vmatprep.subr.bf16.mxu0 0
    %1353 = vmatpush1.bf16.msra.mxu0 0
    %1354 = vmatprep.subr.bf16.mxu0 0
    %1355 = vmatpush1.bf16.msra.mxu0 0
    %1356 = vmatprep.subr.bf16.mxu0 0
    %1357 = vmatpush1.bf16.msra.mxu0 0
    %1358 = vmatprep.subr.bf16.mxu0 0
    %1359 = vmatpush1.bf16.msra.mxu0 0
    %1360 = vmatprep.subr.bf16.mxu0 0
    %1361 = vmatpush1.bf16.msra.mxu0 0
    %1362 = vmatprep.subr.bf16.mxu0 0
    %1363 = vmatpush1.bf16.msra.mxu0 0
    %1364 = vmatprep.subr.bf16.mxu0 0
    %1365 = vmatpush1.bf16.msra.mxu0 0
    %1366 = vmatprep.subr.bf16.mxu0 0
    %1367 = vmatpush1.bf16.msra.mxu0 0
    %1368 = vmatprep.mubr.bf16.mxu0 0
    %1369 = vmatmul.mubr.bf16.gmra.mrb[0].mxu0 %v1334
    %v1370 = vpop.f32.mrb[0].mxu0
    %v1371 = vadd.f32 0.0, %v1370
    %v1372 = vpop.f32.mrb[0].mxu0
    %v1373 = vpop.f32.mrb[0].mxu0
    %v1374 = vadd.f32 0.0, %v1373
    %v1375 = vpop.f32.mrb[0].mxu0
    %1376 = vdwg.mxu0
    %v1377 = vadd.f32 %v1331, %v1371
    %v1378 = vadd.f32 %v1332, %v1374
    %v1379 = vxor.u32 %v1377, 2147483648
    %v1380 = vxor.u32 %v1378, 2147483648
    %v1381 = vmul.f32 %v1379, 1.442695
    %v1382 = vpow.pop %v1381
    %v1383 = vmul.f32 %v1380, 1.442695
    %v1384 = vpow.pop %v1383
    %v1385 = vadd.f32 %v1382, 1.0
    %v1386 = vadd.f32 %v1384, 1.0
    %v1387 = vrcp.pop %v1385
    %v1388 = vmul.f32 1.0, %v1387
    %v1389 = vrcp.pop %v1386
    %v1390 = vmul.f32 1.0, %v1389
    %v1391 = vtanh.pop %v1377
    %v1392 = vtanh.pop %v1378
    %v1393 = vmul.f32 %v1388, %v1180
    %v1394 = vmul.f32 %v1390, %v1181
    %1397 = vrot.lane.b32.xlu0 %v1391, 64
    %v1398 = vpop.permute.xlu0 %1397
    %1399 = vrot.lane.b32.xlu0 %v1392, 64
    %v1400 = vpop.permute.xlu0 %1399
    %v1403 = vmul.f32 %v1388, %v1398
    %v1404 = vmul.f32 %v1390, %v1400
    %1407 = vrot.lane.b32.xlu0 %v1403, 32
    %v1408 = vpop.permute.xlu0 %1407
    %1409 = vrot.lane.b32.xlu0 %v1404, 32
    %v1410 = vpop.permute.xlu0 %1409
    %v1413 = vadd.f32 %v1393, %v1408
    %v1414 = vadd.f32 %v1394, %v1410
    %v1415 = vtanh.pop %v1413
    %v1416 = vtanh.pop %v1414
    %1419 = vrot.lane.b32.xlu0 %v1415, 64
    %v1420 = vpop.permute.xlu0 %1419
    %1421 = vrot.lane.b32.xlu0 %v1416, 64
    %v1422 = vpop.permute.xlu0 %1421
    %v1425 = vmul.f32 %v1388, %v1420
    %v1426 = vmul.f32 %v1390, %v1422
    %v1427 = vpack.c.bf16 %v1426, %v1425
    %1429 = vrot.lane.b32.xlu0 %v1427, 32
    %v1430 = vpop.permute.xlu0 %1429
    %s1432 = scalar_lea.vmem [#allocation2], 40
    %1433 = vst.msk [vmem:[%s1432] sm:$0xff] %vm162, %v1430
    %s1434 = scalar_lea.vmem [#allocation9], 48
    %v1435 = vld [vmem:[%s1434] sm:$0xff]
    %v1436 = vld [vmem:[%s1434 + $0x8] sm:$0xff]
    %s1437 = scalar_lea.vmem [#allocation7], 16
    %v1438 = vld [vmem:[%s1437] sm:$0xf]
    %v1439 = vld [vmem:[%s1437 + $0x4] sm:$0xf]
    %1441 = vset.pattern.permute.xlu0 0
    %1442 = vperm.xlu0 %1441, %v1435
    %v1443 = vpop.permute.xlu0 %1442
    %1446 = vset.pattern.permute.xlu0 0
    %1447 = vperm.xlu0 %1446, %v1436
    %v1448 = vpop.permute.xlu0 %1447
    %v1450 = vmul.f32 %v1319, %v1443
    %v1451 = vmul.f32 %v1320, %v1448
    %v1452 = vmul.f32 %v1307, %v1443
    %v1453 = vmul.f32 %v1308, %v1448
    %v1454 = vunpack.c.l.bf16 %v1438
    %v1455 = vunpack.c.l.bf16 %v1439
    %v1456 = vpack.c.bf16 %v1451, %v1450
    %1458 = vrot.lane.b32.xlu0 %v1456, 32
    %v1459 = vpop.permute.xlu0 %1458
    %v1461 = vsel %vm162, %v1459, 0
    %1463 = vmatprep.subr.bf16.mxu0 0
    %1464 = vmatpush1.bf16.msra.mxu0 %v292
    %1465 = vmatprep.subr.bf16.mxu0 0
    %1466 = vmatpush1.bf16.msra.mxu0 %v293
    %1467 = vmatprep.subr.bf16.mxu0 0
    %1468 = vmatpush1.bf16.msra.mxu0 0
    %1469 = vmatprep.subr.bf16.mxu0 0
    %1470 = vmatpush1.bf16.msra.mxu0 0
    %1471 = vmatprep.subr.bf16.mxu0 0
    %1472 = vmatpush1.bf16.msra.mxu0 0
    %1473 = vmatprep.subr.bf16.mxu0 0
    %1474 = vmatpush1.bf16.msra.mxu0 0
    %1475 = vmatprep.subr.bf16.mxu0 0
    %1476 = vmatpush1.bf16.msra.mxu0 0
    %1477 = vmatprep.subr.bf16.mxu0 0
    %1478 = vmatpush1.bf16.msra.mxu0 0
    %1479 = vmatprep.subr.bf16.mxu0 0
    %1480 = vmatpush1.bf16.msra.mxu0 0
    %1481 = vmatprep.subr.bf16.mxu0 0
    %1482 = vmatpush1.bf16.msra.mxu0 0
    %1483 = vmatprep.subr.bf16.mxu0 0
    %1484 = vmatpush1.bf16.msra.mxu0 0
    %1485 = vmatprep.subr.bf16.mxu0 0
    %1486 = vmatpush1.bf16.msra.mxu0 0
    %1487 = vmatprep.subr.bf16.mxu0 0
    %1488 = vmatpush1.bf16.msra.mxu0 0
    %1489 = vmatprep.subr.bf16.mxu0 0
    %1490 = vmatpush1.bf16.msra.mxu0 0
    %1491 = vmatprep.subr.bf16.mxu0 0
    %1492 = vmatpush1.bf16.msra.mxu0 0
    %1493 = vmatprep.subr.bf16.mxu0 0
    %1494 = vmatpush1.bf16.msra.mxu0 0
    %1495 = vmatprep.mubr.bf16.mxu0 0
    %1496 = vmatmul.mubr.bf16.gmra.mrb[0].mxu0 %v1461
    %v1497 = vpop.f32.mrb[0].mxu0
    %v1498 = vadd.f32 0.0, %v1497
    %v1499 = vpop.f32.mrb[0].mxu0
    %v1500 = vpop.f32.mrb[0].mxu0
    %v1501 = vadd.f32 0.0, %v1500
    %v1502 = vpop.f32.mrb[0].mxu0
    %1503 = vdwg.mxu0
    %v1504 = vadd.f32 %v1454, %v1498
    %v1505 = vadd.f32 %v1455, %v1501
    %v1506 = vxor.u32 %v1504, 2147483648
    %v1507 = vxor.u32 %v1505, 2147483648
    %v1508 = vmul.f32 %v1506, 1.442695
    %v1509 = vpow.pop %v1508
    %v1510 = vmul.f32 %v1507, 1.442695
    %v1511 = vpow.pop %v1510
    %v1512 = vadd.f32 %v1509, 1.0
    %v1513 = vadd.f32 %v1511, 1.0
    %v1514 = vrcp.pop %v1512
    %v1515 = vmul.f32 1.0, %v1514
    %v1516 = vrcp.pop %v1513
    %v1517 = vmul.f32 1.0, %v1516
    %v1518 = vtanh.pop %v1504
    %v1519 = vtanh.pop %v1505
    %v1520 = vmul.f32 %v1515, %v1452
    %v1521 = vmul.f32 %v1517, %v1453
    %1524 = vrot.lane.b32.xlu0 %v1518, 64
    %v1525 = vpop.permute.xlu0 %1524
    %1526 = vrot.lane.b32.xlu0 %v1519, 64
    %v1527 = vpop.permute.xlu0 %1526
    %v1530 = vmul.f32 %v1515, %v1525
    %v1531 = vmul.f32 %v1517, %v1527
    %1534 = vrot.lane.b32.xlu0 %v1530, 32
    %v1535 = vpop.permute.xlu0 %1534
    %1536 = vrot.lane.b32.xlu0 %v1531, 32
    %v1537 = vpop.permute.xlu0 %1536
    %v1540 = vadd.f32 %v1520, %v1535
    %v1541 = vadd.f32 %v1521, %v1537
    %v1542 = vtanh.pop %v1540
    %v1543 = vtanh.pop %v1541
    %1546 = vrot.lane.b32.xlu0 %v1542, 64
    %v1547 = vpop.permute.xlu0 %1546
    %1548 = vrot.lane.b32.xlu0 %v1543, 64
    %v1549 = vpop.permute.xlu0 %1548
    %v1552 = vmul.f32 %v1515, %v1547
    %v1553 = vmul.f32 %v1517, %v1549
    %v1554 = vpack.c.bf16 %v1553, %v1552
    %1556 = vrot.lane.b32.xlu0 %v1554, 32
    %v1557 = vpop.permute.xlu0 %1556
    %s1559 = scalar_lea.vmem [#allocation3], 16
    %1560 = vst.msk [vmem:[%s1559] sm:$0xff] %vm162, %v1557
    %s1561 = scalar_lea.vmem [#allocation4], 48
    %v1562 = vld [vmem:[%s1561] sm:$0xf]
    %v1563 = vld [vmem:[%s1561 + $0x4] sm:$0xf]
    %v1564 = vunpack.c.l.bf16 %v1562
    %v1565 = vunpack.c.l.bf16 %v1563
    %v1567 = vsel %vm162, %v1430, 0
    %1569 = vmatprep.subr.bf16.mxu0 0
    %1570 = vmatpush1.bf16.msra.mxu0 %v158
    %1571 = vmatprep.subr.bf16.mxu0 0
    %1572 = vmatpush1.bf16.msra.mxu0 %v159
    %1573 = vmatprep.subr.bf16.mxu0 0
    %1574 = vmatpush1.bf16.msra.mxu0 0
    %1575 = vmatprep.subr.bf16.mxu0 0
    %1576 = vmatpush1.bf16.msra.mxu0 0
    %1577 = vmatprep.subr.bf16.mxu0 0
    %1578 = vmatpush1.bf16.msra.mxu0 0
    %1579 = vmatprep.subr.bf16.mxu0 0
    %1580 = vmatpush1.bf16.msra.mxu0 0
    %1581 = vmatprep.subr.bf16.mxu0 0
    %1582 = vmatpush1.bf16.msra.mxu0 0
    %1583 = vmatprep.subr.bf16.mxu0 0
    %1584 = vmatpush1.bf16.msra.mxu0 0
    %1585 = vmatprep.subr.bf16.mxu0 0
    %1586 = vmatpush1.bf16.msra.mxu0 0
    %1587 = vmatprep.subr.bf16.mxu0 0
    %1588 = vmatpush1.bf16.msra.mxu0 0
    %1589 = vmatprep.subr.bf16.mxu0 0
    %1590 = vmatpush1.bf16.msra.mxu0 0
    %1591 = vmatprep.subr.bf16.mxu0 0
    %1592 = vmatpush1.bf16.msra.mxu0 0
    %1593 = vmatprep.subr.bf16.mxu0 0
    %1594 = vmatpush1.bf16.msra.mxu0 0
    %1595 = vmatprep.subr.bf16.mxu0 0
    %1596 = vmatpush1.bf16.msra.mxu0 0
    %1597 = vmatprep.subr.bf16.mxu0 0
    %1598 = vmatpush1.bf16.msra.mxu0 0
    %1599 = vmatprep.subr.bf16.mxu0 0
    %1600 = vmatpush1.bf16.msra.mxu0 0
    %1601 = vmatprep.mubr.bf16.mxu0 0
    %1602 = vmatmul.mubr.bf16.gmra.mrb[0].mxu0 %v1567
    %v1603 = vpop.f32.mrb[0].mxu0
    %v1604 = vadd.f32 0.0, %v1603
    %v1605 = vpop.f32.mrb[0].mxu0
    %v1606 = vpop.f32.mrb[0].mxu0
    %v1607 = vadd.f32 0.0, %v1606
    %v1608 = vpop.f32.mrb[0].mxu0
    %1609 = vdwg.mxu0
    %v1610 = vadd.f32 %v1564, %v1604
    %v1611 = vadd.f32 %v1565, %v1607
    %v1612 = vxor.u32 %v1610, 2147483648
    %v1613 = vxor.u32 %v1611, 2147483648
    %v1614 = vmul.f32 %v1612, 1.442695
    %v1615 = vpow.pop %v1614
    %v1616 = vmul.f32 %v1613, 1.442695
    %v1617 = vpow.pop %v1616
    %v1618 = vadd.f32 %v1615, 1.0
    %v1619 = vadd.f32 %v1617, 1.0
    %v1620 = vrcp.pop %v1618
    %v1621 = vmul.f32 1.0, %v1620
    %v1622 = vrcp.pop %v1619
    %v1623 = vmul.f32 1.0, %v1622
    %v1624 = vtanh.pop %v1610
    %v1625 = vtanh.pop %v1611
    %v1626 = vmul.f32 %v1621, %v1413
    %v1627 = vmul.f32 %v1623, %v1414
    %1630 = vrot.lane.b32.xlu0 %v1624, 64
    %v1631 = vpop.permute.xlu0 %1630
    %1632 = vrot.lane.b32.xlu0 %v1625, 64
    %v1633 = vpop.permute.xlu0 %1632
    %v1636 = vmul.f32 %v1621, %v1631
    %v1637 = vmul.f32 %v1623, %v1633
    %1640 = vrot.lane.b32.xlu0 %v1636, 32
    %v1641 = vpop.permute.xlu0 %1640
    %1642 = vrot.lane.b32.xlu0 %v1637, 32
    %v1643 = vpop.permute.xlu0 %1642
    %v1646 = vadd.f32 %v1626, %v1641
    %v1647 = vadd.f32 %v1627, %v1643
    %v1648 = vtanh.pop %v1646
    %v1649 = vtanh.pop %v1647
    %1652 = vrot.lane.b32.xlu0 %v1648, 64
    %v1653 = vpop.permute.xlu0 %1652
    %1654 = vrot.lane.b32.xlu0 %v1649, 64
    %v1655 = vpop.permute.xlu0 %1654
    %v1658 = vmul.f32 %v1621, %v1653
    %v1659 = vmul.f32 %v1623, %v1655
    %v1660 = vpack.c.bf16 %v1659, %v1658
    %1662 = vrot.lane.b32.xlu0 %v1660, 32
    %v1663 = vpop.permute.xlu0 %1662
    %s1665 = scalar_lea.vmem [#allocation2], 48
    %1666 = vst.msk [vmem:[%s1665] sm:$0xff] %vm162, %v1663
    %s1667 = scalar_lea.vmem [#allocation9], 32
    %v1668 = vld [vmem:[%s1667] sm:$0xff]
    %v1669 = vld [vmem:[%s1667 + $0x8] sm:$0xff]
    %s1670 = scalar_lea.vmem [#allocation7], 8
    %v1671 = vld [vmem:[%s1670] sm:$0xf]
    %v1672 = vld [vmem:[%s1670 + $0x4] sm:$0xf]
    %1674 = vset.pattern.permute.xlu0 0
    %1675 = vperm.xlu0 %1674, %v1668
    %v1676 = vpop.permute.xlu0 %1675
    %1679 = vset.pattern.permute.xlu0 0
    %1680 = vperm.xlu0 %1679, %v1669
    %v1681 = vpop.permute.xlu0 %1680
    %v1683 = vmul.f32 %v1552, %v1676
    %v1684 = vmul.f32 %v1553, %v1681
    %v1685 = vmul.f32 %v1540, %v1676
    %v1686 = vmul.f32 %v1541, %v1681
    %v1687 = vunpack.c.l.bf16 %v1671
    %v1688 = vunpack.c.l.bf16 %v1672
    %v1689 = vpack.c.bf16 %v1684, %v1683
    %1691 = vrot.lane.b32.xlu0 %v1689, 32
    %v1692 = vpop.permute.xlu0 %1691
    %v1694 = vsel %vm162, %v1692, 0
    %1696 = vmatprep.subr.bf16.mxu0 0
    %1697 = vmatpush1.bf16.msra.mxu0 %v292
    %1698 = vmatprep.subr.bf16.mxu0 0
    %1699 = vmatpush1.bf16.msra.mxu0 %v293
    %1700 = vmatprep.subr.bf16.mxu0 0
    %1701 = vmatpush1.bf16.msra.mxu0 0
    %1702 = vmatprep.subr.bf16.mxu0 0
    %1703 = vmatpush1.bf16.msra.mxu0 0
    %1704 = vmatprep.subr.bf16.mxu0 0
    %1705 = vmatpush1.bf16.msra.mxu0 0
    %1706 = vmatprep.subr.bf16.mxu0 0
    %1707 = vmatpush1.bf16.msra.mxu0 0
    %1708 = vmatprep.subr.bf16.mxu0 0
    %1709 = vmatpush1.bf16.msra.mxu0 0
    %1710 = vmatprep.subr.bf16.mxu0 0
    %1711 = vmatpush1.bf16.msra.mxu0 0
    %1712 = vmatprep.subr.bf16.mxu0 0
    %1713 = vmatpush1.bf16.msra.mxu0 0
    %1714 = vmatprep.subr.bf16.mxu0 0
    %1715 = vmatpush1.bf16.msra.mxu0 0
    %1716 = vmatprep.subr.bf16.mxu0 0
    %1717 = vmatpush1.bf16.msra.mxu0 0
    %1718 = vmatprep.subr.bf16.mxu0 0
    %1719 = vmatpush1.bf16.msra.mxu0 0
    %1720 = vmatprep.subr.bf16.mxu0 0
    %1721 = vmatpush1.bf16.msra.mxu0 0
    %1722 = vmatprep.subr.bf16.mxu0 0
    %1723 = vmatpush1.bf16.msra.mxu0 0
    %1724 = vmatprep.subr.bf16.mxu0 0
    %1725 = vmatpush1.bf16.msra.mxu0 0
    %1726 = vmatprep.subr.bf16.mxu0 0
    %1727 = vmatpush1.bf16.msra.mxu0 0
    %1728 = vmatprep.mubr.bf16.mxu0 0
    %1729 = vmatmul.mubr.bf16.gmra.mrb[0].mxu0 %v1694
    %v1730 = vpop.f32.mrb[0].mxu0
    %v1731 = vadd.f32 0.0, %v1730
    %v1732 = vpop.f32.mrb[0].mxu0
    %v1733 = vpop.f32.mrb[0].mxu0
    %v1734 = vadd.f32 0.0, %v1733
    %v1735 = vpop.f32.mrb[0].mxu0
    %1736 = vdwg.mxu0
    %v1737 = vadd.f32 %v1687, %v1731
    %v1738 = vadd.f32 %v1688, %v1734
    %v1739 = vxor.u32 %v1737, 2147483648
    %v1740 = vxor.u32 %v1738, 2147483648
    %v1741 = vmul.f32 %v1739, 1.442695
    %v1742 = vpow.pop %v1741
    %v1743 = vmul.f32 %v1740, 1.442695
    %v1744 = vpow.pop %v1743
    %v1745 = vadd.f32 %v1742, 1.0
    %v1746 = vadd.f32 %v1744, 1.0
    %v1747 = vrcp.pop %v1745
    %v1748 = vmul.f32 1.0, %v1747
    %v1749 = vrcp.pop %v1746
    %v1750 = vmul.f32 1.0, %v1749
    %v1751 = vtanh.pop %v1737
    %v1752 = vtanh.pop %v1738
    %v1753 = vmul.f32 %v1748, %v1685
    %v1754 = vmul.f32 %v1750, %v1686
    %1757 = vrot.lane.b32.xlu0 %v1751, 64
    %v1758 = vpop.permute.xlu0 %1757
    %1759 = vrot.lane.b32.xlu0 %v1752, 64
    %v1760 = vpop.permute.xlu0 %1759
    %v1763 = vmul.f32 %v1748, %v1758
    %v1764 = vmul.f32 %v1750, %v1760
    %1767 = vrot.lane.b32.xlu0 %v1763, 32
    %v1768 = vpop.permute.xlu0 %1767
    %1769 = vrot.lane.b32.xlu0 %v1764, 32
    %v1770 = vpop.permute.xlu0 %1769
    %v1773 = vadd.f32 %v1753, %v1768
    %v1774 = vadd.f32 %v1754, %v1770
    %v1775 = vtanh.pop %v1773
    %v1776 = vtanh.pop %v1774
    %1779 = vrot.lane.b32.xlu0 %v1775, 64
    %v1780 = vpop.permute.xlu0 %1779
    %1781 = vrot.lane.b32.xlu0 %v1776, 64
    %v1782 = vpop.permute.xlu0 %1781
    %v1785 = vmul.f32 %v1748, %v1780
    %v1786 = vmul.f32 %v1750, %v1782
    %v1787 = vpack.c.bf16 %v1786, %v1785
    %1789 = vrot.lane.b32.xlu0 %v1787, 32
    %v1790 = vpop.permute.xlu0 %1789
    %s1792 = scalar_lea.vmem [#allocation3], 8
    %1793 = vst.msk [vmem:[%s1792] sm:$0xff] %vm162, %v1790
    %s1794 = scalar_lea.vmem [#allocation4], 56
    %v1795 = vld [vmem:[%s1794] sm:$0xf]
    %v1796 = vld [vmem:[%s1794 + $0x4] sm:$0xf]
    %v1797 = vunpack.c.l.bf16 %v1795
    %v1798 = vunpack.c.l.bf16 %v1796
    %v1800 = vsel %vm162, %v1663, 0
    %1802 = vmatprep.subr.bf16.mxu0 0
    %1803 = vmatpush1.bf16.msra.mxu0 %v158
    %1804 = vmatprep.subr.bf16.mxu0 0
    %1805 = vmatpush1.bf16.msra.mxu0 %v159
    %1806 = vmatprep.subr.bf16.mxu0 0
    %1807 = vmatpush1.bf16.msra.mxu0 0
    %1808 = vmatprep.subr.bf16.mxu0 0
    %1809 = vmatpush1.bf16.msra.mxu0 0
    %1810 = vmatprep.subr.bf16.mxu0 0
    %1811 = vmatpush1.bf16.msra.mxu0 0
    %1812 = vmatprep.subr.bf16.mxu0 0
    %1813 = vmatpush1.bf16.msra.mxu0 0
    %1814 = vmatprep.subr.bf16.mxu0 0
    %1815 = vmatpush1.bf16.msra.mxu0 0
    %1816 = vmatprep.subr.bf16.mxu0 0
    %1817 = vmatpush1.bf16.msra.mxu0 0
    %1818 = vmatprep.subr.bf16.mxu0 0
    %1819 = vmatpush1.bf16.msra.mxu0 0
    %1820 = vmatprep.subr.bf16.mxu0 0
    %1821 = vmatpush1.bf16.msra.mxu0 0
    %1822 = vmatprep.subr.bf16.mxu0 0
    %1823 = vmatpush1.bf16.msra.mxu0 0
    %1824 = vmatprep.subr.bf16.mxu0 0
    %1825 = vmatpush1.bf16.msra.mxu0 0
    %1826 = vmatprep.subr.bf16.mxu0 0
    %1827 = vmatpush1.bf16.msra.mxu0 0
    %1828 = vmatprep.subr.bf16.mxu0 0
    %1829 = vmatpush1.bf16.msra.mxu0 0
    %1830 = vmatprep.subr.bf16.mxu0 0
    %1831 = vmatpush1.bf16.msra.mxu0 0
    %1832 = vmatprep.subr.bf16.mxu0 0
    %1833 = vmatpush1.bf16.msra.mxu0 0
    %1834 = vmatprep.mubr.bf16.mxu0 0
    %1835 = vmatmul.mubr.bf16.gmra.mrb[0].mxu0 %v1800
    %v1836 = vpop.f32.mrb[0].mxu0
    %v1837 = vadd.f32 0.0, %v1836
    %v1838 = vpop.f32.mrb[0].mxu0
    %v1839 = vpop.f32.mrb[0].mxu0
    %v1840 = vadd.f32 0.0, %v1839
    %v1841 = vpop.f32.mrb[0].mxu0
    %1842 = vdwg.mxu0
    %v1843 = vadd.f32 %v1797, %v1837
    %v1844 = vadd.f32 %v1798, %v1840
    %v1845 = vxor.u32 %v1843, 2147483648
    %v1846 = vxor.u32 %v1844, 2147483648
    %v1847 = vmul.f32 %v1845, 1.442695
    %v1848 = vpow.pop %v1847
    %v1849 = vmul.f32 %v1846, 1.442695
    %v1850 = vpow.pop %v1849
    %v1851 = vadd.f32 %v1848, 1.0
    %v1852 = vadd.f32 %v1850, 1.0
    %v1853 = vrcp.pop %v1851
    %v1854 = vmul.f32 1.0, %v1853
    %v1855 = vrcp.pop %v1852
    %v1856 = vmul.f32 1.0, %v1855
    %v1857 = vtanh.pop %v1843
    %v1858 = vtanh.pop %v1844
    %v1859 = vmul.f32 %v1854, %v1646
    %v1860 = vmul.f32 %v1856, %v1647
    %1863 = vrot.lane.b32.xlu0 %v1857, 64
    %v1864 = vpop.permute.xlu0 %1863
    %1865 = vrot.lane.b32.xlu0 %v1858, 64
    %v1866 = vpop.permute.xlu0 %1865
    %v1869 = vmul.f32 %v1854, %v1864
    %v1870 = vmul.f32 %v1856, %v1866
    %1873 = vrot.lane.b32.xlu0 %v1869, 32
    %v1874 = vpop.permute.xlu0 %1873
    %1875 = vrot.lane.b32.xlu0 %v1870, 32
    %v1876 = vpop.permute.xlu0 %1875
    %v1879 = vadd.f32 %v1859, %v1874
    %v1880 = vadd.f32 %v1860, %v1876
    %v1881 = vtanh.pop %v1879
    %v1882 = vtanh.pop %v1880
    %1885 = vrot.lane.b32.xlu0 %v1881, 64
    %v1886 = vpop.permute.xlu0 %1885
    %1887 = vrot.lane.b32.xlu0 %v1882, 64
    %v1888 = vpop.permute.xlu0 %1887
    %v1891 = vmul.f32 %v1854, %v1886
    %v1892 = vmul.f32 %v1856, %v1888
    %v1893 = vpack.c.bf16 %v1892, %v1891
    %1895 = vrot.lane.b32.xlu0 %v1893, 32
    %v1896 = vpop.permute.xlu0 %1895
    %s1898 = scalar_lea.vmem [#allocation2], 56
    %1899 = vst.msk [vmem:[%s1898] sm:$0xff] %vm162, %v1896
    %s1900 = scalar_lea.vmem [#allocation9], 16
    %v1901 = vld [vmem:[%s1900] sm:$0xff]
    %v1902 = vld [vmem:[%s1900 + $0x8] sm:$0xff]
    %v1903 = vld [vmem:[#allocation7] sm:$0xf]
    %v1904 = vld [vmem:[#allocation7 + $0x4] sm:$0xf]
    %1906 = vset.pattern.permute.xlu0 0
    %1907 = vperm.xlu0 %1906, %v1901
    %v1908 = vpop.permute.xlu0 %1907
    %1911 = vset.pattern.permute.xlu0 0
    %1912 = vperm.xlu0 %1911, %v1902
    %v1913 = vpop.permute.xlu0 %1912
    %v1915 = vmul.f32 %v1785, %v1908
    %v1916 = vmul.f32 %v1786, %v1913
    %v1917 = vmul.f32 %v1773, %v1908
    %v1918 = vmul.f32 %v1774, %v1913
    %v1919 = vunpack.c.l.bf16 %v1903
    %v1920 = vunpack.c.l.bf16 %v1904
    %v1921 = vpack.c.bf16 %v1916, %v1915
    %1923 = vrot.lane.b32.xlu0 %v1921, 32
    %v1924 = vpop.permute.xlu0 %1923
    %v1926 = vsel %vm162, %v1924, 0
    %1928 = vmatprep.subr.bf16.mxu0 0
    %1929 = vmatpush1.bf16.msra.mxu0 %v292
    %1930 = vmatprep.subr.bf16.mxu0 0
    %1931 = vmatpush1.bf16.msra.mxu0 %v293
    %1932 = vmatprep.subr.bf16.mxu0 0
    %1933 = vmatpush1.bf16.msra.mxu0 0
    %1934 = vmatprep.subr.bf16.mxu0 0
    %1935 = vmatpush1.bf16.msra.mxu0 0
    %1936 = vmatprep.subr.bf16.mxu0 0
    %1937 = vmatpush1.bf16.msra.mxu0 0
    %1938 = vmatprep.subr.bf16.mxu0 0
    %1939 = vmatpush1.bf16.msra.mxu0 0
    %1940 = vmatprep.subr.bf16.mxu0 0
    %1941 = vmatpush1.bf16.msra.mxu0 0
    %1942 = vmatprep.subr.bf16.mxu0 0
    %1943 = vmatpush1.bf16.msra.mxu0 0
    %1944 = vmatprep.subr.bf16.mxu0 0
    %1945 = vmatpush1.bf16.msra.mxu0 0
    %1946 = vmatprep.subr.bf16.mxu0 0
    %1947 = vmatpush1.bf16.msra.mxu0 0
    %1948 = vmatprep.subr.bf16.mxu0 0
    %1949 = vmatpush1.bf16.msra.mxu0 0
    %1950 = vmatprep.subr.bf16.mxu0 0
    %1951 = vmatpush1.bf16.msra.mxu0 0
    %1952 = vmatprep.subr.bf16.mxu0 0
    %1953 = vmatpush1.bf16.msra.mxu0 0
    %1954 = vmatprep.subr.bf16.mxu0 0
    %1955 = vmatpush1.bf16.msra.mxu0 0
    %1956 = vmatprep.subr.bf16.mxu0 0
    %1957 = vmatpush1.bf16.msra.mxu0 0
    %1958 = vmatprep.subr.bf16.mxu0 0
    %1959 = vmatpush1.bf16.msra.mxu0 0
    %1960 = vmatprep.mubr.bf16.mxu0 0
    %1961 = vmatmul.mubr.bf16.gmra.mrb[0].mxu0 %v1926
    %v1962 = vpop.f32.mrb[0].mxu0
    %v1963 = vadd.f32 0.0, %v1962
    %v1964 = vpop.f32.mrb[0].mxu0
    %v1965 = vpop.f32.mrb[0].mxu0
    %v1966 = vadd.f32 0.0, %v1965
    %v1967 = vpop.f32.mrb[0].mxu0
    %1968 = vdwg.mxu0
    %v1969 = vadd.f32 %v1919, %v1963
    %v1970 = vadd.f32 %v1920, %v1966
    %v1971 = vxor.u32 %v1969, 2147483648
    %v1972 = vxor.u32 %v1970, 2147483648
    %v1973 = vmul.f32 %v1971, 1.442695
    %v1974 = vpow.pop %v1973
    %v1975 = vmul.f32 %v1972, 1.442695
    %v1976 = vpow.pop %v1975
    %v1977 = vadd.f32 %v1974, 1.0
    %v1978 = vadd.f32 %v1976, 1.0
    %v1979 = vrcp.pop %v1977
    %v1980 = vmul.f32 1.0, %v1979
    %v1981 = vrcp.pop %v1978
    %v1982 = vmul.f32 1.0, %v1981
    %v1983 = vtanh.pop %v1969
    %v1984 = vtanh.pop %v1970
    %v1985 = vmul.f32 %v1980, %v1917
    %v1986 = vmul.f32 %v1982, %v1918
    %1989 = vrot.lane.b32.xlu0 %v1983, 64
    %v1990 = vpop.permute.xlu0 %1989
    %1991 = vrot.lane.b32.xlu0 %v1984, 64
    %v1992 = vpop.permute.xlu0 %1991
    %v1995 = vmul.f32 %v1980, %v1990
    %v1996 = vmul.f32 %v1982, %v1992
    %1999 = vrot.lane.b32.xlu0 %v1995, 32
    %v2000 = vpop.permute.xlu0 %1999
    %2001 = vrot.lane.b32.xlu0 %v1996, 32
    %v2002 = vpop.permute.xlu0 %2001
    %v2005 = vadd.f32 %v1985, %v2000
    %v2006 = vadd.f32 %v1986, %v2002
    %v2007 = vtanh.pop %v2005
    %v2008 = vtanh.pop %v2006
    %2011 = vrot.lane.b32.xlu0 %v2007, 64
    %v2012 = vpop.permute.xlu0 %2011
    %2013 = vrot.lane.b32.xlu0 %v2008, 64
    %v2014 = vpop.permute.xlu0 %2013
    %v2017 = vmul.f32 %v1980, %v2012
    %v2018 = vmul.f32 %v1982, %v2014
    %v2019 = vpack.c.bf16 %v2018, %v2017
    %2021 = vrot.lane.b32.xlu0 %v2019, 32
    %v2022 = vpop.permute.xlu0 %2021
    %2024 = vst.msk [vmem:[#allocation3] sm:$0xff] %vm162, %v2022
    %v2025 = vld [vmem:[#allocation13] sm:$0xf]
    %v2026 = vld [vmem:[#allocation13 + $0x4] sm:$0xf]
    %v2027 = vld [vmem:[#allocation13 + $0x8] sm:$0xf]
    %v2028 = vld [vmem:[#allocation13 + $0xc] sm:$0xf]
    %v2029 = vld [vmem:[#allocation15] sm:$0xf]
    %v2030 = vld [vmem:[#allocation15 + $0x4] sm:$0xf]
    %v2031 = vld [vmem:[#allocation15 + $0x8] sm:$0xf]
    %v2032 = vld [vmem:[#allocation15 + $0xc] sm:$0xf]
    %2033 = vst [vmem:[#allocation18] sm:$0xff] -10000000.0
    %2034 = vst [vmem:[#allocation18 + $0x8] sm:$0xff] -10000000.0
    %v2035 = vld [vmem:[#allocation2] sm:$0xff]
    %v2036 = vld [vmem:[#allocation2 + $0x8] sm:$0xff]
    %v2037 = vld [vmem:[#allocation2 + $0x10] sm:$0xff]
    %v2038 = vld [vmem:[#allocation2 + $0x18] sm:$0xff]
    %v2039 = vld [vmem:[#allocation2 + $0x20] sm:$0xff]
    %v2040 = vld [vmem:[#allocation2 + $0x28] sm:$0xff]
    %v2041 = vld [vmem:[#allocation2 + $0x30] sm:$0xff]
    %v2042 = vld [vmem:[#allocation2 + $0x38] sm:$0xff]
    %v2043 = vld [vmem:[#allocation3] sm:$0xff]
    %v2044 = vld [vmem:[#allocation3 + $0x8] sm:$0xff]
    %v2045 = vld [vmem:[#allocation3 + $0x10] sm:$0xff]
    %v2046 = vld [vmem:[#allocation3 + $0x18] sm:$0xff]
    %v2047 = vld [vmem:[#allocation3 + $0x20] sm:$0xff]
    %v2048 = vld [vmem:[#allocation3 + $0x28] sm:$0xff]
    %v2049 = vld [vmem:[#allocation3 + $0x30] sm:$0xff]
    %v2050 = vld [vmem:[#allocation3 + $0x38] sm:$0xff]
    %v2055 = vunpack.c.l.b16 %v2029
    %v2056 = vunpack.c.l.b16 %v2030
    %v2057 = vunpack.c.l.b16 %v2031
    %v2058 = vunpack.c.l.b16 %v2032
    %v2059 = vpack.c.b16 %v2056, %v2055
    %v2060 = vpack.c.b16 %v2058, %v2057
    %v2064 = vsel %vm162, %v2043, 0
    %v2067 = vsel %vm162, %v2044, 0
    %v2070 = vsel %vm162, %v2045, 0
    %v2073 = vsel %vm162, %v2046, 0
    %v2076 = vsel %vm162, %v2047, 0
    %v2079 = vsel %vm162, %v2048, 0
    %v2082 = vsel %vm162, %v2049, 0
    %v2085 = vsel %vm162, %v2050, 0
    %2087 = vmatprep.subr.bf16.mxu0 0
    %2088 = vmatpush1.bf16.msra.mxu0 %v2059
    %2089 = vmatprep.subr.bf16.mxu0 0
    %2090 = vmatpush1.bf16.msra.mxu0 %v2060
    %2091 = vmatprep.subr.bf16.mxu0 0
    %2092 = vmatpush1.bf16.msra.mxu0 0
    %2093 = vmatprep.subr.bf16.mxu0 0
    %2094 = vmatpush1.bf16.msra.mxu0 0
    %2095 = vmatprep.subr.bf16.mxu0 0
    %2096 = vmatpush1.bf16.msra.mxu0 0
    %2097 = vmatprep.subr.bf16.mxu0 0
    %2098 = vmatpush1.bf16.msra.mxu0 0
    %2099 = vmatprep.subr.bf16.mxu0 0
    %2100 = vmatpush1.bf16.msra.mxu0 0
    %2101 = vmatprep.subr.bf16.mxu0 0
    %2102 = vmatpush1.bf16.msra.mxu0 0
    %2103 = vmatprep.subr.bf16.mxu0 0
    %2104 = vmatpush1.bf16.msra.mxu0 0
    %2105 = vmatprep.subr.bf16.mxu0 0
    %2106 = vmatpush1.bf16.msra.mxu0 0
    %2107 = vmatprep.subr.bf16.mxu0 0
    %2108 = vmatpush1.bf16.msra.mxu0 0
    %2109 = vmatprep.subr.bf16.mxu0 0
    %2110 = vmatpush1.bf16.msra.mxu0 0
    %2111 = vmatprep.subr.bf16.mxu0 0
    %2112 = vmatpush1.bf16.msra.mxu0 0
    %2113 = vmatprep.subr.bf16.mxu0 0
    %2114 = vmatpush1.bf16.msra.mxu0 0
    %2115 = vmatprep.subr.bf16.mxu0 0
    %2116 = vmatpush1.bf16.msra.mxu0 0
    %2117 = vmatprep.subr.bf16.mxu0 0
    %2118 = vmatpush1.bf16.msra.mxu0 0
    %2119 = vmatprep.mubr.bf16.mxu0 0
    %2120 = vmatmul.mubr.bf16.gmra.mrb[0].mxu0 %v2064
    %v2121 = vpop.f32.mrb[0].mxu0
    %v2122 = vadd.f32 0.0, %v2121
    %v2123 = vpop.f32.mrb[0].mxu0
    %v2124 = vpop.f32.mrb[0].mxu0
    %v2125 = vadd.f32 0.0, %v2124
    %v2126 = vpop.f32.mrb[0].mxu0
    %2127 = vmatprep.mubr.bf16.mxu0 0
    %2128 = vmatmul.mubr.bf16.gmra.mrb[0].mxu0 %v2067
    %v2129 = vpop.f32.mrb[0].mxu0
    %v2130 = vadd.f32 0.0, %v2129
    %v2131 = vpop.f32.mrb[0].mxu0
    %v2132 = vpop.f32.mrb[0].mxu0
    %v2133 = vadd.f32 0.0, %v2132
    %v2134 = vpop.f32.mrb[0].mxu0
    %2135 = vmatprep.mubr.bf16.mxu0 0
    %2136 = vmatmul.mubr.bf16.gmra.mrb[0].mxu0 %v2070
    %v2137 = vpop.f32.mrb[0].mxu0
    %v2138 = vadd.f32 0.0, %v2137
    %v2139 = vpop.f32.mrb[0].mxu0
    %v2140 = vpop.f32.mrb[0].mxu0
    %v2141 = vadd.f32 0.0, %v2140
    %v2142 = vpop.f32.mrb[0].mxu0
    %2143 = vmatprep.mubr.bf16.mxu0 0
    %2144 = vmatmul.mubr.bf16.gmra.mrb[0].mxu0 %v2073
    %v2145 = vpop.f32.mrb[0].mxu0
    %v2146 = vadd.f32 0.0, %v2145
    %v2147 = vpop.f32.mrb[0].mxu0
    %v2148 = vpop.f32.mrb[0].mxu0
    %v2149 = vadd.f32 0.0, %v2148
    %v2150 = vpop.f32.mrb[0].mxu0
    %2151 = vmatprep.mubr.bf16.mxu0 0
    %2152 = vmatmul.mubr.bf16.gmra.mrb[0].mxu0 %v2076
    %v2153 = vpop.f32.mrb[0].mxu0
    %v2154 = vadd.f32 0.0, %v2153
    %v2155 = vpop.f32.mrb[0].mxu0
    %v2156 = vpop.f32.mrb[0].mxu0
    %v2157 = vadd.f32 0.0, %v2156
    %v2158 = vpop.f32.mrb[0].mxu0
    %2159 = vmatprep.mubr.bf16.mxu0 0
    %2160 = vmatmul.mubr.bf16.gmra.mrb[0].mxu0 %v2079
    %v2161 = vpop.f32.mrb[0].mxu0
    %v2162 = vadd.f32 0.0, %v2161
    %v2163 = vpop.f32.mrb[0].mxu0
    %v2164 = vpop.f32.mrb[0].mxu0
    %v2165 = vadd.f32 0.0, %v2164
    %v2166 = vpop.f32.mrb[0].mxu0
    %2167 = vmatprep.mubr.bf16.mxu0 0
    %2168 = vmatmul.mubr.bf16.gmra.mrb[0].mxu0 %v2082
    %v2169 = vpop.f32.mrb[0].mxu0
    %v2170 = vadd.f32 0.0, %v2169
    %v2171 = vpop.f32.mrb[0].mxu0
    %v2172 = vpop.f32.mrb[0].mxu0
    %v2173 = vadd.f32 0.0, %v2172
    %v2174 = vpop.f32.mrb[0].mxu0
    %2175 = vmatprep.mubr.bf16.mxu0 0
    %2176 = vmatmul.mubr.bf16.gmra.mrb[0].mxu0 %v2085
    %v2177 = vpop.f32.mrb[0].mxu0
    %v2178 = vadd.f32 0.0, %v2177
    %v2179 = vpop.f32.mrb[0].mxu0
    %v2180 = vpop.f32.mrb[0].mxu0
    %v2181 = vadd.f32 0.0, %v2180
    %v2182 = vpop.f32.mrb[0].mxu0
    %2183 = vdwg.mxu0
    %v2188 = vunpack.c.l.b16 %v2025
    %v2189 = vunpack.c.l.b16 %v2026
    %v2190 = vunpack.c.l.b16 %v2027
    %v2191 = vunpack.c.l.b16 %v2028
    %v2192 = vpack.c.b16 %v2189, %v2188
    %v2193 = vpack.c.b16 %v2191, %v2190
    %v2197 = vsel %vm162, %v2035, 0
    %v2200 = vsel %vm162, %v2036, 0
    %v2203 = vsel %vm162, %v2037, 0
    %v2206 = vsel %vm162, %v2038, 0
    %v2209 = vsel %vm162, %v2039, 0
    %v2212 = vsel %vm162, %v2040, 0
    %v2215 = vsel %vm162, %v2041, 0
    %v2218 = vsel %vm162, %v2042, 0
    %2220 = vmatprep.subr.bf16.mxu0 0
    %2221 = vmatpush1.bf16.msra.mxu0 %v2192
    %2222 = vmatprep.subr.bf16.mxu0 0
    %2223 = vmatpush1.bf16.msra.mxu0 %v2193
    %2224 = vmatprep.subr.bf16.mxu0 0
    %2225 = vmatpush1.bf16.msra.mxu0 0
    %2226 = vmatprep.subr.bf16.mxu0 0
    %2227 = vmatpush1.bf16.msra.mxu0 0
    %2228 = vmatprep.subr.bf16.mxu0 0
    %2229 = vmatpush1.bf16.msra.mxu0 0
    %2230 = vmatprep.subr.bf16.mxu0 0
    %2231 = vmatpush1.bf16.msra.mxu0 0
    %2232 = vmatprep.subr.bf16.mxu0 0
    %2233 = vmatpush1.bf16.msra.mxu0 0
    %2234 = vmatprep.subr.bf16.mxu0 0
    %2235 = vmatpush1.bf16.msra.mxu0 0
    %2236 = vmatprep.subr.bf16.mxu0 0
    %2237 = vmatpush1.bf16.msra.mxu0 0
    %2238 = vmatprep.subr.bf16.mxu0 0
    %2239 = vmatpush1.bf16.msra.mxu0 0
    %2240 = vmatprep.subr.bf16.mxu0 0
    %2241 = vmatpush1.bf16.msra.mxu0 0
    %2242 = vmatprep.subr.bf16.mxu0 0
    %2243 = vmatpush1.bf16.msra.mxu0 0
    %2244 = vmatprep.subr.bf16.mxu0 0
    %2245 = vmatpush1.bf16.msra.mxu0 0
    %2246 = vmatprep.subr.bf16.mxu0 0
    %2247 = vmatpush1.bf16.msra.mxu0 0
    %2248 = vmatprep.subr.bf16.mxu0 0
    %2249 = vmatpush1.bf16.msra.mxu0 0
    %2250 = vmatprep.subr.bf16.mxu0 0
    %2251 = vmatpush1.bf16.msra.mxu0 0
    %2252 = vmatprep.mubr.bf16.mxu0 0
    %2253 = vmatmul.mubr.bf16.gmra.mrb[0].mxu0 %v2197
    %v2254 = vpop.f32.mrb[0].mxu0
    %v2255 = vadd.f32 %v2122, %v2254
    %v2256 = vpop.f32.mrb[0].mxu0
    %v2257 = vpop.f32.mrb[0].mxu0
    %v2258 = vadd.f32 %v2125, %v2257
    %v2259 = vpop.f32.mrb[0].mxu0
    %2260 = vmatprep.mubr.bf16.mxu0 0
    %2261 = vmatmul.mubr.bf16.gmra.mrb[0].mxu0 %v2200
    %v2262 = vpop.f32.mrb[0].mxu0
    %v2263 = vadd.f32 %v2130, %v2262
    %v2264 = vpop.f32.mrb[0].mxu0
    %v2265 = vpop.f32.mrb[0].mxu0
    %v2266 = vadd.f32 %v2133, %v2265
    %v2267 = vpop.f32.mrb[0].mxu0
    %2268 = vmatprep.mubr.bf16.mxu0 0
    %2269 = vmatmul.mubr.bf16.gmra.mrb[0].mxu0 %v2203
    %v2270 = vpop.f32.mrb[0].mxu0
    %v2271 = vadd.f32 %v2138, %v2270
    %v2272 = vpop.f32.mrb[0].mxu0
    %v2273 = vpop.f32.mrb[0].mxu0
    %v2274 = vadd.f32 %v2141, %v2273
    %v2275 = vpop.f32.mrb[0].mxu0
    %2276 = vmatprep.mubr.bf16.mxu0 0
    %2277 = vmatmul.mubr.bf16.gmra.mrb[0].mxu0 %v2206
    %v2278 = vpop.f32.mrb[0].mxu0
    %v2279 = vadd.f32 %v2146, %v2278
    %v2280 = vpop.f32.mrb[0].mxu0
    %v2281 = vpop.f32.mrb[0].mxu0
    %v2282 = vadd.f32 %v2149, %v2281
    %v2283 = vpop.f32.mrb[0].mxu0
    %2284 = vmatprep.mubr.bf16.mxu0 0
    %2285 = vmatmul.mubr.bf16.gmra.mrb[0].mxu0 %v2209
    %v2286 = vpop.f32.mrb[0].mxu0
    %v2287 = vadd.f32 %v2154, %v2286
    %v2288 = vpop.f32.mrb[0].mxu0
    %v2289 = vpop.f32.mrb[0].mxu0
    %v2290 = vadd.f32 %v2157, %v2289
    %v2291 = vpop.f32.mrb[0].mxu0
    %2292 = vmatprep.mubr.bf16.mxu0 0
    %2293 = vmatmul.mubr.bf16.gmra.mrb[0].mxu0 %v2212
    %v2294 = vpop.f32.mrb[0].mxu0
    %v2295 = vadd.f32 %v2162, %v2294
    %v2296 = vpop.f32.mrb[0].mxu0
    %v2297 = vpop.f32.mrb[0].mxu0
    %v2298 = vadd.f32 %v2165, %v2297
    %v2299 = vpop.f32.mrb[0].mxu0
    %2300 = vmatprep.mubr.bf16.mxu0 0
    %2301 = vmatmul.mubr.bf16.gmra.mrb[0].mxu0 %v2215
    %v2302 = vpop.f32.mrb[0].mxu0
    %v2303 = vadd.f32 %v2170, %v2302
    %v2304 = vpop.f32.mrb[0].mxu0
    %v2305 = vpop.f32.mrb[0].mxu0
    %v2306 = vadd.f32 %v2173, %v2305
    %v2307 = vpop.f32.mrb[0].mxu0
    %2308 = vmatprep.mubr.bf16.mxu0 0
    %2309 = vmatmul.mubr.bf16.gmra.mrb[0].mxu0 %v2218
    %v2310 = vpop.f32.mrb[0].mxu0
    %v2311 = vadd.f32 %v2178, %v2310
    %v2312 = vpop.f32.mrb[0].mxu0
    %v2313 = vpop.f32.mrb[0].mxu0
    %v2314 = vadd.f32 %v2181, %v2313
    %v2315 = vpop.f32.mrb[0].mxu0
    %2316 = vdwg.mxu0
    %v2317 = vld [vmem:[#allocation9] sm:$0xff]
    %v2318 = vld [vmem:[#allocation9 + $0x8] sm:$0xff]
    %v2319 = vld [vmem:[#allocation9 + $0x10] sm:$0xff]
    %v2320 = vld [vmem:[#allocation9 + $0x18] sm:$0xff]
    %v2321 = vld [vmem:[#allocation9 + $0x20] sm:$0xff]
    %v2322 = vld [vmem:[#allocation9 + $0x28] sm:$0xff]
    %v2323 = vld [vmem:[#allocation9 + $0x30] sm:$0xff]
    %v2324 = vld [vmem:[#allocation9 + $0x38] sm:$0xff]
    %v2325 = vld [vmem:[#allocation9 + $0x40] sm:$0xff]
    %v2326 = vld [vmem:[#allocation9 + $0x48] sm:$0xff]
    %v2327 = vld [vmem:[#allocation9 + $0x50] sm:$0xff]
    %v2328 = vld [vmem:[#allocation9 + $0x58] sm:$0xff]
    %v2329 = vld [vmem:[#allocation9 + $0x60] sm:$0xff]
    %v2330 = vld [vmem:[#allocation9 + $0x68] sm:$0xff]
    %v2331 = vld [vmem:[#allocation9 + $0x70] sm:$0xff]
    %v2332 = vld [vmem:[#allocation9 + $0x78] sm:$0xff]
    %vm2333 = vcmp.gt.f32.partialorder %v2317, 0.0
    %vm2334 = vcmp.gt.f32.partialorder %v2318, 0.0
    %v2335 = vsel %vm2333, 1, 0
    %v2336 = vsel %vm2334, 1, 0
    %2337 = vset.pattern.permute.xlu0 0
    %2338 = vperm.xlu0 %2337, %v2335
    %v2339 = vpop.permute.xlu0 %2338
    %2340 = vset.pattern.permute.xlu0 0
    %2341 = vperm.xlu0 %2340, %v2336
    %v2342 = vpop.permute.xlu0 %2341
    %vm2343 = vcmp.eq.s32.totalorder %v2339, 1
    %vm2344 = vcmp.eq.s32.totalorder %v2342, 1
    %v2345 = vsel %vm2343, %v2255, -10000000.0
    %v2346 = vsel %vm2344, %v2258, -10000000.0
    %vm2347 = vcmp.gt.f32.partialorder %v2319, 0.0
    %vm2348 = vcmp.gt.f32.partialorder %v2320, 0.0
    %v2349 = vsel %vm2347, 1, 0
    %v2350 = vsel %vm2348, 1, 0
    %2351 = vset.pattern.permute.xlu0 0
    %2352 = vperm.xlu0 %2351, %v2349
    %v2353 = vpop.permute.xlu0 %2352
    %2354 = vset.pattern.permute.xlu0 0
    %2355 = vperm.xlu0 %2354, %v2350
    %v2356 = vpop.permute.xlu0 %2355
    %vm2357 = vcmp.eq.s32.totalorder %v2353, 1
    %vm2358 = vcmp.eq.s32.totalorder %v2356, 1
    %v2359 = vsel %vm2357, %v2263, -10000000.0
    %v2360 = vsel %vm2358, %v2266, -10000000.0
    %v2361 = vmax.f32 %v2345, %v2359
    %v2362 = vmax.f32 %v2346, %v2360
    %vm2363 = vcmp.gt.f32.partialorder %v2321, 0.0
    %vm2364 = vcmp.gt.f32.partialorder %v2322, 0.0
    %v2365 = vsel %vm2363, 1, 0
    %v2366 = vsel %vm2364, 1, 0
    %2367 = vset.pattern.permute.xlu0 0
    %2368 = vperm.xlu0 %2367, %v2365
    %v2369 = vpop.permute.xlu0 %2368
    %2370 = vset.pattern.permute.xlu0 0
    %2371 = vperm.xlu0 %2370, %v2366
    %v2372 = vpop.permute.xlu0 %2371
    %vm2373 = vcmp.eq.s32.totalorder %v2369, 1
    %vm2374 = vcmp.eq.s32.totalorder %v2372, 1
    %v2375 = vsel %vm2373, %v2271, -10000000.0
    %v2376 = vsel %vm2374, %v2274, -10000000.0
    %v2377 = vmax.f32 %v2361, %v2375
    %v2378 = vmax.f32 %v2362, %v2376
    %vm2379 = vcmp.gt.f32.partialorder %v2323, 0.0
    %vm2380 = vcmp.gt.f32.partialorder %v2324, 0.0
    %v2381 = vsel %vm2379, 1, 0
    %v2382 = vsel %vm2380, 1, 0
    %2383 = vset.pattern.permute.xlu0 0
    %2384 = vperm.xlu0 %2383, %v2381
    %v2385 = vpop.permute.xlu0 %2384
    %2386 = vset.pattern.permute.xlu0 0
    %2387 = vperm.xlu0 %2386, %v2382
    %v2388 = vpop.permute.xlu0 %2387
    %vm2389 = vcmp.eq.s32.totalorder %v2385, 1
    %vm2390 = vcmp.eq.s32.totalorder %v2388, 1
    %v2391 = vsel %vm2389, %v2279, -10000000.0
    %v2392 = vsel %vm2390, %v2282, -10000000.0
    %v2393 = vmax.f32 %v2377, %v2391
    %v2394 = vmax.f32 %v2378, %v2392
    %vm2395 = vcmp.gt.f32.partialorder %v2325, 0.0
    %vm2396 = vcmp.gt.f32.partialorder %v2326, 0.0
    %v2397 = vsel %vm2395, 1, 0
    %v2398 = vsel %vm2396, 1, 0
    %2399 = vset.pattern.permute.xlu0 0
    %2400 = vperm.xlu0 %2399, %v2397
    %v2401 = vpop.permute.xlu0 %2400
    %2402 = vset.pattern.permute.xlu0 0
    %2403 = vperm.xlu0 %2402, %v2398
    %v2404 = vpop.permute.xlu0 %2403
    %vm2405 = vcmp.eq.s32.totalorder %v2401, 1
    %vm2406 = vcmp.eq.s32.totalorder %v2404, 1
    %v2407 = vsel %vm2405, %v2287, -10000000.0
    %v2408 = vsel %vm2406, %v2290, -10000000.0
    %v2409 = vmax.f32 %v2393, %v2407
    %v2410 = vmax.f32 %v2394, %v2408
    %vm2411 = vcmp.gt.f32.partialorder %v2327, 0.0
    %vm2412 = vcmp.gt.f32.partialorder %v2328, 0.0
    %v2413 = vsel %vm2411, 1, 0
    %v2414 = vsel %vm2412, 1, 0
    %2415 = vset.pattern.permute.xlu0 0
    %2416 = vperm.xlu0 %2415, %v2413
    %v2417 = vpop.permute.xlu0 %2416
    %2418 = vset.pattern.permute.xlu0 0
    %2419 = vperm.xlu0 %2418, %v2414
    %v2420 = vpop.permute.xlu0 %2419
    %vm2421 = vcmp.eq.s32.totalorder %v2417, 1
    %vm2422 = vcmp.eq.s32.totalorder %v2420, 1
    %v2423 = vsel %vm2421, %v2295, -10000000.0
    %v2424 = vsel %vm2422, %v2298, -10000000.0
    %v2425 = vmax.f32 %v2409, %v2423
    %v2426 = vmax.f32 %v2410, %v2424
    %vm2427 = vcmp.gt.f32.partialorder %v2329, 0.0
    %vm2428 = vcmp.gt.f32.partialorder %v2330, 0.0
    %v2429 = vsel %vm2427, 1, 0
    %v2430 = vsel %vm2428, 1, 0
    %2431 = vset.pattern.permute.xlu0 0
    %2432 = vperm.xlu0 %2431, %v2429
    %v2433 = vpop.permute.xlu0 %2432
    %2434 = vset.pattern.permute.xlu0 0
    %2435 = vperm.xlu0 %2434, %v2430
    %v2436 = vpop.permute.xlu0 %2435
    %vm2437 = vcmp.eq.s32.totalorder %v2433, 1
    %vm2438 = vcmp.eq.s32.totalorder %v2436, 1
    %v2439 = vsel %vm2437, %v2303, -10000000.0
    %v2440 = vsel %vm2438, %v2306, -10000000.0
    %v2441 = vmax.f32 %v2425, %v2439
    %v2442 = vmax.f32 %v2426, %v2440
    %vm2443 = vcmp.gt.f32.partialorder %v2331, 0.0
    %vm2444 = vcmp.gt.f32.partialorder %v2332, 0.0
    %v2445 = vsel %vm2443, 1, 0
    %v2446 = vsel %vm2444, 1, 0
    %2447 = vset.pattern.permute.xlu0 0
    %2448 = vperm.xlu0 %2447, %v2445
    %v2449 = vpop.permute.xlu0 %2448
    %2450 = vset.pattern.permute.xlu0 0
    %2451 = vperm.xlu0 %2450, %v2446
    %v2452 = vpop.permute.xlu0 %2451
    %vm2453 = vcmp.eq.s32.totalorder %v2449, 1
    %vm2454 = vcmp.eq.s32.totalorder %v2452, 1
    %v2455 = vsel %vm2453, %v2311, -10000000.0
    %v2456 = vsel %vm2454, %v2314, -10000000.0
    %v2457 = vmax.f32 %v2441, %v2455
    %v2458 = vmax.f32 %v2442, %v2456
    %v2459 = vld [vmem:[#allocation18] sm:$0xff]
    %v2460 = vld [vmem:[#allocation18 + $0x8] sm:$0xff]
    %v2461 = vmax.f32 %v2459, %v2457
    %v2462 = vmax.f32 %v2460, %v2458
    %2463 = vst [vmem:[#allocation18] sm:$0xff] %v2461
    %2464 = vst [vmem:[#allocation18 + $0x8] sm:$0xff] %v2462
    %v2465 = vld [vmem:[#allocation18] sm:$0xff]
    %v2466 = vld [vmem:[#allocation18 + $0x8] sm:$0xff]
    %v2467 = vld [vmem:[#allocation16] sm:$0x1]
    %v2469 = vlaneseq
    %v2470 = vshrl.u32 %v2469, 7
    %v2471 = vsub.s32 0, %v2470
    %v2472 = vrot.slane %v2467, %v2471
    %v2474 = vadd.f32 %v2465, %v2472
    %v2475 = vadd.f32 %v2466, %v2472
    %2476 = vst [vmem:[#allocation18] sm:$0xff] %v2474
    %2477 = vst [vmem:[#allocation18 + $0x8] sm:$0xff] %v2475
    // Predicated region
    $region66: #{splstm_forward.1} parent=1 // pred_check
      _
    $region67: #{splstm_forward.1} parent=1 // pred_check_branch
      %2479 = sbr.rel (0) target = $region69
    $region68: #{splstm_forward.1} parent=1 // pred_region
      %s2481 = ssub.s32 256, 256
      %2482 = vsyncadd [#allocation6], %s2481
      %s2483 = sshll.u32 [#allocation18], 4
      %s2484 = int_to_ptr.vmem [resolvable:$true] %s2483
      %2489 = dma.vmem_to_hbm [thread:$0]  %s2484, 256, %s8, [#allocation6], 128, 128, 8
    $region69: #{splstm_forward.1} parent=1 // pred_fallthru
      _
    // Predicated region
    $region70: #{splstm_forward.1} parent=1 // pred_check
      _
    $region71: #{splstm_forward.1} parent=1 // pred_check_branch
      %2491 = sbr.rel (0) target = $region73
    $region72: #{splstm_forward.1} parent=1 // pred_region
      %2492 = dma.done [#allocation6], 256
    $region73: #{splstm_forward.1} parent=1 // pred_fallthru
      _
    %2493 = vsyncpa [#allocation5], 1
    %2494 = vsyncpa [#allocation8], 1
    %2495 = vsyncpa [#allocation11], 1
    %2496 = vsyncpa [#allocation14], 1
    %2497 = vsyncpa [#allocation17], 1
    %2498 = vsyncpa [#allocation6], 1

</llo_original>
